<compile_context>
chip_gen: v7x
topology: tpu7x:2x2x1
jax: 0.10.0
libtpu: 0.0.40
codegen_flags: <defaults>
</compile_context>

<pallas_src>
import jax
import jax.numpy as jnp
from jax import lax
from jax.experimental import pallas as pl
from jax.experimental.pallas import tpu as pltpu

C = 64          # fixed by the module (in_channels = out_channels = 64)
EPS = 1e-5      # nn.BatchNorm2d default
ALPHA = 0.01    # nn.LeakyReLU default negative_slope


def _vmem_limit_bytes():
    cap = 64 * 1024 * 1024                       # conservative fallback = v7x per-core VMEM
    try:
        cap = int(pltpu.get_tpu_info().vmem_capacity_bytes)
    except Exception:
        pass
    cap = min(cap, 128 * 1024 * 1024)
    return int(cap * 0.85)                       # headroom for Mosaic internal scratch/spills


VMEM_LIMIT_BYTES = _vmem_limit_bytes()


def _conv_block_kernel(x_ref, w1_ref, b1_ref, w2_ref, b2_ref, g_ref, beta_ref,
                       o_ref, xpad_ref, patch_ref):
    # x_ref:     (N, H, W, C)        f32 input, NHWC (C on the lane axis)
    # w*_ref:    (9*C, C)            bf16 im2col conv weights (row order: (dy*3+dx)*C + cin)
    # b*_ref:    (1, C)              f32 conv biases
    # g_ref/beta_ref: (1, C)         f32 BatchNorm affine params (shared by both BN calls)
    # o_ref:     (N, H, W, C)        f32 output
    # xpad_ref:  (N, H+2, W+2, C)    bf16 zero-padded activation scratch (shared by both convs)
    # patch_ref: (N*H*W, 9*C)        bf16 im2col slab (persistent, rebuilt in place per conv)
    N, H, W, _ = x_ref.shape
    NHW = N * H * W
    inv_nhw = 1.0 / NHW
    bf16 = xpad_ref.dtype

    # Zero ONLY the 1-pixel border (interior is fully overwritten before each conv).
    xpad_ref[:, 0:1, :, :] = jnp.zeros((N, 1, W + 2, C), bf16)
    xpad_ref[:, H + 1:H + 2, :, :] = jnp.zeros((N, 1, W + 2, C), bf16)
    xpad_ref[:, :, 0:1, :] = jnp.zeros((N, H + 2, 1, C), bf16)
    xpad_ref[:, :, W + 1:W + 2, :] = jnp.zeros((N, H + 2, 1, C), bf16)

    def tap(t):
        dy, dx = divmod(t, 3)
        return xpad_ref[:, dy:dy + H, dx:dx + W, :].reshape(NHW, C)

    def conv3x3(w_ref, b_ref):
        # Build the (NHW, 9C) im2col slab directly in the persistent scratch: two taps are
        # packed per store so every column write is a 128-lane-aligned full-width store
        # (the lone 9th tap lands at a 128-aligned offset as a half-width store).
        for j in range(4):
            patch_ref[:, 2 * j * C:(2 * j + 2) * C] = jnp.concatenate(
                [tap(2 * j), tap(2 * j + 1)], axis=-1)
        patch_ref[:, 8 * C:9 * C] = tap(8)
        # One bf16 x bf16 -> f32 MXU matmul over the full K = 9*C contraction.
        return jnp.dot(patch_ref[...], w_ref[...],
                       preferred_element_type=jnp.float32) + b_ref[...]

    def lrelu(a):
        return jnp.where(a >= 0, a, ALPHA * a)

    def batchnorm(a2d):
        # Training-mode BN (biased variance) in one pass via E[x^2] - mean^2, folded into a
        # single per-channel scale/shift; variance clamped at 0 against cancellation.
        s = jnp.sum(a2d, axis=0, keepdims=True)
        ss = jnp.sum(a2d * a2d, axis=0, keepdims=True)
        mean = s * inv_nhw
        var = jnp.maximum(ss * inv_nhw - mean * mean, 0.0)
        scale = g_ref[...] * lax.rsqrt(var + EPS)
        shift = beta_ref[...] - mean * scale
        return a2d * scale + shift

    # x1 = batchNorm(lrelu(conv1(x)))
    xpad_ref[:, 1:H + 1, 1:W + 1, :] = x_ref[...].astype(bf16)
    y = batchnorm(lrelu(conv3x3(w1_ref, b1_ref)))

    # x1 = batchNorm(lrelu(conv2(x1)) + x)   (residual re-read from the VMEM-resident input)
    xpad_ref[:, 1:H + 1, 1:W + 1, :] = y.reshape(N, H, W, C).astype(bf16)
    y = lrelu(conv3x3(w2_ref, b2_ref)) + x_ref[...].reshape(NHW, C)
    y = batchnorm(y)

    o_ref[...] = y.reshape(N, H, W, C).astype(o_ref.dtype)
    # TODO(synk): lane-dense (N*H, W*C) output slab + (NHW/2, 128) repack of the post-matmul
    #             elementwise work (needs a minor-dim relayout; deferred to the tiled version).


def _vmem_estimate_bytes(N, H, W):
    f32, bf16 = 4, 2
    x_io = 2 * N * H * W * C * f32                   # input + output blocks
    xpad = N * (H + 2) * (W + 2) * C * bf16          # padded activation scratch
    patch = N * H * W * 9 * C * bf16                 # persistent im2col scratch
    pair = N * H * W * 2 * C * bf16                  # transient 128-lane tap pair
    act = 2 * N * H * W * C * f32                    # live f32 activation + residual headroom
    wts = 2 * 9 * C * C * bf16 + 4 * C * f32
    return x_io + xpad + patch + pair + act + wts


@jax.jit
def conv_block_forward(x_nchw, w1, b1, w2, b2, gamma, beta):
    """x_nchw: (N, 64, H, W) f32; w1/w2: PyTorch OIHW conv weights; b/gamma/beta: (64,)."""
    N, Cin, H, W = x_nchw.shape
    assert Cin == C
    # Monolithic (no-grid) design: reject shapes that cannot fit VMEM instead of failing late.
    # TODO(synk): tiled grid + two-phase BN for shapes that trip this guard (see header note).
    assert int(_vmem_estimate_bytes(N, H, W) * 1.5) < VMEM_LIMIT_BYTES, \
        "input too large for the single-invocation convBlock kernel"

    # TODO(synk): hoist NCHW<->NHWC transposes into the surrounding model (keep NHWC
    # end-to-end) to avoid an extra HBM round-trip of the activations per block.
    x_nhwc = jnp.transpose(x_nchw, (0, 2, 3, 1))
    # OIHW -> (kh, kw, Cin, Cout) -> (9*Cin, Cout) im2col weights, pre-cast to bf16 (MXU-native).
    w1_cat = jnp.transpose(w1, (2, 3, 1, 0)).reshape(9 * C, C).astype(jnp.bfloat16)
    w2_cat = jnp.transpose(w2, (2, 3, 1, 0)).reshape(9 * C, C).astype(jnp.bfloat16)

    nhw = N * H * W
    cost = pl.CostEstimate(
        flops=2 * 2 * nhw * (9 * C) * C,                          # two im2col matmuls
        transcendentals=2 * C,                                    # two per-channel rsqrt passes
        bytes_accessed=(2 * nhw * C) * 4 + 2 * (9 * C * C) * 2 + 4 * C * 4)

    vmem = pl.BlockSpec(memory_space=pltpu.MemorySpace.VMEM)
    out_nhwc = pl.pallas_call(
        _conv_block_kernel,
        out_shape=jax.ShapeDtypeStruct((N, H, W, C), jnp.float32),
        in_specs=[vmem] * 7,
        out_specs=vmem,
        scratch_shapes=[pltpu.VMEM((N, H + 2, W + 2, C), jnp.bfloat16),
                        pltpu.VMEM((nhw, 9 * C), jnp.bfloat16)],
        compiler_params=pltpu.CompilerParams(vmem_limit_bytes=VMEM_LIMIT_BYTES),
        cost_estimate=cost,
    )(x_nhwc, w1_cat, b1.reshape(1, C), w2_cat, b2.reshape(1, C),
      gamma.reshape(1, C), beta.reshape(1, C))

    return jnp.transpose(out_nhwc, (0, 3, 1, 2))                  # NHWC -> NCHW


# ---------------- pure-JAX reference (verification only, all-f32) ----------------
def _ref_forward(x, w1, b1, w2, b2, gamma, beta):
    def conv(a, w, b):
        y = lax.conv_general_dilated(a, w, window_strides=(1, 1), padding="SAME",
                                     dimension_numbers=("NCHW", "OIHW", "NCHW"))
        return y + b[None, :, None, None]

    def lrelu(a):
        return jnp.where(a >= 0, a, ALPHA * a)

    def bn(a):
        mean = jnp.mean(a, axis=(0, 2, 3), keepdims=True)
        var = jnp.mean((a - mean) ** 2, axis=(0, 2, 3), keepdims=True)
        return (a - mean) * lax.rsqrt(var + EPS) * gamma[None, :, None, None] \
            + beta[None, :, None, None]

    y = bn(lrelu(conv(x, w1, b1)))
    y = lrelu(conv(y, w2, b2))
    return bn(y + x)


if __name__ == "__main__":
    key = jax.random.PRNGKey(0)
    kx, k1, k2, k3, k4 = jax.random.split(key, 5)

    N, H, W = 2, 8, 8
    x = jax.random.normal(kx, (N, C, H, W), dtype=jnp.float32)

    # deterministic synthetic parameters (PyTorch shapes: conv weight OIHW, bias (C,))
    w1 = jax.random.normal(k1, (C, C, 3, 3), dtype=jnp.float32) * 0.05
    b1 = jax.random.normal(k2, (C,), dtype=jnp.float32) * 0.05
    w2 = jax.random.normal(k3, (C, C, 3, 3), dtype=jnp.float32) * 0.05
    b2 = jax.random.normal(k4, (C,), dtype=jnp.float32) * 0.05
    gamma = jnp.ones((C,), jnp.float32)   # BatchNorm2d weight init
    beta = jnp.zeros((C,), jnp.float32)   # BatchNorm2d bias init

    out = conv_block_forward(x, w1, b1, w2, b2, gamma, beta)
    out = jax.block_until_ready(out)

    ref = _ref_forward(x, w1, b1, w2, b2, gamma, beta)
    assert out.shape == (N, C, H, W)
    err = float(jnp.max(jnp.abs(out - ref)))
    # Tolerance loosened vs. the all-f32 reference because the conv matmuls use bf16 operands.
    assert jnp.allclose(out, ref, atol=5e-2, rtol=5e-2), err

    print("KERNEL_OK")
</pallas_src>

<mosaic_0001>
module attributes {stable_mosaic.version = 11 : i64} {
  func.func @_conv_block_kernel(%arg0: memref<2x8x8x64xf32, #tpu.memory_space<vmem>>, %arg1: memref<576x64xbf16, #tpu.memory_space<vmem>>, %arg2: memref<1x64xf32, #tpu.memory_space<vmem>>, %arg3: memref<576x64xbf16, #tpu.memory_space<vmem>>, %arg4: memref<1x64xf32, #tpu.memory_space<vmem>>, %arg5: memref<1x64xf32, #tpu.memory_space<vmem>>, %arg6: memref<1x64xf32, #tpu.memory_space<vmem>>, %arg7: memref<2x8x8x64xf32, #tpu.memory_space<vmem>>, %arg8: memref<2x10x10x64xbf16, #tpu.memory_space<vmem>>, %arg9: memref<128x576xbf16, #tpu.memory_space<vmem>>) attributes {dimension_semantics = [], scalar_prefetch = 0 : i64, scratch_operands = 2 : i64, tpu.core_type = #tpu.core_type<tc>} {
    %cst = arith.constant 0.000000e+00 : bf16
    %0 = vector.broadcast %cst : bf16 to vector<2x1x10x64xbf16>
    %c0 = arith.constant 0 : index
    %c0_0 = arith.constant 0 : index
    %c0_1 = arith.constant 0 : index
    %c0_2 = arith.constant 0 : index
    %1 = vector.load %arg8[%c0, %c0_0, %c0_1, %c0_2] : memref<2x10x10x64xbf16, #tpu.memory_space<vmem>>, vector<2x1x10x64xbf16>
    tpu.vector_store %arg8[%c0, %c0_0, %c0_1, %c0_2], %0 {strides = array<i32>} : memref<2x10x10x64xbf16, #tpu.memory_space<vmem>>, vector<2x1x10x64xbf16>,
    %cst_3 = arith.constant 0.000000e+00 : bf16
    %2 = vector.broadcast %cst_3 : bf16 to vector<2x1x10x64xbf16>
    %c0_4 = arith.constant 0 : index
    %c9 = arith.constant 9 : index
    %c0_5 = arith.constant 0 : index
    %c0_6 = arith.constant 0 : index
    %3 = vector.load %arg8[%c0_4, %c9, %c0_5, %c0_6] : memref<2x10x10x64xbf16, #tpu.memory_space<vmem>>, vector<2x1x10x64xbf16>
    tpu.vector_store %arg8[%c0_4, %c9, %c0_5, %c0_6], %2 {strides = array<i32>} : memref<2x10x10x64xbf16, #tpu.memory_space<vmem>>, vector<2x1x10x64xbf16>,
    %cst_7 = arith.constant 0.000000e+00 : bf16
    %4 = vector.broadcast %cst_7 : bf16 to vector<2x10x1x64xbf16>
    %c0_8 = arith.constant 0 : index
    %c0_9 = arith.constant 0 : index
    %c0_10 = arith.constant 0 : index
    %c0_11 = arith.constant 0 : index
    %5 = vector.load %arg8[%c0_8, %c0_9, %c0_10, %c0_11] : memref<2x10x10x64xbf16, #tpu.memory_space<vmem>>, vector<2x10x1x64xbf16>
    tpu.vector_store %arg8[%c0_8, %c0_9, %c0_10, %c0_11], %4 {strides = array<i32>} : memref<2x10x10x64xbf16, #tpu.memory_space<vmem>>, vector<2x10x1x64xbf16>,
    %cst_12 = arith.constant 0.000000e+00 : bf16
    %6 = vector.broadcast %cst_12 : bf16 to vector<2x10x1x64xbf16>
    %c0_13 = arith.constant 0 : index
    %c0_14 = arith.constant 0 : index
    %c9_15 = arith.constant 9 : index
    %c0_16 = arith.constant 0 : index
    %7 = vector.load %arg8[%c0_13, %c0_14, %c9_15, %c0_16] : memref<2x10x10x64xbf16, #tpu.memory_space<vmem>>, vector<2x10x1x64xbf16>
    tpu.vector_store %arg8[%c0_13, %c0_14, %c9_15, %c0_16], %6 {strides = array<i32>} : memref<2x10x10x64xbf16, #tpu.memory_space<vmem>>, vector<2x10x1x64xbf16>,
    %c0_17 = arith.constant 0 : index
    %c0_18 = arith.constant 0 : index
    %c0_19 = arith.constant 0 : index
    %c0_20 = arith.constant 0 : index
    %8 = vector.load %arg0[%c0_17, %c0_18, %c0_19, %c0_20] : memref<2x8x8x64xf32, #tpu.memory_space<vmem>>, vector<2x8x8x64xf32>
    %9 = arith.truncf %8 : vector<2x8x8x64xf32> to vector<2x8x8x64xbf16>
    %c0_21 = arith.constant 0 : index
    %c1 = arith.constant 1 : index
    %c1_22 = arith.constant 1 : index
    %c0_23 = arith.constant 0 : index
    %10 = vector.load %arg8[%c0_21, %c1, %c1_22, %c0_23] : memref<2x10x10x64xbf16, #tpu.memory_space<vmem>>, vector<2x8x8x64xbf16>
    tpu.vector_store %arg8[%c0_21, %c1, %c1_22, %c0_23], %9 {strides = array<i32>} : memref<2x10x10x64xbf16, #tpu.memory_space<vmem>>, vector<2x8x8x64xbf16>,
    %c0_24 = arith.constant 0 : index
    %c0_25 = arith.constant 0 : index
    %c0_26 = arith.constant 0 : index
    %c0_27 = arith.constant 0 : index
    %11 = vector.load %arg8[%c0_24, %c0_25, %c0_26, %c0_27] : memref<2x10x10x64xbf16, #tpu.memory_space<vmem>>, vector<2x8x8x64xbf16>
    %12 = vector.shape_cast %11 : vector<2x8x8x64xbf16> to vector<128x64xbf16>
    %c0_28 = arith.constant 0 : index
    %c0_29 = arith.constant 0 : index
    %c1_30 = arith.constant 1 : index
    %c0_31 = arith.constant 0 : index
    %13 = vector.load %arg8[%c0_28, %c0_29, %c1_30, %c0_31] : memref<2x10x10x64xbf16, #tpu.memory_space<vmem>>, vector<2x8x8x64xbf16>
    %14 = vector.shape_cast %13 : vector<2x8x8x64xbf16> to vector<128x64xbf16>
    %15 = tpu.concatenate %12, %14 in 1 : vector<128x64xbf16>, vector<128x64xbf16> -> vector<128x128xbf16>
    %c0_32 = arith.constant 0 : index
    %c0_33 = arith.constant 0 : index
    %16 = vector.load %arg9[%c0_32, %c0_33] : memref<128x576xbf16, #tpu.memory_space<vmem>>, vector<128x128xbf16>
    tpu.vector_store %arg9[%c0_32, %c0_33], %15 {strides = array<i32>} : memref<128x576xbf16, #tpu.memory_space<vmem>>, vector<128x128xbf16>,
    %c0_34 = arith.constant 0 : index
    %c0_35 = arith.constant 0 : index
    %c2 = arith.constant 2 : index
    %c0_36 = arith.constant 0 : index
    %17 = vector.load %arg8[%c0_34, %c0_35, %c2, %c0_36] : memref<2x10x10x64xbf16, #tpu.memory_space<vmem>>, vector<2x8x8x64xbf16>
    %18 = vector.shape_cast %17 : vector<2x8x8x64xbf16> to vector<128x64xbf16>
    %c0_37 = arith.constant 0 : index
    %c1_38 = arith.constant 1 : index
    %c0_39 = arith.constant 0 : index
    %c0_40 = arith.constant 0 : index
    %19 = vector.load %arg8[%c0_37, %c1_38, %c0_39, %c0_40] : memref<2x10x10x64xbf16, #tpu.memory_space<vmem>>, vector<2x8x8x64xbf16>
    %20 = vector.shape_cast %19 : vector<2x8x8x64xbf16> to vector<128x64xbf16>
    %21 = tpu.concatenate %18, %20 in 1 : vector<128x64xbf16>, vector<128x64xbf16> -> vector<128x128xbf16>
    %c0_41 = arith.constant 0 : index
    %c128 = arith.constant 128 : index
    %22 = vector.load %arg9[%c0_41, %c128] : memref<128x576xbf16, #tpu.memory_space<vmem>>, vector<128x128xbf16>
    tpu.vector_store %arg9[%c0_41, %c128], %21 {strides = array<i32>} : memref<128x576xbf16, #tpu.memory_space<vmem>>, vector<128x128xbf16>,
    %c0_42 = arith.constant 0 : index
    %c1_43 = arith.constant 1 : index
    %c1_44 = arith.constant 1 : index
    %c0_45 = arith.constant 0 : index
    %23 = vector.load %arg8[%c0_42, %c1_43, %c1_44, %c0_45] : memref<2x10x10x64xbf16, #tpu.memory_space<vmem>>, vector<2x8x8x64xbf16>
    %24 = vector.shape_cast %23 : vector<2x8x8x64xbf16> to vector<128x64xbf16>
    %c0_46 = arith.constant 0 : index
    %c1_47 = arith.constant 1 : index
    %c2_48 = arith.constant 2 : index
    %c0_49 = arith.constant 0 : index
    %25 = vector.load %arg8[%c0_46, %c1_47, %c2_48, %c0_49] : memref<2x10x10x64xbf16, #tpu.memory_space<vmem>>, vector<2x8x8x64xbf16>
    %26 = vector.shape_cast %25 : vector<2x8x8x64xbf16> to vector<128x64xbf16>
    %27 = tpu.concatenate %24, %26 in 1 : vector<128x64xbf16>, vector<128x64xbf16> -> vector<128x128xbf16>
    %c0_50 = arith.constant 0 : index
    %c256 = arith.constant 256 : index
    %28 = vector.load %arg9[%c0_50, %c256] : memref<128x576xbf16, #tpu.memory_space<vmem>>, vector<128x128xbf16>
    tpu.vector_store %arg9[%c0_50, %c256], %27 {strides = array<i32>} : memref<128x576xbf16, #tpu.memory_space<vmem>>, vector<128x128xbf16>,
    %c0_51 = arith.constant 0 : index
    %c2_52 = arith.constant 2 : index
    %c0_53 = arith.constant 0 : index
    %c0_54 = arith.constant 0 : index
    %29 = vector.load %arg8[%c0_51, %c2_52, %c0_53, %c0_54] : memref<2x10x10x64xbf16, #tpu.memory_space<vmem>>, vector<2x8x8x64xbf16>
    %30 = vector.shape_cast %29 : vector<2x8x8x64xbf16> to vector<128x64xbf16>
    %c0_55 = arith.constant 0 : index
    %c2_56 = arith.constant 2 : index
    %c1_57 = arith.constant 1 : index
    %c0_58 = arith.constant 0 : index
    %31 = vector.load %arg8[%c0_55, %c2_56, %c1_57, %c0_58] : memref<2x10x10x64xbf16, #tpu.memory_space<vmem>>, vector<2x8x8x64xbf16>
    %32 = vector.shape_cast %31 : vector<2x8x8x64xbf16> to vector<128x64xbf16>
    %33 = tpu.concatenate %30, %32 in 1 : vector<128x64xbf16>, vector<128x64xbf16> -> vector<128x128xbf16>
    %c0_59 = arith.constant 0 : index
    %c384 = arith.constant 384 : index
    %34 = vector.load %arg9[%c0_59, %c384] : memref<128x576xbf16, #tpu.memory_space<vmem>>, vector<128x128xbf16>
    tpu.vector_store %arg9[%c0_59, %c384], %33 {strides = array<i32>} : memref<128x576xbf16, #tpu.memory_space<vmem>>, vector<128x128xbf16>,
    %c0_60 = arith.constant 0 : index
    %c2_61 = arith.constant 2 : index
    %c2_62 = arith.constant 2 : index
    %c0_63 = arith.constant 0 : index
    %35 = vector.load %arg8[%c0_60, %c2_61, %c2_62, %c0_63] : memref<2x10x10x64xbf16, #tpu.memory_space<vmem>>, vector<2x8x8x64xbf16>
    %36 = vector.shape_cast %35 : vector<2x8x8x64xbf16> to vector<128x64xbf16>
    %c0_64 = arith.constant 0 : index
    %c512 = arith.constant 512 : index
    %37 = vector.load %arg9[%c0_64, %c512] : memref<128x576xbf16, #tpu.memory_space<vmem>>, vector<128x64xbf16>
    tpu.vector_store %arg9[%c0_64, %c512], %36 {strides = array<i32>} : memref<128x576xbf16, #tpu.memory_space<vmem>>, vector<128x64xbf16>,
    %c0_65 = arith.constant 0 : index
    %c0_66 = arith.constant 0 : index
    %38 = vector.load %arg9[%c0_65, %c0_66] : memref<128x576xbf16, #tpu.memory_space<vmem>>, vector<128x576xbf16>
    %c0_67 = arith.constant 0 : index
    %c0_68 = arith.constant 0 : index
    %39 = vector.load %arg1[%c0_67, %c0_68] : memref<576x64xbf16, #tpu.memory_space<vmem>>, vector<576x64xbf16>
    %cst_69 = arith.constant dense<0.000000e+00> : vector<128x64xf32>
    %40 = tpu.matmul %38, %39, %cst_69 {dimension_numbers = #tpu.dot_dimension_numbers<[1], [0], [0], [1], [0, 0, 1, 1], [], []>} : vector<128x576xbf16>, vector<576x64xbf16>, vector<128x64xf32> -> vector<128x64xf32>
    %c0_70 = arith.constant 0 : index
    %c0_71 = arith.constant 0 : index
    %41 = vector.load %arg2[%c0_70, %c0_71] : memref<1x64xf32, #tpu.memory_space<vmem>>, vector<1x64xf32>
    %42 = vector.broadcast %41 : vector<1x64xf32> to vector<128x64xf32>
    %43 = arith.addf %40, %42 : vector<128x64xf32>
    %cst_72 = arith.constant 0.000000e+00 : f32
    %44 = vector.broadcast %cst_72 : f32 to vector<128x64xf32>
    %45 = arith.cmpf oge, %43, %44 : vector<128x64xf32>
    %cst_73 = arith.constant 0.00999999977 : f32
    %46 = vector.broadcast %cst_73 : f32 to vector<128x64xf32>
    %47 = arith.mulf %46, %43 : vector<128x64xf32>
    %48 = arith.select %45, %43, %47 : vector<128x64xi1>, vector<128x64xf32>
    %cst_74 = arith.constant dense<0.000000e+00> : vector<64xf32>
    %49 = vector.multi_reduction <add>, %48, %cst_74 [0] : vector<128x64xf32> to vector<64xf32>
    %50 = vector.shape_cast %49 : vector<64xf32> to vector<1x64xf32>
    %51 = arith.mulf %48, %48 : vector<128x64xf32>
    %cst_75 = arith.constant dense<0.000000e+00> : vector<64xf32>
    %52 = vector.multi_reduction <add>, %51, %cst_75 [0] : vector<128x64xf32> to vector<64xf32>
    %53 = vector.shape_cast %52 : vector<64xf32> to vector<1x64xf32>
    %cst_76 = arith.constant 7.812500e-03 : f32
    %54 = vector.broadcast %cst_76 : f32 to vector<1x64xf32>
    %55 = arith.mulf %50, %54 : vector<1x64xf32>
    %cst_77 = arith.constant 7.812500e-03 : f32
    %56 = vector.broadcast %cst_77 : f32 to vector<1x64xf32>
    %57 = arith.mulf %53, %56 : vector<1x64xf32>
    %58 = arith.mulf %55, %55 : vector<1x64xf32>
    %59 = arith.subf %57, %58 : vector<1x64xf32>
    %cst_78 = arith.constant 0.000000e+00 : f32
    %60 = vector.broadcast %cst_78 : f32 to vector<1x64xf32>
    %61 = arith.maximumf %59, %60 : vector<1x64xf32>
    %c0_79 = arith.constant 0 : index
    %c0_80 = arith.constant 0 : index
    %62 = vector.load %arg5[%c0_79, %c0_80] : memref<1x64xf32, #tpu.memory_space<vmem>>, vector<1x64xf32>
    %cst_81 = arith.constant 9.99999974E-6 : f32
    %63 = vector.broadcast %cst_81 : f32 to vector<1x64xf32>
    %64 = arith.addf %61, %63 : vector<1x64xf32>
    %65 = math.rsqrt %64 : vector<1x64xf32>
    %66 = arith.mulf %62, %65 : vector<1x64xf32>
    %c0_82 = arith.constant 0 : index
    %c0_83 = arith.constant 0 : index
    %67 = vector.load %arg6[%c0_82, %c0_83] : memref<1x64xf32, #tpu.memory_space<vmem>>, vector<1x64xf32>
    %68 = arith.mulf %55, %66 : vector<1x64xf32>
    %69 = arith.subf %67, %68 : vector<1x64xf32>
    %70 = vector.broadcast %66 : vector<1x64xf32> to vector<128x64xf32>
    %71 = arith.mulf %48, %70 : vector<128x64xf32>
    %72 = vector.broadcast %69 : vector<1x64xf32> to vector<128x64xf32>
    %73 = arith.addf %71, %72 : vector<128x64xf32>
    %74 = vector.shape_cast %73 : vector<128x64xf32> to vector<2x8x8x64xf32>
    %75 = arith.truncf %74 : vector<2x8x8x64xf32> to vector<2x8x8x64xbf16>
    %c0_84 = arith.constant 0 : index
    %c1_85 = arith.constant 1 : index
    %c1_86 = arith.constant 1 : index
    %c0_87 = arith.constant 0 : index
    %76 = vector.load %arg8[%c0_84, %c1_85, %c1_86, %c0_87] : memref<2x10x10x64xbf16, #tpu.memory_space<vmem>>, vector<2x8x8x64xbf16>
    tpu.vector_store %arg8[%c0_84, %c1_85, %c1_86, %c0_87], %75 {strides = array<i32>} : memref<2x10x10x64xbf16, #tpu.memory_space<vmem>>, vector<2x8x8x64xbf16>,
    %c0_88 = arith.constant 0 : index
    %c0_89 = arith.constant 0 : index
    %c0_90 = arith.constant 0 : index
    %c0_91 = arith.constant 0 : index
    %77 = vector.load %arg8[%c0_88, %c0_89, %c0_90, %c0_91] : memref<2x10x10x64xbf16, #tpu.memory_space<vmem>>, vector<2x8x8x64xbf16>
    %78 = vector.shape_cast %77 : vector<2x8x8x64xbf16> to vector<128x64xbf16>
    %c0_92 = arith.constant 0 : index
    %c0_93 = arith.constant 0 : index
    %c1_94 = arith.constant 1 : index
    %c0_95 = arith.constant 0 : index
    %79 = vector.load %arg8[%c0_92, %c0_93, %c1_94, %c0_95] : memref<2x10x10x64xbf16, #tpu.memory_space<vmem>>, vector<2x8x8x64xbf16>
    %80 = vector.shape_cast %79 : vector<2x8x8x64xbf16> to vector<128x64xbf16>
    %81 = tpu.concatenate %78, %80 in 1 : vector<128x64xbf16>, vector<128x64xbf16> -> vector<128x128xbf16>
    %c0_96 = arith.constant 0 : index
    %c0_97 = arith.constant 0 : index
    %82 = vector.load %arg9[%c0_96, %c0_97] : memref<128x576xbf16, #tpu.memory_space<vmem>>, vector<128x128xbf16>
    tpu.vector_store %arg9[%c0_96, %c0_97], %81 {strides = array<i32>} : memref<128x576xbf16, #tpu.memory_space<vmem>>, vector<128x128xbf16>,
    %c0_98 = arith.constant 0 : index
    %c0_99 = arith.constant 0 : index
    %c2_100 = arith.constant 2 : index
    %c0_101 = arith.constant 0 : index
    %83 = vector.load %arg8[%c0_98, %c0_99, %c2_100, %c0_101] : memref<2x10x10x64xbf16, #tpu.memory_space<vmem>>, vector<2x8x8x64xbf16>
    %84 = vector.shape_cast %83 : vector<2x8x8x64xbf16> to vector<128x64xbf16>
    %c0_102 = arith.constant 0 : index
    %c1_103 = arith.constant 1 : index
    %c0_104 = arith.constant 0 : index
    %c0_105 = arith.constant 0 : index
    %85 = vector.load %arg8[%c0_102, %c1_103, %c0_104, %c0_105] : memref<2x10x10x64xbf16, #tpu.memory_space<vmem>>, vector<2x8x8x64xbf16>
    %86 = vector.shape_cast %85 : vector<2x8x8x64xbf16> to vector<128x64xbf16>
    %87 = tpu.concatenate %84, %86 in 1 : vector<128x64xbf16>, vector<128x64xbf16> -> vector<128x128xbf16>
    %c0_106 = arith.constant 0 : index
    %c128_107 = arith.constant 128 : index
    %88 = vector.load %arg9[%c0_106, %c128_107] : memref<128x576xbf16, #tpu.memory_space<vmem>>, vector<128x128xbf16>
    tpu.vector_store %arg9[%c0_106, %c128_107], %87 {strides = array<i32>} : memref<128x576xbf16, #tpu.memory_space<vmem>>, vector<128x128xbf16>,
    %c0_108 = arith.constant 0 : index
    %c1_109 = arith.constant 1 : index
    %c1_110 = arith.constant 1 : index
    %c0_111 = arith.constant 0 : index
    %89 = vector.load %arg8[%c0_108, %c1_109, %c1_110, %c0_111] : memref<2x10x10x64xbf16, #tpu.memory_space<vmem>>, vector<2x8x8x64xbf16>
    %90 = vector.shape_cast %89 : vector<2x8x8x64xbf16> to vector<128x64xbf16>
    %c0_112 = arith.constant 0 : index
    %c1_113 = arith.constant 1 : index
    %c2_114 = arith.constant 2 : index
    %c0_115 = arith.constant 0 : index
    %91 = vector.load %arg8[%c0_112, %c1_113, %c2_114, %c0_115] : memref<2x10x10x64xbf16, #tpu.memory_space<vmem>>, vector<2x8x8x64xbf16>
    %92 = vector.shape_cast %91 : vector<2x8x8x64xbf16> to vector<128x64xbf16>
    %93 = tpu.concatenate %90, %92 in 1 : vector<128x64xbf16>, vector<128x64xbf16> -> vector<128x128xbf16>
    %c0_116 = arith.constant 0 : index
    %c256_117 = arith.constant 256 : index
    %94 = vector.load %arg9[%c0_116, %c256_117] : memref<128x576xbf16, #tpu.memory_space<vmem>>, vector<128x128xbf16>
    tpu.vector_store %arg9[%c0_116, %c256_117], %93 {strides = array<i32>} : memref<128x576xbf16, #tpu.memory_space<vmem>>, vector<128x128xbf16>,
    %c0_118 = arith.constant 0 : index
    %c2_119 = arith.constant 2 : index
    %c0_120 = arith.constant 0 : index
    %c0_121 = arith.constant 0 : index
    %95 = vector.load %arg8[%c0_118, %c2_119, %c0_120, %c0_121] : memref<2x10x10x64xbf16, #tpu.memory_space<vmem>>, vector<2x8x8x64xbf16>
    %96 = vector.shape_cast %95 : vector<2x8x8x64xbf16> to vector<128x64xbf16>
    %c0_122 = arith.constant 0 : index
    %c2_123 = arith.constant 2 : index
    %c1_124 = arith.constant 1 : index
    %c0_125 = arith.constant 0 : index
    %97 = vector.load %arg8[%c0_122, %c2_123, %c1_124, %c0_125] : memref<2x10x10x64xbf16, #tpu.memory_space<vmem>>, vector<2x8x8x64xbf16>
    %98 = vector.shape_cast %97 : vector<2x8x8x64xbf16> to vector<128x64xbf16>
    %99 = tpu.concatenate %96, %98 in 1 : vector<128x64xbf16>, vector<128x64xbf16> -> vector<128x128xbf16>
    %c0_126 = arith.constant 0 : index
    %c384_127 = arith.constant 384 : index
    %100 = vector.load %arg9[%c0_126, %c384_127] : memref<128x576xbf16, #tpu.memory_space<vmem>>, vector<128x128xbf16>
    tpu.vector_store %arg9[%c0_126, %c384_127], %99 {strides = array<i32>} : memref<128x576xbf16, #tpu.memory_space<vmem>>, vector<128x128xbf16>,
    %c0_128 = arith.constant 0 : index
    %c2_129 = arith.constant 2 : index
    %c2_130 = arith.constant 2 : index
    %c0_131 = arith.constant 0 : index
    %101 = vector.load %arg8[%c0_128, %c2_129, %c2_130, %c0_131] : memref<2x10x10x64xbf16, #tpu.memory_space<vmem>>, vector<2x8x8x64xbf16>
    %102 = vector.shape_cast %101 : vector<2x8x8x64xbf16> to vector<128x64xbf16>
    %c0_132 = arith.constant 0 : index
    %c512_133 = arith.constant 512 : index
    %103 = vector.load %arg9[%c0_132, %c512_133] : memref<128x576xbf16, #tpu.memory_space<vmem>>, vector<128x64xbf16>
    tpu.vector_store %arg9[%c0_132, %c512_133], %102 {strides = array<i32>} : memref<128x576xbf16, #tpu.memory_space<vmem>>, vector<128x64xbf16>,
    %c0_134 = arith.constant 0 : index
    %c0_135 = arith.constant 0 : index
    %104 = vector.load %arg9[%c0_134, %c0_135] : memref<128x576xbf16, #tpu.memory_space<vmem>>, vector<128x576xbf16>
    %c0_136 = arith.constant 0 : index
    %c0_137 = arith.constant 0 : index
    %105 = vector.load %arg3[%c0_136, %c0_137] : memref<576x64xbf16, #tpu.memory_space<vmem>>, vector<576x64xbf16>
    %cst_138 = arith.constant dense<0.000000e+00> : vector<128x64xf32>
    %106 = tpu.matmul %104, %105, %cst_138 {dimension_numbers = #tpu.dot_dimension_numbers<[1], [0], [0], [1], [0, 0, 1, 1], [], []>} : vector<128x576xbf16>, vector<576x64xbf16>, vector<128x64xf32> -> vector<128x64xf32>
    %c0_139 = arith.constant 0 : index
    %c0_140 = arith.constant 0 : index
    %107 = vector.load %arg4[%c0_139, %c0_140] : memref<1x64xf32, #tpu.memory_space<vmem>>, vector<1x64xf32>
    %108 = vector.broadcast %107 : vector<1x64xf32> to vector<128x64xf32>
    %109 = arith.addf %106, %108 : vector<128x64xf32>
    %cst_141 = arith.constant 0.000000e+00 : f32
    %110 = vector.broadcast %cst_141 : f32 to vector<128x64xf32>
    %111 = arith.cmpf oge, %109, %110 : vector<128x64xf32>
    %cst_142 = arith.constant 0.00999999977 : f32
    %112 = vector.broadcast %cst_142 : f32 to vector<128x64xf32>
    %113 = arith.mulf %112, %109 : vector<128x64xf32>
    %114 = arith.select %111, %109, %113 : vector<128x64xi1>, vector<128x64xf32>
    %c0_143 = arith.constant 0 : index
    %c0_144 = arith.constant 0 : index
    %c0_145 = arith.constant 0 : index
    %c0_146 = arith.constant 0 : index
    %115 = vector.load %arg0[%c0_143, %c0_144, %c0_145, %c0_146] : memref<2x8x8x64xf32, #tpu.memory_space<vmem>>, vector<2x8x8x64xf32>
    %116 = vector.shape_cast %115 : vector<2x8x8x64xf32> to vector<128x64xf32>
    %117 = arith.addf %114, %116 : vector<128x64xf32>
    %cst_147 = arith.constant dense<0.000000e+00> : vector<64xf32>
    %118 = vector.multi_reduction <add>, %117, %cst_147 [0] : vector<128x64xf32> to vector<64xf32>
    %119 = vector.shape_cast %118 : vector<64xf32> to vector<1x64xf32>
    %120 = arith.mulf %117, %117 : vector<128x64xf32>
    %cst_148 = arith.constant dense<0.000000e+00> : vector<64xf32>
    %121 = vector.multi_reduction <add>, %120, %cst_148 [0] : vector<128x64xf32> to vector<64xf32>
    %122 = vector.shape_cast %121 : vector<64xf32> to vector<1x64xf32>
    %cst_149 = arith.constant 7.812500e-03 : f32
    %123 = vector.broadcast %cst_149 : f32 to vector<1x64xf32>
    %124 = arith.mulf %119, %123 : vector<1x64xf32>
    %cst_150 = arith.constant 7.812500e-03 : f32
    %125 = vector.broadcast %cst_150 : f32 to vector<1x64xf32>
    %126 = arith.mulf %122, %125 : vector<1x64xf32>
    %127 = arith.mulf %124, %124 : vector<1x64xf32>
    %128 = arith.subf %126, %127 : vector<1x64xf32>
    %cst_151 = arith.constant 0.000000e+00 : f32
    %129 = vector.broadcast %cst_151 : f32 to vector<1x64xf32>
    %130 = arith.maximumf %128, %129 : vector<1x64xf32>
    %c0_152 = arith.constant 0 : index
    %c0_153 = arith.constant 0 : index
    %131 = vector.load %arg5[%c0_152, %c0_153] : memref<1x64xf32, #tpu.memory_space<vmem>>, vector<1x64xf32>
    %cst_154 = arith.constant 9.99999974E-6 : f32
    %132 = vector.broadcast %cst_154 : f32 to vector<1x64xf32>
    %133 = arith.addf %130, %132 : vector<1x64xf32>
    %134 = math.rsqrt %133 : vector<1x64xf32>
    %135 = arith.mulf %131, %134 : vector<1x64xf32>
    %c0_155 = arith.constant 0 : index
    %c0_156 = arith.constant 0 : index
    %136 = vector.load %arg6[%c0_155, %c0_156] : memref<1x64xf32, #tpu.memory_space<vmem>>, vector<1x64xf32>
    %137 = arith.mulf %124, %135 : vector<1x64xf32>
    %138 = arith.subf %136, %137 : vector<1x64xf32>
    %139 = vector.broadcast %135 : vector<1x64xf32> to vector<128x64xf32>
    %140 = arith.mulf %117, %139 : vector<128x64xf32>
    %141 = vector.broadcast %138 : vector<1x64xf32> to vector<128x64xf32>
    %142 = arith.addf %140, %141 : vector<128x64xf32>
    %143 = vector.shape_cast %142 : vector<128x64xf32> to vector<2x8x8x64xf32>
    %c0_157 = arith.constant 0 : index
    %c0_158 = arith.constant 0 : index
    %c0_159 = arith.constant 0 : index
    %c0_160 = arith.constant 0 : index
    %144 = vector.load %arg7[%c0_157, %c0_158, %c0_159, %c0_160] : memref<2x8x8x64xf32, #tpu.memory_space<vmem>>, vector<2x8x8x64xf32>
    tpu.vector_store %arg7[%c0_157, %c0_158, %c0_159, %c0_160], %143 {strides = array<i32>} : memref<2x8x8x64xf32, #tpu.memory_space<vmem>>, vector<2x8x8x64xf32>,
    return
  }
}

</mosaic_0001>

<llo_original>
// kernel: conv_block_forward.1
$region0: #{conv_block_forward.1}
  #allocation0 [shape = 'u32[]', space=smem, size = 0x4, offset = 0x4, fixed_abs, tag = 'smem constant byte address 0x4 - core index']
  #allocation1 [shape = 'u32[144,128]{1,0:T(1,128)}', space=vmem, size = 0x12000, scoped, tag = 'internal scratch']
  #allocation2 [shape = 'bf16[2,10,10,64]{3,2,1,0:T(8,128)(2,1)}', space=vmem, size = 0x14000, scoped, tag = 'scratch operand']
  #allocation3 [shape = 'bf16[128,576]{1,0:T(16,128)(2,1)}', space=vmem, size = 0x28000, scoped, tag = 'scratch operand']
  %s0 = inlined_call_operand.vmem [shape: f32[2,8,8,64], index: 0, kind: input, shape index: {}]
  %s1 = inlined_call_operand.vmem [shape: bf16[576,64], index: 1, kind: input, shape index: {}]
  %s2 = inlined_call_operand.vmem [shape: f32[1,64], index: 2, kind: input, shape index: {}]
  %s3 = inlined_call_operand.vmem [shape: bf16[576,64], index: 3, kind: input, shape index: {}]
  %s4 = inlined_call_operand.vmem [shape: f32[1,64], index: 4, kind: input, shape index: {}]
  %s5 = inlined_call_operand.vmem [shape: f32[1,64], index: 5, kind: input, shape index: {}]
  %s6 = inlined_call_operand.vmem [shape: f32[1,64], index: 6, kind: input, shape index: {}]
  %s7 = inlined_call_operand.hbm [shape: f32[2,8,8,64], index: 7, kind: output, shape index: {}]
  %s8 = sld [smem:[#allocation0]]
  $region38: #{conv_block_forward.1} parent=0
    _
  %s10 = ssub.s32 1, %s8
  %s11 = scalar_select 0, %s10, %s8
  $region1: #{conv_block_forward.1} parent=0
    #allocation4 [shape = 'u8[65536]{0}', space=vmem, size = 0x10000, scoped, tag = 'output window, operand 0, single buffered']
    #allocation5 [shape = 's32[1]{0}', space=sflag, size = 0x4, scoped, tag = 'scoped memory for conv_block_forward.1']
    %12 = vsyncpa [#allocation5], 0
    // Predicated region
    $region2: #{conv_block_forward.1} parent=1 // pred_check
      _
    $region3: #{conv_block_forward.1} parent=1 // pred_check_branch
      %14 = sbr.rel (0) target = $region5
    $region4: #{conv_block_forward.1} parent=1 // pred_region
      _
    $region5: #{conv_block_forward.1} parent=1 // pred_fallthru
      _
    // Predicated region
    $region6: #{conv_block_forward.1} parent=1 // pred_check
      _
    $region7: #{conv_block_forward.1} parent=1 // pred_check_branch
      %16 = sbr.rel (0) target = $region9
    $region8: #{conv_block_forward.1} parent=1 // pred_region
      _
    $region9: #{conv_block_forward.1} parent=1 // pred_fallthru
      _
    // Predicated region
    $region10: #{conv_block_forward.1} parent=1 // pred_check
      _
    $region11: #{conv_block_forward.1} parent=1 // pred_check_branch
      %18 = sbr.rel (0) target = $region13
    $region12: #{conv_block_forward.1} parent=1 // pred_region
      _
    $region13: #{conv_block_forward.1} parent=1 // pred_fallthru
      _
    // Predicated region
    $region14: #{conv_block_forward.1} parent=1 // pred_check
      _
    $region15: #{conv_block_forward.1} parent=1 // pred_check_branch
      %20 = sbr.rel (0) target = $region17
    $region16: #{conv_block_forward.1} parent=1 // pred_region
      _
    $region17: #{conv_block_forward.1} parent=1 // pred_fallthru
      _
    // Predicated region
    $region18: #{conv_block_forward.1} parent=1 // pred_check
      _
    $region19: #{conv_block_forward.1} parent=1 // pred_check_branch
      %22 = sbr.rel (0) target = $region21
    $region20: #{conv_block_forward.1} parent=1 // pred_region
      _
    $region21: #{conv_block_forward.1} parent=1 // pred_fallthru
      _
    // Predicated region
    $region22: #{conv_block_forward.1} parent=1 // pred_check
      _
    $region23: #{conv_block_forward.1} parent=1 // pred_check_branch
      %24 = sbr.rel (0) target = $region25
    $region24: #{conv_block_forward.1} parent=1 // pred_region
      _
    $region25: #{conv_block_forward.1} parent=1 // pred_fallthru
      _
    // Predicated region
    $region26: #{conv_block_forward.1} parent=1 // pred_check
      _
    $region27: #{conv_block_forward.1} parent=1 // pred_check_branch
      %26 = sbr.rel (0) target = $region29
    $region28: #{conv_block_forward.1} parent=1 // pred_region
      _
    $region29: #{conv_block_forward.1} parent=1 // pred_fallthru
      _
    %vm28 = vcmask 519168
    %29 = vst.msk [vmem:[#allocation2] sm:$0xf] %vm28, 0
    %vm30 = vcmask 516096
    %31 = vst.msk [vmem:[#allocation2 + $0x4] sm:$0x1] %vm30, 0
    %32 = vst.msk [vmem:[#allocation2 + $0x50] sm:$0xf] %vm28, 0
    %33 = vst.msk [vmem:[#allocation2 + $0x54] sm:$0x1] %vm30, 0
    %s34 = scalar_lea.vmem [#allocation2], 72
    %35 = vst.msk [vmem:[%s34] sm:$0xf] %vm28, 0
    %36 = vst.msk [vmem:[%s34 + $0x4] sm:$0x1] %vm30, 0
    %37 = vst.msk [vmem:[%s34 + $0x50] sm:$0xf] %vm28, 0
    %38 = vst.msk [vmem:[%s34 + $0x54] sm:$0x1] %vm30, 0
    %vm39 = vcmask 516096
    %vm40 = vsmask.f32 256
    %vm41 = vmand %vm39, %vm40
    %v42 = vld [vmem:[#allocation2] sm:$0x1]
    %v43 = vsel %vm41, 0, %v42
    %44 = vst [vmem:[#allocation2] sm:$0x1] %v43
    %v45 = vld [vmem:[#allocation2 + $0x8] sm:$0x1]
    %v46 = vsel %vm41, 0, %v45
    %47 = vst [vmem:[#allocation2 + $0x8] sm:$0x1] %v46
    %v48 = vld [vmem:[#allocation2 + $0x10] sm:$0x1]
    %v49 = vsel %vm41, 0, %v48
    %50 = vst [vmem:[#allocation2 + $0x10] sm:$0x1] %v49
    %v51 = vld [vmem:[#allocation2 + $0x18] sm:$0x1]
    %v52 = vsel %vm41, 0, %v51
    %53 = vst [vmem:[#allocation2 + $0x18] sm:$0x1] %v52
    %v54 = vld [vmem:[#allocation2 + $0x20] sm:$0x1]
    %v55 = vsel %vm41, 0, %v54
    %56 = vst [vmem:[#allocation2 + $0x20] sm:$0x1] %v55
    %v57 = vld [vmem:[#allocation2 + $0x28] sm:$0x1]
    %v58 = vsel %vm41, 0, %v57
    %59 = vst [vmem:[#allocation2 + $0x28] sm:$0x1] %v58
    %v60 = vld [vmem:[#allocation2 + $0x30] sm:$0x1]
    %v61 = vsel %vm41, 0, %v60
    %62 = vst [vmem:[#allocation2 + $0x30] sm:$0x1] %v61
    %v63 = vld [vmem:[#allocation2 + $0x38] sm:$0x1]
    %v64 = vsel %vm41, 0, %v63
    %65 = vst [vmem:[#allocation2 + $0x38] sm:$0x1] %v64
    %v66 = vld [vmem:[#allocation2 + $0x40] sm:$0x1]
    %v67 = vsel %vm41, 0, %v66
    %68 = vst [vmem:[#allocation2 + $0x40] sm:$0x1] %v67
    %v69 = vld [vmem:[#allocation2 + $0x48] sm:$0x1]
    %v70 = vsel %vm41, 0, %v69
    %71 = vst [vmem:[#allocation2 + $0x48] sm:$0x1] %v70
    %v72 = vld [vmem:[#allocation2 + $0x50] sm:$0x1]
    %v73 = vsel %vm41, 0, %v72
    %74 = vst [vmem:[#allocation2 + $0x50] sm:$0x1] %v73
    %v75 = vld [vmem:[#allocation2 + $0x58] sm:$0x1]
    %v76 = vsel %vm41, 0, %v75
    %77 = vst [vmem:[#allocation2 + $0x58] sm:$0x1] %v76
    %v78 = vld [vmem:[#allocation2 + $0x60] sm:$0x1]
    %v79 = vsel %vm41, 0, %v78
    %80 = vst [vmem:[#allocation2 + $0x60] sm:$0x1] %v79
    %v81 = vld [vmem:[#allocation2 + $0x68] sm:$0x1]
    %v82 = vsel %vm41, 0, %v81
    %83 = vst [vmem:[#allocation2 + $0x68] sm:$0x1] %v82
    %v84 = vld [vmem:[#allocation2 + $0x70] sm:$0x1]
    %v85 = vsel %vm41, 0, %v84
    %86 = vst [vmem:[#allocation2 + $0x70] sm:$0x1] %v85
    %v87 = vld [vmem:[#allocation2 + $0x78] sm:$0x1]
    %v88 = vsel %vm41, 0, %v87
    %89 = vst [vmem:[#allocation2 + $0x78] sm:$0x1] %v88
    %v90 = vld [vmem:[#allocation2 + $0x80] sm:$0x1]
    %v91 = vsel %vm41, 0, %v90
    %92 = vst [vmem:[#allocation2 + $0x80] sm:$0x1] %v91
    %v93 = vld [vmem:[#allocation2 + $0x88] sm:$0x1]
    %v94 = vsel %vm41, 0, %v93
    %95 = vst [vmem:[#allocation2 + $0x88] sm:$0x1] %v94
    %v96 = vld [vmem:[#allocation2 + $0x90] sm:$0x1]
    %v97 = vsel %vm41, 0, %v96
    %98 = vst [vmem:[#allocation2 + $0x90] sm:$0x1] %v97
    %v99 = vld [vmem:[#allocation2 + $0x98] sm:$0x1]
    %v100 = vsel %vm41, 0, %v99
    %101 = vst [vmem:[#allocation2 + $0x98] sm:$0x1] %v100
    %vm102 = vsmask.f32 7938
    %vm103 = vmand %vm39, %vm102
    %v104 = vld [vmem:[#allocation2 + $0x4] sm:$0x1]
    %v105 = vsel %vm103, 0, %v104
    %106 = vst [vmem:[#allocation2 + $0x4] sm:$0x1] %v105
    %v107 = vld [vmem:[#allocation2 + $0xc] sm:$0x1]
    %v108 = vsel %vm103, 0, %v107
    %109 = vst [vmem:[#allocation2 + $0xc] sm:$0x1] %v108
    %v110 = vld [vmem:[#allocation2 + $0x14] sm:$0x1]
    %v111 = vsel %vm103, 0, %v110
    %112 = vst [vmem:[#allocation2 + $0x14] sm:$0x1] %v111
    %v113 = vld [vmem:[#allocation2 + $0x1c] sm:$0x1]
    %v114 = vsel %vm103, 0, %v113
    %115 = vst [vmem:[#allocation2 + $0x1c] sm:$0x1] %v114
    %v116 = vld [vmem:[#allocation2 + $0x24] sm:$0x1]
    %v117 = vsel %vm103, 0, %v116
    %118 = vst [vmem:[#allocation2 + $0x24] sm:$0x1] %v117
    %v119 = vld [vmem:[#allocation2 + $0x2c] sm:$0x1]
    %v120 = vsel %vm103, 0, %v119
    %121 = vst [vmem:[#allocation2 + $0x2c] sm:$0x1] %v120
    %v122 = vld [vmem:[#allocation2 + $0x34] sm:$0x1]
    %v123 = vsel %vm103, 0, %v122
    %124 = vst [vmem:[#allocation2 + $0x34] sm:$0x1] %v123
    %v125 = vld [vmem:[#allocation2 + $0x3c] sm:$0x1]
    %v126 = vsel %vm103, 0, %v125
    %127 = vst [vmem:[#allocation2 + $0x3c] sm:$0x1] %v126
    %v128 = vld [vmem:[#allocation2 + $0x44] sm:$0x1]
    %v129 = vsel %vm103, 0, %v128
    %130 = vst [vmem:[#allocation2 + $0x44] sm:$0x1] %v129
    %v131 = vld [vmem:[#allocation2 + $0x4c] sm:$0x1]
    %v132 = vsel %vm103, 0, %v131
    %133 = vst [vmem:[#allocation2 + $0x4c] sm:$0x1] %v132
    %v134 = vld [vmem:[#allocation2 + $0x54] sm:$0x1]
    %v135 = vsel %vm103, 0, %v134
    %136 = vst [vmem:[#allocation2 + $0x54] sm:$0x1] %v135
    %v137 = vld [vmem:[#allocation2 + $0x5c] sm:$0x1]
    %v138 = vsel %vm103, 0, %v137
    %139 = vst [vmem:[#allocation2 + $0x5c] sm:$0x1] %v138
    %v140 = vld [vmem:[#allocation2 + $0x64] sm:$0x1]
    %v141 = vsel %vm103, 0, %v140
    %142 = vst [vmem:[#allocation2 + $0x64] sm:$0x1] %v141
    %v143 = vld [vmem:[#allocation2 + $0x6c] sm:$0x1]
    %v144 = vsel %vm103, 0, %v143
    %145 = vst [vmem:[#allocation2 + $0x6c] sm:$0x1] %v144
    %v146 = vld [vmem:[#allocation2 + $0x74] sm:$0x1]
    %v147 = vsel %vm103, 0, %v146
    %148 = vst [vmem:[#allocation2 + $0x74] sm:$0x1] %v147
    %v149 = vld [vmem:[#allocation2 + $0x7c] sm:$0x1]
    %v150 = vsel %vm103, 0, %v149
    %151 = vst [vmem:[#allocation2 + $0x7c] sm:$0x1] %v150
    %v152 = vld [vmem:[#allocation2 + $0x84] sm:$0x1]
    %v153 = vsel %vm103, 0, %v152
    %154 = vst [vmem:[#allocation2 + $0x84] sm:$0x1] %v153
    %v155 = vld [vmem:[#allocation2 + $0x8c] sm:$0x1]
    %v156 = vsel %vm103, 0, %v155
    %157 = vst [vmem:[#allocation2 + $0x8c] sm:$0x1] %v156
    %v158 = vld [vmem:[#allocation2 + $0x94] sm:$0x1]
    %v159 = vsel %vm103, 0, %v158
    %160 = vst [vmem:[#allocation2 + $0x94] sm:$0x1] %v159
    %v161 = vld [vmem:[#allocation2 + $0x9c] sm:$0x1]
    %v162 = vsel %vm103, 0, %v161
    %163 = vst [vmem:[#allocation2 + $0x9c] sm:$0x1] %v162
    %v164 = vld [vmem:[%s0] sm:$0xff]
    %v165 = vld [vmem:[%s0 + $0x8] sm:$0xff]
    %v166 = vld [vmem:[%s0 + $0x10] sm:$0xff]
    %v167 = vld [vmem:[%s0 + $0x18] sm:$0xff]
    %v168 = vld [vmem:[%s0 + $0x20] sm:$0xff]
    %v169 = vld [vmem:[%s0 + $0x28] sm:$0xff]
    %v170 = vld [vmem:[%s0 + $0x30] sm:$0xff]
    %v171 = vld [vmem:[%s0 + $0x38] sm:$0xff]
    %v172 = vld [vmem:[%s0 + $0x40] sm:$0xff]
    %v173 = vld [vmem:[%s0 + $0x48] sm:$0xff]
    %v174 = vld [vmem:[%s0 + $0x50] sm:$0xff]
    %v175 = vld [vmem:[%s0 + $0x58] sm:$0xff]
    %v176 = vld [vmem:[%s0 + $0x60] sm:$0xff]
    %v177 = vld [vmem:[%s0 + $0x68] sm:$0xff]
    %v178 = vld [vmem:[%s0 + $0x70] sm:$0xff]
    %v179 = vld [vmem:[%s0 + $0x78] sm:$0xff]
    %v180 = vpack.c.bf16 %v164, %v164
    %v181 = vpack.c.bf16 %v165, %v165
    %v182 = vpack.c.bf16 %v166, %v166
    %v183 = vpack.c.bf16 %v167, %v167
    %v184 = vpack.c.bf16 %v168, %v168
    %v185 = vpack.c.bf16 %v169, %v169
    %v186 = vpack.c.bf16 %v170, %v170
    %v187 = vpack.c.bf16 %v171, %v171
    %v188 = vpack.c.bf16 %v172, %v172
    %v189 = vpack.c.bf16 %v173, %v173
    %v190 = vpack.c.bf16 %v174, %v174
    %v191 = vpack.c.bf16 %v175, %v175
    %v192 = vpack.c.bf16 %v176, %v176
    %v193 = vpack.c.bf16 %v177, %v177
    %v194 = vpack.c.bf16 %v178, %v178
    %v195 = vpack.c.bf16 %v179, %v179
    %v212 = vunpack.c.l.b16 %v180
    %v213 = vunpack.c.l.b16 %v181
    %v214 = vunpack.c.l.b16 %v182
    %v215 = vunpack.c.l.b16 %v183
    %v216 = vunpack.c.l.b16 %v184
    %v217 = vunpack.c.l.b16 %v185
    %v218 = vunpack.c.l.b16 %v186
    %v219 = vunpack.c.l.b16 %v187
    %v220 = vunpack.c.l.b16 %v188
    %v221 = vunpack.c.l.b16 %v189
    %v222 = vunpack.c.l.b16 %v190
    %v223 = vunpack.c.l.b16 %v191
    %v224 = vunpack.c.l.b16 %v192
    %v225 = vunpack.c.l.b16 %v193
    %v226 = vunpack.c.l.b16 %v194
    %v227 = vunpack.c.l.b16 %v195
    %v228 = vpack.c.b16 %v212, %v212
    %v229 = vpack.c.b16 %v213, %v213
    %v230 = vpack.c.b16 %v214, %v214
    %v231 = vpack.c.b16 %v215, %v215
    %v232 = vpack.c.b16 %v216, %v216
    %v233 = vpack.c.b16 %v217, %v217
    %v234 = vpack.c.b16 %v218, %v218
    %v235 = vpack.c.b16 %v219, %v219
    %v236 = vpack.c.b16 %v220, %v220
    %v237 = vpack.c.b16 %v221, %v221
    %v238 = vpack.c.b16 %v222, %v222
    %v239 = vpack.c.b16 %v223, %v223
    %v240 = vpack.c.b16 %v224, %v224
    %v241 = vpack.c.b16 %v225, %v225
    %v242 = vpack.c.b16 %v226, %v226
    %v243 = vpack.c.b16 %v227, %v227
    %v245 = vshrl.u32 %v228, 16
    %v247 = vrot.slane %v245, 7
    %v248 = vshll.u32 %v228, 16
    %v250 = vor.u32 %v247, %v248
    %v251 = vrot.slane %v247, 4
    %v253 = vshrl.u32 %v229, 16
    %v255 = vrot.slane %v253, 7
    %v256 = vshll.u32 %v229, 16
    %v258 = vor.u32 %v255, %v256
    %v259 = vrot.slane %v255, 4
    %v261 = vshrl.u32 %v230, 16
    %v263 = vrot.slane %v261, 7
    %v264 = vshll.u32 %v230, 16
    %v266 = vor.u32 %v263, %v264
    %v267 = vrot.slane %v263, 4
    %v269 = vshrl.u32 %v231, 16
    %v271 = vrot.slane %v269, 7
    %v272 = vshll.u32 %v231, 16
    %v274 = vor.u32 %v271, %v272
    %v275 = vrot.slane %v271, 4
    %v277 = vshrl.u32 %v232, 16
    %v279 = vrot.slane %v277, 7
    %v280 = vshll.u32 %v232, 16
    %v282 = vor.u32 %v279, %v280
    %v283 = vrot.slane %v279, 4
    %v285 = vshrl.u32 %v233, 16
    %v287 = vrot.slane %v285, 7
    %v288 = vshll.u32 %v233, 16
    %v290 = vor.u32 %v287, %v288
    %v291 = vrot.slane %v287, 4
    %v293 = vshrl.u32 %v234, 16
    %v295 = vrot.slane %v293, 7
    %v296 = vshll.u32 %v234, 16
    %v298 = vor.u32 %v295, %v296
    %v299 = vrot.slane %v295, 4
    %v301 = vshrl.u32 %v235, 16
    %v303 = vrot.slane %v301, 7
    %v304 = vshll.u32 %v235, 16
    %v306 = vor.u32 %v303, %v304
    %v307 = vrot.slane %v303, 4
    %v309 = vshrl.u32 %v236, 16
    %v311 = vrot.slane %v309, 7
    %v312 = vshll.u32 %v236, 16
    %v314 = vor.u32 %v311, %v312
    %v315 = vrot.slane %v311, 4
    %v317 = vshrl.u32 %v237, 16
    %v319 = vrot.slane %v317, 7
    %v320 = vshll.u32 %v237, 16
    %v322 = vor.u32 %v319, %v320
    %v323 = vrot.slane %v319, 4
    %v325 = vshrl.u32 %v238, 16
    %v327 = vrot.slane %v325, 7
    %v328 = vshll.u32 %v238, 16
    %v330 = vor.u32 %v327, %v328
    %v331 = vrot.slane %v327, 4
    %v333 = vshrl.u32 %v239, 16
    %v335 = vrot.slane %v333, 7
    %v336 = vshll.u32 %v239, 16
    %v338 = vor.u32 %v335, %v336
    %v339 = vrot.slane %v335, 4
    %v341 = vshrl.u32 %v240, 16
    %v343 = vrot.slane %v341, 7
    %v344 = vshll.u32 %v240, 16
    %v346 = vor.u32 %v343, %v344
    %v347 = vrot.slane %v343, 4
    %v349 = vshrl.u32 %v241, 16
    %v351 = vrot.slane %v349, 7
    %v352 = vshll.u32 %v241, 16
    %v354 = vor.u32 %v351, %v352
    %v355 = vrot.slane %v351, 4
    %v357 = vshrl.u32 %v242, 16
    %v359 = vrot.slane %v357, 7
    %v360 = vshll.u32 %v242, 16
    %v362 = vor.u32 %v359, %v360
    %v363 = vrot.slane %v359, 4
    %v365 = vshrl.u32 %v243, 16
    %v367 = vrot.slane %v365, 7
    %v368 = vshll.u32 %v243, 16
    %v370 = vor.u32 %v367, %v368
    %v371 = vrot.slane %v367, 4
    %s404 = scalar_lea.vmem [#allocation2], 8
    %vm405 = vcmask 519168
    %vm406 = vmand %vm405, %vm102
    %v407 = vld [vmem:[%s404] sm:$0xf]
    %v408 = vsel %vm406, %v250, %v407
    %409 = vst [vmem:[%s404] sm:$0xf] %v408
    %v410 = vld [vmem:[%s404 + $0x4] sm:$0x1]
    %v411 = vsel %vm41, %v251, %v410
    %412 = vst [vmem:[%s404 + $0x4] sm:$0x1] %v411
    %v413 = vld [vmem:[%s404 + $0x8] sm:$0xf]
    %v414 = vsel %vm406, %v258, %v413
    %415 = vst [vmem:[%s404 + $0x8] sm:$0xf] %v414
    %v416 = vld [vmem:[%s404 + $0xc] sm:$0x1]
    %v417 = vsel %vm41, %v259, %v416
    %418 = vst [vmem:[%s404 + $0xc] sm:$0x1] %v417
    %v419 = vld [vmem:[%s404 + $0x10] sm:$0xf]
    %v420 = vsel %vm406, %v266, %v419
    %421 = vst [vmem:[%s404 + $0x10] sm:$0xf] %v420
    %v422 = vld [vmem:[%s404 + $0x14] sm:$0x1]
    %v423 = vsel %vm41, %v267, %v422
    %424 = vst [vmem:[%s404 + $0x14] sm:$0x1] %v423
    %v425 = vld [vmem:[%s404 + $0x18] sm:$0xf]
    %v426 = vsel %vm406, %v274, %v425
    %427 = vst [vmem:[%s404 + $0x18] sm:$0xf] %v426
    %v428 = vld [vmem:[%s404 + $0x1c] sm:$0x1]
    %v429 = vsel %vm41, %v275, %v428
    %430 = vst [vmem:[%s404 + $0x1c] sm:$0x1] %v429
    %v431 = vld [vmem:[%s404 + $0x20] sm:$0xf]
    %v432 = vsel %vm406, %v282, %v431
    %433 = vst [vmem:[%s404 + $0x20] sm:$0xf] %v432
    %v434 = vld [vmem:[%s404 + $0x24] sm:$0x1]
    %v435 = vsel %vm41, %v283, %v434
    %436 = vst [vmem:[%s404 + $0x24] sm:$0x1] %v435
    %v437 = vld [vmem:[%s404 + $0x28] sm:$0xf]
    %v438 = vsel %vm406, %v290, %v437
    %439 = vst [vmem:[%s404 + $0x28] sm:$0xf] %v438
    %v440 = vld [vmem:[%s404 + $0x2c] sm:$0x1]
    %v441 = vsel %vm41, %v291, %v440
    %442 = vst [vmem:[%s404 + $0x2c] sm:$0x1] %v441
    %v443 = vld [vmem:[%s404 + $0x30] sm:$0xf]
    %v444 = vsel %vm406, %v298, %v443
    %445 = vst [vmem:[%s404 + $0x30] sm:$0xf] %v444
    %v446 = vld [vmem:[%s404 + $0x34] sm:$0x1]
    %v447 = vsel %vm41, %v299, %v446
    %448 = vst [vmem:[%s404 + $0x34] sm:$0x1] %v447
    %v449 = vld [vmem:[%s404 + $0x38] sm:$0xf]
    %v450 = vsel %vm406, %v306, %v449
    %451 = vst [vmem:[%s404 + $0x38] sm:$0xf] %v450
    %v452 = vld [vmem:[%s404 + $0x3c] sm:$0x1]
    %v453 = vsel %vm41, %v307, %v452
    %454 = vst [vmem:[%s404 + $0x3c] sm:$0x1] %v453
    %v455 = vld [vmem:[%s404 + $0x50] sm:$0xf]
    %v456 = vsel %vm406, %v314, %v455
    %457 = vst [vmem:[%s404 + $0x50] sm:$0xf] %v456
    %v458 = vld [vmem:[%s404 + $0x54] sm:$0x1]
    %v459 = vsel %vm41, %v315, %v458
    %460 = vst [vmem:[%s404 + $0x54] sm:$0x1] %v459
    %v461 = vld [vmem:[%s404 + $0x58] sm:$0xf]
    %v462 = vsel %vm406, %v322, %v461
    %463 = vst [vmem:[%s404 + $0x58] sm:$0xf] %v462
    %v464 = vld [vmem:[%s404 + $0x5c] sm:$0x1]
    %v465 = vsel %vm41, %v323, %v464
    %466 = vst [vmem:[%s404 + $0x5c] sm:$0x1] %v465
    %v467 = vld [vmem:[%s404 + $0x60] sm:$0xf]
    %v468 = vsel %vm406, %v330, %v467
    %469 = vst [vmem:[%s404 + $0x60] sm:$0xf] %v468
    %v470 = vld [vmem:[%s404 + $0x64] sm:$0x1]
    %v471 = vsel %vm41, %v331, %v470
    %472 = vst [vmem:[%s404 + $0x64] sm:$0x1] %v471
    %v473 = vld [vmem:[%s404 + $0x68] sm:$0xf]
    %v474 = vsel %vm406, %v338, %v473
    %475 = vst [vmem:[%s404 + $0x68] sm:$0xf] %v474
    %v476 = vld [vmem:[%s404 + $0x6c] sm:$0x1]
    %v477 = vsel %vm41, %v339, %v476
    %478 = vst [vmem:[%s404 + $0x6c] sm:$0x1] %v477
    %v479 = vld [vmem:[%s404 + $0x70] sm:$0xf]
    %v480 = vsel %vm406, %v346, %v479
    %481 = vst [vmem:[%s404 + $0x70] sm:$0xf] %v480
    %v482 = vld [vmem:[%s404 + $0x74] sm:$0x1]
    %v483 = vsel %vm41, %v347, %v482
    %484 = vst [vmem:[%s404 + $0x74] sm:$0x1] %v483
    %v485 = vld [vmem:[%s404 + $0x78] sm:$0xf]
    %v486 = vsel %vm406, %v354, %v485
    %487 = vst [vmem:[%s404 + $0x78] sm:$0xf] %v486
    %v488 = vld [vmem:[%s404 + $0x7c] sm:$0x1]
    %v489 = vsel %vm41, %v355, %v488
    %490 = vst [vmem:[%s404 + $0x7c] sm:$0x1] %v489
    %v491 = vld [vmem:[%s404 + $0x80] sm:$0xf]
    %v492 = vsel %vm406, %v362, %v491
    %493 = vst [vmem:[%s404 + $0x80] sm:$0xf] %v492
    %v494 = vld [vmem:[%s404 + $0x84] sm:$0x1]
    %v495 = vsel %vm41, %v363, %v494
    %496 = vst [vmem:[%s404 + $0x84] sm:$0x1] %v495
    %v497 = vld [vmem:[%s404 + $0x88] sm:$0xf]
    %v498 = vsel %vm406, %v370, %v497
    %499 = vst [vmem:[%s404 + $0x88] sm:$0xf] %v498
    %v500 = vld [vmem:[%s404 + $0x8c] sm:$0x1]
    %v501 = vsel %vm41, %v371, %v500
    %502 = vst [vmem:[%s404 + $0x8c] sm:$0x1] %v501
    %v503 = vld [vmem:[#allocation2] sm:$0xf]
    %v504 = vld [vmem:[#allocation2 + $0x8] sm:$0xf]
    %v505 = vld [vmem:[#allocation2 + $0x10] sm:$0xf]
    %v506 = vld [vmem:[#allocation2 + $0x18] sm:$0xf]
    %v507 = vld [vmem:[#allocation2 + $0x20] sm:$0xf]
    %v508 = vld [vmem:[#allocation2 + $0x28] sm:$0xf]
    %v509 = vld [vmem:[#allocation2 + $0x30] sm:$0xf]
    %v510 = vld [vmem:[#allocation2 + $0x38] sm:$0xf]
    %v511 = vld [vmem:[#allocation2 + $0x50] sm:$0xf]
    %v512 = vld [vmem:[#allocation2 + $0x58] sm:$0xf]
    %v513 = vld [vmem:[#allocation2 + $0x60] sm:$0xf]
    %v514 = vld [vmem:[#allocation2 + $0x68] sm:$0xf]
    %v515 = vld [vmem:[#allocation2 + $0x70] sm:$0xf]
    %v516 = vld [vmem:[#allocation2 + $0x78] sm:$0xf]
    %v517 = vld [vmem:[#allocation2 + $0x80] sm:$0xf]
    %v518 = vld [vmem:[#allocation2 + $0x88] sm:$0xf]
    %v519 = vld [vmem:[#allocation2 + $0x4] sm:$0x1]
    %v520 = vld [vmem:[#allocation2 + $0xc] sm:$0x1]
    %v521 = vld [vmem:[#allocation2 + $0x14] sm:$0x1]
    %v522 = vld [vmem:[#allocation2 + $0x1c] sm:$0x1]
    %v523 = vld [vmem:[#allocation2 + $0x24] sm:$0x1]
    %v524 = vld [vmem:[#allocation2 + $0x2c] sm:$0x1]
    %v525 = vld [vmem:[#allocation2 + $0x34] sm:$0x1]
    %v526 = vld [vmem:[#allocation2 + $0x3c] sm:$0x1]
    %v527 = vld [vmem:[#allocation2 + $0x54] sm:$0x1]
    %v528 = vld [vmem:[#allocation2 + $0x5c] sm:$0x1]
    %v529 = vld [vmem:[#allocation2 + $0x64] sm:$0x1]
    %v530 = vld [vmem:[#allocation2 + $0x6c] sm:$0x1]
    %v531 = vld [vmem:[#allocation2 + $0x74] sm:$0x1]
    %v532 = vld [vmem:[#allocation2 + $0x7c] sm:$0x1]
    %v533 = vld [vmem:[#allocation2 + $0x84] sm:$0x1]
    %v534 = vld [vmem:[#allocation2 + $0x8c] sm:$0x1]
    %vm535 = vsmask.f32 3328
    %vm536 = vsmask.f32 7440
    %vm537 = vmor %vm535, %vm536
    %v539 = vshrl.u32 %v503, 16
    %v541 = vrot.slane %v539, 4
    %v542 = vshll.u32 %v503, 16
    %v544 = vrot.slane %v542, 5
    %v545 = vor.u32 %v541, %v544
    %v546 = vrot.slane %v545, 4
    %v548 = vshll.u32 %v519, 16
    %v550 = vrot.slane %v548, 5
    %v551 = vsel %vm537, %v546, %v550
    %v553 = vshrl.u32 %v504, 16
    %v555 = vrot.slane %v553, 4
    %v556 = vshll.u32 %v504, 16
    %v558 = vrot.slane %v556, 5
    %v559 = vor.u32 %v555, %v558
    %v560 = vrot.slane %v559, 4
    %v562 = vshll.u32 %v520, 16
    %v564 = vrot.slane %v562, 5
    %v565 = vsel %vm537, %v560, %v564
    %v567 = vshrl.u32 %v505, 16
    %v569 = vrot.slane %v567, 4
    %v570 = vshll.u32 %v505, 16
    %v572 = vrot.slane %v570, 5
    %v573 = vor.u32 %v569, %v572
    %v574 = vrot.slane %v573, 4
    %v576 = vshll.u32 %v521, 16
    %v578 = vrot.slane %v576, 5
    %v579 = vsel %vm537, %v574, %v578
    %v581 = vshrl.u32 %v506, 16
    %v583 = vrot.slane %v581, 4
    %v584 = vshll.u32 %v506, 16
    %v586 = vrot.slane %v584, 5
    %v587 = vor.u32 %v583, %v586
    %v588 = vrot.slane %v587, 4
    %v590 = vshll.u32 %v522, 16
    %v592 = vrot.slane %v590, 5
    %v593 = vsel %vm537, %v588, %v592
    %v595 = vshrl.u32 %v507, 16
    %v597 = vrot.slane %v595, 4
    %v598 = vshll.u32 %v507, 16
    %v600 = vrot.slane %v598, 5
    %v601 = vor.u32 %v597, %v600
    %v602 = vrot.slane %v601, 4
    %v604 = vshll.u32 %v523, 16
    %v606 = vrot.slane %v604, 5
    %v607 = vsel %vm537, %v602, %v606
    %v609 = vshrl.u32 %v508, 16
    %v611 = vrot.slane %v609, 4
    %v612 = vshll.u32 %v508, 16
    %v614 = vrot.slane %v612, 5
    %v615 = vor.u32 %v611, %v614
    %v616 = vrot.slane %v615, 4
    %v618 = vshll.u32 %v524, 16
    %v620 = vrot.slane %v618, 5
    %v621 = vsel %vm537, %v616, %v620
    %v623 = vshrl.u32 %v509, 16
    %v625 = vrot.slane %v623, 4
    %v626 = vshll.u32 %v509, 16
    %v628 = vrot.slane %v626, 5
    %v629 = vor.u32 %v625, %v628
    %v630 = vrot.slane %v629, 4
    %v632 = vshll.u32 %v525, 16
    %v634 = vrot.slane %v632, 5
    %v635 = vsel %vm537, %v630, %v634
    %v637 = vshrl.u32 %v510, 16
    %v639 = vrot.slane %v637, 4
    %v640 = vshll.u32 %v510, 16
    %v642 = vrot.slane %v640, 5
    %v643 = vor.u32 %v639, %v642
    %v644 = vrot.slane %v643, 4
    %v646 = vshll.u32 %v526, 16
    %v648 = vrot.slane %v646, 5
    %v649 = vsel %vm537, %v644, %v648
    %v651 = vshrl.u32 %v511, 16
    %v653 = vrot.slane %v651, 4
    %v654 = vshll.u32 %v511, 16
    %v656 = vrot.slane %v654, 5
    %v657 = vor.u32 %v653, %v656
    %v658 = vrot.slane %v657, 4
    %v660 = vshll.u32 %v527, 16
    %v662 = vrot.slane %v660, 5
    %v663 = vsel %vm537, %v658, %v662
    %v665 = vshrl.u32 %v512, 16
    %v667 = vrot.slane %v665, 4
    %v668 = vshll.u32 %v512, 16
    %v670 = vrot.slane %v668, 5
    %v671 = vor.u32 %v667, %v670
    %v672 = vrot.slane %v671, 4
    %v674 = vshll.u32 %v528, 16
    %v676 = vrot.slane %v674, 5
    %v677 = vsel %vm537, %v672, %v676
    %v679 = vshrl.u32 %v513, 16
    %v681 = vrot.slane %v679, 4
    %v682 = vshll.u32 %v513, 16
    %v684 = vrot.slane %v682, 5
    %v685 = vor.u32 %v681, %v684
    %v686 = vrot.slane %v685, 4
    %v688 = vshll.u32 %v529, 16
    %v690 = vrot.slane %v688, 5
    %v691 = vsel %vm537, %v686, %v690
    %v693 = vshrl.u32 %v514, 16
    %v695 = vrot.slane %v693, 4
    %v696 = vshll.u32 %v514, 16
    %v698 = vrot.slane %v696, 5
    %v699 = vor.u32 %v695, %v698
    %v700 = vrot.slane %v699, 4
    %v702 = vshll.u32 %v530, 16
    %v704 = vrot.slane %v702, 5
    %v705 = vsel %vm537, %v700, %v704
    %v707 = vshrl.u32 %v515, 16
    %v709 = vrot.slane %v707, 4
    %v710 = vshll.u32 %v515, 16
    %v712 = vrot.slane %v710, 5
    %v713 = vor.u32 %v709, %v712
    %v714 = vrot.slane %v713, 4
    %v716 = vshll.u32 %v531, 16
    %v718 = vrot.slane %v716, 5
    %v719 = vsel %vm537, %v714, %v718
    %v721 = vshrl.u32 %v516, 16
    %v723 = vrot.slane %v721, 4
    %v724 = vshll.u32 %v516, 16
    %v726 = vrot.slane %v724, 5
    %v727 = vor.u32 %v723, %v726
    %v728 = vrot.slane %v727, 4
    %v730 = vshll.u32 %v532, 16
    %v732 = vrot.slane %v730, 5
    %v733 = vsel %vm537, %v728, %v732
    %v735 = vshrl.u32 %v517, 16
    %v737 = vrot.slane %v735, 4
    %v738 = vshll.u32 %v517, 16
    %v740 = vrot.slane %v738, 5
    %v741 = vor.u32 %v737, %v740
    %v742 = vrot.slane %v741, 4
    %v744 = vshll.u32 %v533, 16
    %v746 = vrot.slane %v744, 5
    %v747 = vsel %vm537, %v742, %v746
    %v749 = vshrl.u32 %v518, 16
    %v751 = vrot.slane %v749, 4
    %v752 = vshll.u32 %v518, 16
    %v754 = vrot.slane %v752, 5
    %v755 = vor.u32 %v751, %v754
    %v756 = vrot.slane %v755, 4
    %v758 = vshll.u32 %v534, 16
    %v760 = vrot.slane %v758, 5
    %v761 = vsel %vm537, %v756, %v760
    %v778 = vunpack.c.l.b16 %v503
    %v779 = vunpack.c.l.b16 %v504
    %v780 = vunpack.c.l.b16 %v505
    %v781 = vunpack.c.l.b16 %v506
    %v782 = vunpack.c.l.b16 %v507
    %v783 = vunpack.c.l.b16 %v508
    %v784 = vunpack.c.l.b16 %v509
    %v785 = vunpack.c.l.b16 %v510
    %v786 = vunpack.c.l.b16 %v511
    %v787 = vunpack.c.l.b16 %v512
    %v788 = vunpack.c.l.b16 %v513
    %v789 = vunpack.c.l.b16 %v514
    %v790 = vunpack.c.l.b16 %v515
    %v791 = vunpack.c.l.b16 %v516
    %v792 = vunpack.c.l.b16 %v517
    %v793 = vunpack.c.l.b16 %v518
    %v794 = vpack.c.b16 %v779, %v778
    %v795 = vpack.c.b16 %v781, %v780
    %v796 = vpack.c.b16 %v783, %v782
    %v797 = vpack.c.b16 %v785, %v784
    %v798 = vpack.c.b16 %v787, %v786
    %v799 = vpack.c.b16 %v789, %v788
    %v800 = vpack.c.b16 %v791, %v790
    %v801 = vpack.c.b16 %v793, %v792
    %v802 = vunpack.c.l.b16 %v551
    %v803 = vunpack.c.l.b16 %v565
    %v804 = vunpack.c.l.b16 %v579
    %v805 = vunpack.c.l.b16 %v593
    %v806 = vunpack.c.l.b16 %v607
    %v807 = vunpack.c.l.b16 %v621
    %v808 = vunpack.c.l.b16 %v635
    %v809 = vunpack.c.l.b16 %v649
    %v810 = vunpack.c.l.b16 %v663
    %v811 = vunpack.c.l.b16 %v677
    %v812 = vunpack.c.l.b16 %v691
    %v813 = vunpack.c.l.b16 %v705
    %v814 = vunpack.c.l.b16 %v719
    %v815 = vunpack.c.l.b16 %v733
    %v816 = vunpack.c.l.b16 %v747
    %v817 = vunpack.c.l.b16 %v761
    %v818 = vpack.c.b16 %v803, %v802
    %v819 = vpack.c.b16 %v805, %v804
    %v820 = vpack.c.b16 %v807, %v806
    %v821 = vpack.c.b16 %v809, %v808
    %v822 = vpack.c.b16 %v811, %v810
    %v823 = vpack.c.b16 %v813, %v812
    %v824 = vpack.c.b16 %v815, %v814
    %v825 = vpack.c.b16 %v817, %v816
    %826 = vrot.lane.b32.xlu0 %v818, 64
    %v827 = vpop.permute.xlu0 %826
    %828 = vrot.lane.b32.xlu0 %v819, 64
    %v829 = vpop.permute.xlu0 %828
    %830 = vrot.lane.b32.xlu0 %v820, 64
    %v831 = vpop.permute.xlu0 %830
    %832 = vrot.lane.b32.xlu0 %v821, 64
    %v833 = vpop.permute.xlu0 %832
    %834 = vrot.lane.b32.xlu0 %v822, 64
    %v835 = vpop.permute.xlu0 %834
    %836 = vrot.lane.b32.xlu0 %v823, 64
    %v837 = vpop.permute.xlu0 %836
    %838 = vrot.lane.b32.xlu0 %v824, 64
    %v839 = vpop.permute.xlu0 %838
    %840 = vrot.lane.b32.xlu0 %v825, 64
    %v841 = vpop.permute.xlu0 %840
    %vm842 = vcmask 523264
    %v845 = vsel %vm842, %v794, %v827
    %v849 = vsel %vm842, %v795, %v829
    %v853 = vsel %vm842, %v796, %v831
    %v857 = vsel %vm842, %v797, %v833
    %v861 = vsel %vm842, %v798, %v835
    %v865 = vsel %vm842, %v799, %v837
    %v869 = vsel %vm842, %v800, %v839
    %v873 = vsel %vm842, %v801, %v841
    %875 = vst [vmem:[#allocation3] sm:$0xff] %v845
    %876 = vst [vmem:[#allocation3 + $0x28] sm:$0xff] %v849
    %877 = vst [vmem:[#allocation3 + $0x50] sm:$0xff] %v853
    %878 = vst [vmem:[#allocation3 + $0x78] sm:$0xff] %v857
    %879 = vst [vmem:[#allocation3 + $0xa0] sm:$0xff] %v861
    %880 = vst [vmem:[#allocation3 + $0xc8] sm:$0xff] %v865
    %881 = vst [vmem:[#allocation3 + $0xf0] sm:$0xff] %v869
    %882 = vst [vmem:[#allocation3 + $0x118] sm:$0xff] %v873
    %v883 = vld [vmem:[#allocation2] sm:$0xe]
    %v884 = vld [vmem:[#allocation2 + $0x4] sm:$0x1]
    %v885 = vld [vmem:[#allocation2 + $0x8] sm:$0xe]
    %v886 = vld [vmem:[#allocation2 + $0xc] sm:$0x1]
    %v887 = vld [vmem:[#allocation2 + $0x10] sm:$0xe]
    %v888 = vld [vmem:[#allocation2 + $0x14] sm:$0x1]
    %v889 = vld [vmem:[#allocation2 + $0x18] sm:$0xe]
    %v890 = vld [vmem:[#allocation2 + $0x1c] sm:$0x1]
    %v891 = vld [vmem:[#allocation2 + $0x20] sm:$0xe]
    %v892 = vld [vmem:[#allocation2 + $0x24] sm:$0x1]
    %v893 = vld [vmem:[#allocation2 + $0x28] sm:$0xe]
    %v894 = vld [vmem:[#allocation2 + $0x2c] sm:$0x1]
    %v895 = vld [vmem:[#allocation2 + $0x30] sm:$0xe]
    %v896 = vld [vmem:[#allocation2 + $0x34] sm:$0x1]
    %v897 = vld [vmem:[#allocation2 + $0x38] sm:$0xe]
    %v898 = vld [vmem:[#allocation2 + $0x3c] sm:$0x1]
    %v899 = vld [vmem:[#allocation2 + $0x50] sm:$0xe]
    %v900 = vld [vmem:[#allocation2 + $0x54] sm:$0x1]
    %v901 = vld [vmem:[#allocation2 + $0x58] sm:$0xe]
    %v902 = vld [vmem:[#allocation2 + $0x5c] sm:$0x1]
    %v903 = vld [vmem:[#allocation2 + $0x60] sm:$0xe]
    %v904 = vld [vmem:[#allocation2 + $0x64] sm:$0x1]
    %v905 = vld [vmem:[#allocation2 + $0x68] sm:$0xe]
    %v906 = vld [vmem:[#allocation2 + $0x6c] sm:$0x1]
    %v907 = vld [vmem:[#allocation2 + $0x70] sm:$0xe]
    %v908 = vld [vmem:[#allocation2 + $0x74] sm:$0x1]
    %v909 = vld [vmem:[#allocation2 + $0x78] sm:$0xe]
    %v910 = vld [vmem:[#allocation2 + $0x7c] sm:$0x1]
    %v911 = vld [vmem:[#allocation2 + $0x80] sm:$0xe]
    %v912 = vld [vmem:[#allocation2 + $0x84] sm:$0x1]
    %v913 = vld [vmem:[#allocation2 + $0x88] sm:$0xe]
    %v914 = vld [vmem:[#allocation2 + $0x8c] sm:$0x1]
    %vm947 = vcmask 1042432
    %vm948 = vcmask 1046532
    %vm949 = vmor %vm947, %vm948
    %v950 = vrot.slane %v883, 5
    %v951 = vrot.slane %v950, 4
    %v952 = vrot.slane %v884, 5
    %v953 = vsel %vm949, %v951, %v952
    %v954 = vrot.slane %v885, 5
    %v955 = vrot.slane %v954, 4
    %v956 = vrot.slane %v886, 5
    %v957 = vsel %vm949, %v955, %v956
    %v958 = vrot.slane %v887, 5
    %v959 = vrot.slane %v958, 4
    %v960 = vrot.slane %v888, 5
    %v961 = vsel %vm949, %v959, %v960
    %v962 = vrot.slane %v889, 5
    %v963 = vrot.slane %v962, 4
    %v964 = vrot.slane %v890, 5
    %v965 = vsel %vm949, %v963, %v964
    %v966 = vrot.slane %v891, 5
    %v967 = vrot.slane %v966, 4
    %v968 = vrot.slane %v892, 5
    %v969 = vsel %vm949, %v967, %v968
    %v970 = vrot.slane %v893, 5
    %v971 = vrot.slane %v970, 4
    %v972 = vrot.slane %v894, 5
    %v973 = vsel %vm949, %v971, %v972
    %v974 = vrot.slane %v895, 5
    %v975 = vrot.slane %v974, 4
    %v976 = vrot.slane %v896, 5
    %v977 = vsel %vm949, %v975, %v976
    %v978 = vrot.slane %v897, 5
    %v979 = vrot.slane %v978, 4
    %v980 = vrot.slane %v898, 5
    %v981 = vsel %vm949, %v979, %v980
    %v982 = vrot.slane %v899, 5
    %v983 = vrot.slane %v982, 4
    %v984 = vrot.slane %v900, 5
    %v985 = vsel %vm949, %v983, %v984
    %v986 = vrot.slane %v901, 5
    %v987 = vrot.slane %v986, 4
    %v988 = vrot.slane %v902, 5
    %v989 = vsel %vm949, %v987, %v988
    %v990 = vrot.slane %v903, 5
    %v991 = vrot.slane %v990, 4
    %v992 = vrot.slane %v904, 5
    %v993 = vsel %vm949, %v991, %v992
    %v994 = vrot.slane %v905, 5
    %v995 = vrot.slane %v994, 4
    %v996 = vrot.slane %v906, 5
    %v997 = vsel %vm949, %v995, %v996
    %v998 = vrot.slane %v907, 5
    %v999 = vrot.slane %v998, 4
    %v1000 = vrot.slane %v908, 5
    %v1001 = vsel %vm949, %v999, %v1000
    %v1002 = vrot.slane %v909, 5
    %v1003 = vrot.slane %v1002, 4
    %v1004 = vrot.slane %v910, 5
    %v1005 = vsel %vm949, %v1003, %v1004
    %v1006 = vrot.slane %v911, 5
    %v1007 = vrot.slane %v1006, 4
    %v1008 = vrot.slane %v912, 5
    %v1009 = vsel %vm949, %v1007, %v1008
    %v1010 = vrot.slane %v913, 5
    %v1011 = vrot.slane %v1010, 4
    %v1012 = vrot.slane %v914, 5
    %v1013 = vsel %vm949, %v1011, %v1012
    %v1014 = vld [vmem:[%s404] sm:$0xf]
    %v1015 = vld [vmem:[%s404 + $0x8] sm:$0xf]
    %v1016 = vld [vmem:[%s404 + $0x10] sm:$0xf]
    %v1017 = vld [vmem:[%s404 + $0x18] sm:$0xf]
    %v1018 = vld [vmem:[%s404 + $0x20] sm:$0xf]
    %v1019 = vld [vmem:[%s404 + $0x28] sm:$0xf]
    %v1020 = vld [vmem:[%s404 + $0x30] sm:$0xf]
    %v1021 = vld [vmem:[%s404 + $0x38] sm:$0xf]
    %v1022 = vld [vmem:[%s404 + $0x50] sm:$0xf]
    %v1023 = vld [vmem:[%s404 + $0x58] sm:$0xf]
    %v1024 = vld [vmem:[%s404 + $0x60] sm:$0xf]
    %v1025 = vld [vmem:[%s404 + $0x68] sm:$0xf]
    %v1026 = vld [vmem:[%s404 + $0x70] sm:$0xf]
    %v1027 = vld [vmem:[%s404 + $0x78] sm:$0xf]
    %v1028 = vld [vmem:[%s404 + $0x80] sm:$0xf]
    %v1029 = vld [vmem:[%s404 + $0x88] sm:$0xf]
    %v1030 = vunpack.c.l.b16 %v953
    %v1031 = vunpack.c.l.b16 %v957
    %v1032 = vunpack.c.l.b16 %v961
    %v1033 = vunpack.c.l.b16 %v965
    %v1034 = vunpack.c.l.b16 %v969
    %v1035 = vunpack.c.l.b16 %v973
    %v1036 = vunpack.c.l.b16 %v977
    %v1037 = vunpack.c.l.b16 %v981
    %v1038 = vunpack.c.l.b16 %v985
    %v1039 = vunpack.c.l.b16 %v989
    %v1040 = vunpack.c.l.b16 %v993
    %v1041 = vunpack.c.l.b16 %v997
    %v1042 = vunpack.c.l.b16 %v1001
    %v1043 = vunpack.c.l.b16 %v1005
    %v1044 = vunpack.c.l.b16 %v1009
    %v1045 = vunpack.c.l.b16 %v1013
    %v1046 = vpack.c.b16 %v1031, %v1030
    %v1047 = vpack.c.b16 %v1033, %v1032
    %v1048 = vpack.c.b16 %v1035, %v1034
    %v1049 = vpack.c.b16 %v1037, %v1036
    %v1050 = vpack.c.b16 %v1039, %v1038
    %v1051 = vpack.c.b16 %v1041, %v1040
    %v1052 = vpack.c.b16 %v1043, %v1042
    %v1053 = vpack.c.b16 %v1045, %v1044
    %v1070 = vunpack.c.l.b16 %v1014
    %v1071 = vunpack.c.l.b16 %v1015
    %v1072 = vunpack.c.l.b16 %v1016
    %v1073 = vunpack.c.l.b16 %v1017
    %v1074 = vunpack.c.l.b16 %v1018
    %v1075 = vunpack.c.l.b16 %v1019
    %v1076 = vunpack.c.l.b16 %v1020
    %v1077 = vunpack.c.l.b16 %v1021
    %v1078 = vunpack.c.l.b16 %v1022
    %v1079 = vunpack.c.l.b16 %v1023
    %v1080 = vunpack.c.l.b16 %v1024
    %v1081 = vunpack.c.l.b16 %v1025
    %v1082 = vunpack.c.l.b16 %v1026
    %v1083 = vunpack.c.l.b16 %v1027
    %v1084 = vunpack.c.l.b16 %v1028
    %v1085 = vunpack.c.l.b16 %v1029
    %v1086 = vpack.c.b16 %v1071, %v1070
    %v1087 = vpack.c.b16 %v1073, %v1072
    %v1088 = vpack.c.b16 %v1075, %v1074
    %v1089 = vpack.c.b16 %v1077, %v1076
    %v1090 = vpack.c.b16 %v1079, %v1078
    %v1091 = vpack.c.b16 %v1081, %v1080
    %v1092 = vpack.c.b16 %v1083, %v1082
    %v1093 = vpack.c.b16 %v1085, %v1084
    %1094 = vrot.lane.b32.xlu0 %v1086, 64
    %v1095 = vpop.permute.xlu0 %1094
    %1096 = vrot.lane.b32.xlu0 %v1087, 64
    %v1097 = vpop.permute.xlu0 %1096
    %1098 = vrot.lane.b32.xlu0 %v1088, 64
    %v1099 = vpop.permute.xlu0 %1098
    %1100 = vrot.lane.b32.xlu0 %v1089, 64
    %v1101 = vpop.permute.xlu0 %1100
    %1102 = vrot.lane.b32.xlu0 %v1090, 64
    %v1103 = vpop.permute.xlu0 %1102
    %1104 = vrot.lane.b32.xlu0 %v1091, 64
    %v1105 = vpop.permute.xlu0 %1104
    %1106 = vrot.lane.b32.xlu0 %v1092, 64
    %v1107 = vpop.permute.xlu0 %1106
    %1108 = vrot.lane.b32.xlu0 %v1093, 64
    %v1109 = vpop.permute.xlu0 %1108
    %v1112 = vsel %vm842, %v1046, %v1095
    %v1116 = vsel %vm842, %v1047, %v1097
    %v1120 = vsel %vm842, %v1048, %v1099
    %v1124 = vsel %vm842, %v1049, %v1101
    %v1128 = vsel %vm842, %v1050, %v1103
    %v1132 = vsel %vm842, %v1051, %v1105
    %v1136 = vsel %vm842, %v1052, %v1107
    %v1140 = vsel %vm842, %v1053, %v1109
    %1142 = vst [vmem:[#allocation3 + $0x8] sm:$0xff] %v1112
    %1143 = vst [vmem:[#allocation3 + $0x30] sm:$0xff] %v1116
    %1144 = vst [vmem:[#allocation3 + $0x58] sm:$0xff] %v1120
    %1145 = vst [vmem:[#allocation3 + $0x80] sm:$0xff] %v1124
    %1146 = vst [vmem:[#allocation3 + $0xa8] sm:$0xff] %v1128
    %1147 = vst [vmem:[#allocation3 + $0xd0] sm:$0xff] %v1132
    %1148 = vst [vmem:[#allocation3 + $0xf8] sm:$0xff] %v1136
    %1149 = vst [vmem:[#allocation3 + $0x120] sm:$0xff] %v1140
    %v1150 = vld [vmem:[%s404] sm:$0xf]
    %v1151 = vld [vmem:[%s404 + $0x4] sm:$0x1]
    %v1152 = vld [vmem:[%s404 + $0x8] sm:$0xf]
    %v1153 = vld [vmem:[%s404 + $0xc] sm:$0x1]
    %v1154 = vld [vmem:[%s404 + $0x10] sm:$0xf]
    %v1155 = vld [vmem:[%s404 + $0x14] sm:$0x1]
    %v1156 = vld [vmem:[%s404 + $0x18] sm:$0xf]
    %v1157 = vld [vmem:[%s404 + $0x1c] sm:$0x1]
    %v1158 = vld [vmem:[%s404 + $0x20] sm:$0xf]
    %v1159 = vld [vmem:[%s404 + $0x24] sm:$0x1]
    %v1160 = vld [vmem:[%s404 + $0x28] sm:$0xf]
    %v1161 = vld [vmem:[%s404 + $0x2c] sm:$0x1]
    %v1162 = vld [vmem:[%s404 + $0x30] sm:$0xf]
    %v1163 = vld [vmem:[%s404 + $0x34] sm:$0x1]
    %v1164 = vld [vmem:[%s404 + $0x38] sm:$0xf]
    %v1165 = vld [vmem:[%s404 + $0x3c] sm:$0x1]
    %v1166 = vld [vmem:[%s404 + $0x50] sm:$0xf]
    %v1167 = vld [vmem:[%s404 + $0x54] sm:$0x1]
    %v1168 = vld [vmem:[%s404 + $0x58] sm:$0xf]
    %v1169 = vld [vmem:[%s404 + $0x5c] sm:$0x1]
    %v1170 = vld [vmem:[%s404 + $0x60] sm:$0xf]
    %v1171 = vld [vmem:[%s404 + $0x64] sm:$0x1]
    %v1172 = vld [vmem:[%s404 + $0x68] sm:$0xf]
    %v1173 = vld [vmem:[%s404 + $0x6c] sm:$0x1]
    %v1174 = vld [vmem:[%s404 + $0x70] sm:$0xf]
    %v1175 = vld [vmem:[%s404 + $0x74] sm:$0x1]
    %v1176 = vld [vmem:[%s404 + $0x78] sm:$0xf]
    %v1177 = vld [vmem:[%s404 + $0x7c] sm:$0x1]
    %v1178 = vld [vmem:[%s404 + $0x80] sm:$0xf]
    %v1179 = vld [vmem:[%s404 + $0x84] sm:$0x1]
    %v1180 = vld [vmem:[%s404 + $0x88] sm:$0xf]
    %v1181 = vld [vmem:[%s404 + $0x8c] sm:$0x1]
    %v1183 = vshrl.u32 %v1150, 16
    %v1185 = vrot.slane %v1183, 4
    %v1186 = vshll.u32 %v1150, 16
    %v1188 = vrot.slane %v1186, 5
    %v1189 = vor.u32 %v1185, %v1188
    %v1190 = vrot.slane %v1189, 4
    %v1192 = vshll.u32 %v1151, 16
    %v1194 = vrot.slane %v1192, 5
    %v1195 = vsel %vm537, %v1190, %v1194
    %v1197 = vshrl.u32 %v1152, 16
    %v1199 = vrot.slane %v1197, 4
    %v1200 = vshll.u32 %v1152, 16
    %v1202 = vrot.slane %v1200, 5
    %v1203 = vor.u32 %v1199, %v1202
    %v1204 = vrot.slane %v1203, 4
    %v1206 = vshll.u32 %v1153, 16
    %v1208 = vrot.slane %v1206, 5
    %v1209 = vsel %vm537, %v1204, %v1208
    %v1211 = vshrl.u32 %v1154, 16
    %v1213 = vrot.slane %v1211, 4
    %v1214 = vshll.u32 %v1154, 16
    %v1216 = vrot.slane %v1214, 5
    %v1217 = vor.u32 %v1213, %v1216
    %v1218 = vrot.slane %v1217, 4
    %v1220 = vshll.u32 %v1155, 16
    %v1222 = vrot.slane %v1220, 5
    %v1223 = vsel %vm537, %v1218, %v1222
    %v1225 = vshrl.u32 %v1156, 16
    %v1227 = vrot.slane %v1225, 4
    %v1228 = vshll.u32 %v1156, 16
    %v1230 = vrot.slane %v1228, 5
    %v1231 = vor.u32 %v1227, %v1230
    %v1232 = vrot.slane %v1231, 4
    %v1234 = vshll.u32 %v1157, 16
    %v1236 = vrot.slane %v1234, 5
    %v1237 = vsel %vm537, %v1232, %v1236
    %v1239 = vshrl.u32 %v1158, 16
    %v1241 = vrot.slane %v1239, 4
    %v1242 = vshll.u32 %v1158, 16
    %v1244 = vrot.slane %v1242, 5
    %v1245 = vor.u32 %v1241, %v1244
    %v1246 = vrot.slane %v1245, 4
    %v1248 = vshll.u32 %v1159, 16
    %v1250 = vrot.slane %v1248, 5
    %v1251 = vsel %vm537, %v1246, %v1250
    %v1253 = vshrl.u32 %v1160, 16
    %v1255 = vrot.slane %v1253, 4
    %v1256 = vshll.u32 %v1160, 16
    %v1258 = vrot.slane %v1256, 5
    %v1259 = vor.u32 %v1255, %v1258
    %v1260 = vrot.slane %v1259, 4
    %v1262 = vshll.u32 %v1161, 16
    %v1264 = vrot.slane %v1262, 5
    %v1265 = vsel %vm537, %v1260, %v1264
    %v1267 = vshrl.u32 %v1162, 16
    %v1269 = vrot.slane %v1267, 4
    %v1270 = vshll.u32 %v1162, 16
    %v1272 = vrot.slane %v1270, 5
    %v1273 = vor.u32 %v1269, %v1272
    %v1274 = vrot.slane %v1273, 4
    %v1276 = vshll.u32 %v1163, 16
    %v1278 = vrot.slane %v1276, 5
    %v1279 = vsel %vm537, %v1274, %v1278
    %v1281 = vshrl.u32 %v1164, 16
    %v1283 = vrot.slane %v1281, 4
    %v1284 = vshll.u32 %v1164, 16
    %v1286 = vrot.slane %v1284, 5
    %v1287 = vor.u32 %v1283, %v1286
    %v1288 = vrot.slane %v1287, 4
    %v1290 = vshll.u32 %v1165, 16
    %v1292 = vrot.slane %v1290, 5
    %v1293 = vsel %vm537, %v1288, %v1292
    %v1295 = vshrl.u32 %v1166, 16
    %v1297 = vrot.slane %v1295, 4
    %v1298 = vshll.u32 %v1166, 16
    %v1300 = vrot.slane %v1298, 5
    %v1301 = vor.u32 %v1297, %v1300
    %v1302 = vrot.slane %v1301, 4
    %v1304 = vshll.u32 %v1167, 16
    %v1306 = vrot.slane %v1304, 5
    %v1307 = vsel %vm537, %v1302, %v1306
    %v1309 = vshrl.u32 %v1168, 16
    %v1311 = vrot.slane %v1309, 4
    %v1312 = vshll.u32 %v1168, 16
    %v1314 = vrot.slane %v1312, 5
    %v1315 = vor.u32 %v1311, %v1314
    %v1316 = vrot.slane %v1315, 4
    %v1318 = vshll.u32 %v1169, 16
    %v1320 = vrot.slane %v1318, 5
    %v1321 = vsel %vm537, %v1316, %v1320
    %v1323 = vshrl.u32 %v1170, 16
    %v1325 = vrot.slane %v1323, 4
    %v1326 = vshll.u32 %v1170, 16
    %v1328 = vrot.slane %v1326, 5
    %v1329 = vor.u32 %v1325, %v1328
    %v1330 = vrot.slane %v1329, 4
    %v1332 = vshll.u32 %v1171, 16
    %v1334 = vrot.slane %v1332, 5
    %v1335 = vsel %vm537, %v1330, %v1334
    %v1337 = vshrl.u32 %v1172, 16
    %v1339 = vrot.slane %v1337, 4
    %v1340 = vshll.u32 %v1172, 16
    %v1342 = vrot.slane %v1340, 5
    %v1343 = vor.u32 %v1339, %v1342
    %v1344 = vrot.slane %v1343, 4
    %v1346 = vshll.u32 %v1173, 16
    %v1348 = vrot.slane %v1346, 5
    %v1349 = vsel %vm537, %v1344, %v1348
    %v1351 = vshrl.u32 %v1174, 16
    %v1353 = vrot.slane %v1351, 4
    %v1354 = vshll.u32 %v1174, 16
    %v1356 = vrot.slane %v1354, 5
    %v1357 = vor.u32 %v1353, %v1356
    %v1358 = vrot.slane %v1357, 4
    %v1360 = vshll.u32 %v1175, 16
    %v1362 = vrot.slane %v1360, 5
    %v1363 = vsel %vm537, %v1358, %v1362
    %v1365 = vshrl.u32 %v1176, 16
    %v1367 = vrot.slane %v1365, 4
    %v1368 = vshll.u32 %v1176, 16
    %v1370 = vrot.slane %v1368, 5
    %v1371 = vor.u32 %v1367, %v1370
    %v1372 = vrot.slane %v1371, 4
    %v1374 = vshll.u32 %v1177, 16
    %v1376 = vrot.slane %v1374, 5
    %v1377 = vsel %vm537, %v1372, %v1376
    %v1379 = vshrl.u32 %v1178, 16
    %v1381 = vrot.slane %v1379, 4
    %v1382 = vshll.u32 %v1178, 16
    %v1384 = vrot.slane %v1382, 5
    %v1385 = vor.u32 %v1381, %v1384
    %v1386 = vrot.slane %v1385, 4
    %v1388 = vshll.u32 %v1179, 16
    %v1390 = vrot.slane %v1388, 5
    %v1391 = vsel %vm537, %v1386, %v1390
    %v1393 = vshrl.u32 %v1180, 16
    %v1395 = vrot.slane %v1393, 4
    %v1396 = vshll.u32 %v1180, 16
    %v1398 = vrot.slane %v1396, 5
    %v1399 = vor.u32 %v1395, %v1398
    %v1400 = vrot.slane %v1399, 4
    %v1402 = vshll.u32 %v1181, 16
    %v1404 = vrot.slane %v1402, 5
    %v1405 = vsel %vm537, %v1400, %v1404
    %v1406 = vld [vmem:[%s404] sm:$0xe]
    %v1407 = vld [vmem:[%s404 + $0x8] sm:$0xe]
    %v1408 = vld [vmem:[%s404 + $0x10] sm:$0xe]
    %v1409 = vld [vmem:[%s404 + $0x18] sm:$0xe]
    %v1410 = vld [vmem:[%s404 + $0x20] sm:$0xe]
    %v1411 = vld [vmem:[%s404 + $0x28] sm:$0xe]
    %v1412 = vld [vmem:[%s404 + $0x30] sm:$0xe]
    %v1413 = vld [vmem:[%s404 + $0x38] sm:$0xe]
    %v1414 = vld [vmem:[%s404 + $0x50] sm:$0xe]
    %v1415 = vld [vmem:[%s404 + $0x58] sm:$0xe]
    %v1416 = vld [vmem:[%s404 + $0x60] sm:$0xe]
    %v1417 = vld [vmem:[%s404 + $0x68] sm:$0xe]
    %v1418 = vld [vmem:[%s404 + $0x70] sm:$0xe]
    %v1419 = vld [vmem:[%s404 + $0x78] sm:$0xe]
    %v1420 = vld [vmem:[%s404 + $0x80] sm:$0xe]
    %v1421 = vld [vmem:[%s404 + $0x88] sm:$0xe]
    %v1454 = vrot.slane %v1406, 5
    %v1455 = vrot.slane %v1454, 4
    %v1456 = vrot.slane %v1151, 5
    %v1457 = vsel %vm949, %v1455, %v1456
    %v1458 = vrot.slane %v1407, 5
    %v1459 = vrot.slane %v1458, 4
    %v1460 = vrot.slane %v1153, 5
    %v1461 = vsel %vm949, %v1459, %v1460
    %v1462 = vrot.slane %v1408, 5
    %v1463 = vrot.slane %v1462, 4
    %v1464 = vrot.slane %v1155, 5
    %v1465 = vsel %vm949, %v1463, %v1464
    %v1466 = vrot.slane %v1409, 5
    %v1467 = vrot.slane %v1466, 4
    %v1468 = vrot.slane %v1157, 5
    %v1469 = vsel %vm949, %v1467, %v1468
    %v1470 = vrot.slane %v1410, 5
    %v1471 = vrot.slane %v1470, 4
    %v1472 = vrot.slane %v1159, 5
    %v1473 = vsel %vm949, %v1471, %v1472
    %v1474 = vrot.slane %v1411, 5
    %v1475 = vrot.slane %v1474, 4
    %v1476 = vrot.slane %v1161, 5
    %v1477 = vsel %vm949, %v1475, %v1476
    %v1478 = vrot.slane %v1412, 5
    %v1479 = vrot.slane %v1478, 4
    %v1480 = vrot.slane %v1163, 5
    %v1481 = vsel %vm949, %v1479, %v1480
    %v1482 = vrot.slane %v1413, 5
    %v1483 = vrot.slane %v1482, 4
    %v1484 = vrot.slane %v1165, 5
    %v1485 = vsel %vm949, %v1483, %v1484
    %v1486 = vrot.slane %v1414, 5
    %v1487 = vrot.slane %v1486, 4
    %v1488 = vrot.slane %v1167, 5
    %v1489 = vsel %vm949, %v1487, %v1488
    %v1490 = vrot.slane %v1415, 5
    %v1491 = vrot.slane %v1490, 4
    %v1492 = vrot.slane %v1169, 5
    %v1493 = vsel %vm949, %v1491, %v1492
    %v1494 = vrot.slane %v1416, 5
    %v1495 = vrot.slane %v1494, 4
    %v1496 = vrot.slane %v1171, 5
    %v1497 = vsel %vm949, %v1495, %v1496
    %v1498 = vrot.slane %v1417, 5
    %v1499 = vrot.slane %v1498, 4
    %v1500 = vrot.slane %v1173, 5
    %v1501 = vsel %vm949, %v1499, %v1500
    %v1502 = vrot.slane %v1418, 5
    %v1503 = vrot.slane %v1502, 4
    %v1504 = vrot.slane %v1175, 5
    %v1505 = vsel %vm949, %v1503, %v1504
    %v1506 = vrot.slane %v1419, 5
    %v1507 = vrot.slane %v1506, 4
    %v1508 = vrot.slane %v1177, 5
    %v1509 = vsel %vm949, %v1507, %v1508
    %v1510 = vrot.slane %v1420, 5
    %v1511 = vrot.slane %v1510, 4
    %v1512 = vrot.slane %v1179, 5
    %v1513 = vsel %vm949, %v1511, %v1512
    %v1514 = vrot.slane %v1421, 5
    %v1515 = vrot.slane %v1514, 4
    %v1516 = vrot.slane %v1181, 5
    %v1517 = vsel %vm949, %v1515, %v1516
    %v1518 = vunpack.c.l.b16 %v1195
    %v1519 = vunpack.c.l.b16 %v1209
    %v1520 = vunpack.c.l.b16 %v1223
    %v1521 = vunpack.c.l.b16 %v1237
    %v1522 = vunpack.c.l.b16 %v1251
    %v1523 = vunpack.c.l.b16 %v1265
    %v1524 = vunpack.c.l.b16 %v1279
    %v1525 = vunpack.c.l.b16 %v1293
    %v1526 = vunpack.c.l.b16 %v1307
    %v1527 = vunpack.c.l.b16 %v1321
    %v1528 = vunpack.c.l.b16 %v1335
    %v1529 = vunpack.c.l.b16 %v1349
    %v1530 = vunpack.c.l.b16 %v1363
    %v1531 = vunpack.c.l.b16 %v1377
    %v1532 = vunpack.c.l.b16 %v1391
    %v1533 = vunpack.c.l.b16 %v1405
    %v1534 = vpack.c.b16 %v1519, %v1518
    %v1535 = vpack.c.b16 %v1521, %v1520
    %v1536 = vpack.c.b16 %v1523, %v1522
    %v1537 = vpack.c.b16 %v1525, %v1524
    %v1538 = vpack.c.b16 %v1527, %v1526
    %v1539 = vpack.c.b16 %v1529, %v1528
    %v1540 = vpack.c.b16 %v1531, %v1530
    %v1541 = vpack.c.b16 %v1533, %v1532
    %v1542 = vunpack.c.l.b16 %v1457
    %v1543 = vunpack.c.l.b16 %v1461
    %v1544 = vunpack.c.l.b16 %v1465
    %v1545 = vunpack.c.l.b16 %v1469
    %v1546 = vunpack.c.l.b16 %v1473
    %v1547 = vunpack.c.l.b16 %v1477
    %v1548 = vunpack.c.l.b16 %v1481
    %v1549 = vunpack.c.l.b16 %v1485
    %v1550 = vunpack.c.l.b16 %v1489
    %v1551 = vunpack.c.l.b16 %v1493
    %v1552 = vunpack.c.l.b16 %v1497
    %v1553 = vunpack.c.l.b16 %v1501
    %v1554 = vunpack.c.l.b16 %v1505
    %v1555 = vunpack.c.l.b16 %v1509
    %v1556 = vunpack.c.l.b16 %v1513
    %v1557 = vunpack.c.l.b16 %v1517
    %v1558 = vpack.c.b16 %v1543, %v1542
    %v1559 = vpack.c.b16 %v1545, %v1544
    %v1560 = vpack.c.b16 %v1547, %v1546
    %v1561 = vpack.c.b16 %v1549, %v1548
    %v1562 = vpack.c.b16 %v1551, %v1550
    %v1563 = vpack.c.b16 %v1553, %v1552
    %v1564 = vpack.c.b16 %v1555, %v1554
    %v1565 = vpack.c.b16 %v1557, %v1556
    %1566 = vrot.lane.b32.xlu0 %v1558, 64
    %v1567 = vpop.permute.xlu0 %1566
    %1568 = vrot.lane.b32.xlu0 %v1559, 64
    %v1569 = vpop.permute.xlu0 %1568
    %1570 = vrot.lane.b32.xlu0 %v1560, 64
    %v1571 = vpop.permute.xlu0 %1570
    %1572 = vrot.lane.b32.xlu0 %v1561, 64
    %v1573 = vpop.permute.xlu0 %1572
    %1574 = vrot.lane.b32.xlu0 %v1562, 64
    %v1575 = vpop.permute.xlu0 %1574
    %1576 = vrot.lane.b32.xlu0 %v1563, 64
    %v1577 = vpop.permute.xlu0 %1576
    %1578 = vrot.lane.b32.xlu0 %v1564, 64
    %v1579 = vpop.permute.xlu0 %1578
    %1580 = vrot.lane.b32.xlu0 %v1565, 64
    %v1581 = vpop.permute.xlu0 %1580
    %v1584 = vsel %vm842, %v1534, %v1567
    %v1588 = vsel %vm842, %v1535, %v1569
    %v1592 = vsel %vm842, %v1536, %v1571
    %v1596 = vsel %vm842, %v1537, %v1573
    %v1600 = vsel %vm842, %v1538, %v1575
    %v1604 = vsel %vm842, %v1539, %v1577
    %v1608 = vsel %vm842, %v1540, %v1579
    %v1612 = vsel %vm842, %v1541, %v1581
    %1614 = vst [vmem:[#allocation3 + $0x10] sm:$0xff] %v1584
    %1615 = vst [vmem:[#allocation3 + $0x38] sm:$0xff] %v1588
    %1616 = vst [vmem:[#allocation3 + $0x60] sm:$0xff] %v1592
    %1617 = vst [vmem:[#allocation3 + $0x88] sm:$0xff] %v1596
    %1618 = vst [vmem:[#allocation3 + $0xb0] sm:$0xff] %v1600
    %1619 = vst [vmem:[#allocation3 + $0xd8] sm:$0xff] %v1604
    %1620 = vst [vmem:[#allocation3 + $0x100] sm:$0xff] %v1608
    %1621 = vst [vmem:[#allocation3 + $0x128] sm:$0xff] %v1612
    %s1622 = scalar_lea.vmem [#allocation2], 16
    %v1623 = vld [vmem:[%s1622] sm:$0xf]
    %v1624 = vld [vmem:[%s1622 + $0x8] sm:$0xf]
    %v1625 = vld [vmem:[%s1622 + $0x10] sm:$0xf]
    %v1626 = vld [vmem:[%s1622 + $0x18] sm:$0xf]
    %v1627 = vld [vmem:[%s1622 + $0x20] sm:$0xf]
    %v1628 = vld [vmem:[%s1622 + $0x28] sm:$0xf]
    %v1629 = vld [vmem:[%s1622 + $0x30] sm:$0xf]
    %v1630 = vld [vmem:[%s1622 + $0x38] sm:$0xf]
    %v1631 = vld [vmem:[%s1622 + $0x50] sm:$0xf]
    %v1632 = vld [vmem:[%s1622 + $0x58] sm:$0xf]
    %v1633 = vld [vmem:[%s1622 + $0x60] sm:$0xf]
    %v1634 = vld [vmem:[%s1622 + $0x68] sm:$0xf]
    %v1635 = vld [vmem:[%s1622 + $0x70] sm:$0xf]
    %v1636 = vld [vmem:[%s1622 + $0x78] sm:$0xf]
    %v1637 = vld [vmem:[%s1622 + $0x80] sm:$0xf]
    %v1638 = vld [vmem:[%s1622 + $0x88] sm:$0xf]
    %v1639 = vld [vmem:[%s1622 + $0x4] sm:$0x1]
    %v1640 = vld [vmem:[%s1622 + $0xc] sm:$0x1]
    %v1641 = vld [vmem:[%s1622 + $0x14] sm:$0x1]
    %v1642 = vld [vmem:[%s1622 + $0x1c] sm:$0x1]
    %v1643 = vld [vmem:[%s1622 + $0x24] sm:$0x1]
    %v1644 = vld [vmem:[%s1622 + $0x2c] sm:$0x1]
    %v1645 = vld [vmem:[%s1622 + $0x34] sm:$0x1]
    %v1646 = vld [vmem:[%s1622 + $0x3c] sm:$0x1]
    %v1647 = vld [vmem:[%s1622 + $0x54] sm:$0x1]
    %v1648 = vld [vmem:[%s1622 + $0x5c] sm:$0x1]
    %v1649 = vld [vmem:[%s1622 + $0x64] sm:$0x1]
    %v1650 = vld [vmem:[%s1622 + $0x6c] sm:$0x1]
    %v1651 = vld [vmem:[%s1622 + $0x74] sm:$0x1]
    %v1652 = vld [vmem:[%s1622 + $0x7c] sm:$0x1]
    %v1653 = vld [vmem:[%s1622 + $0x84] sm:$0x1]
    %v1654 = vld [vmem:[%s1622 + $0x8c] sm:$0x1]
    %v1656 = vshrl.u32 %v1623, 16
    %v1658 = vrot.slane %v1656, 4
    %v1659 = vshll.u32 %v1623, 16
    %v1661 = vrot.slane %v1659, 5
    %v1662 = vor.u32 %v1658, %v1661
    %v1663 = vrot.slane %v1662, 4
    %v1665 = vshll.u32 %v1639, 16
    %v1667 = vrot.slane %v1665, 5
    %v1668 = vsel %vm537, %v1663, %v1667
    %v1670 = vshrl.u32 %v1624, 16
    %v1672 = vrot.slane %v1670, 4
    %v1673 = vshll.u32 %v1624, 16
    %v1675 = vrot.slane %v1673, 5
    %v1676 = vor.u32 %v1672, %v1675
    %v1677 = vrot.slane %v1676, 4
    %v1679 = vshll.u32 %v1640, 16
    %v1681 = vrot.slane %v1679, 5
    %v1682 = vsel %vm537, %v1677, %v1681
    %v1684 = vshrl.u32 %v1625, 16
    %v1686 = vrot.slane %v1684, 4
    %v1687 = vshll.u32 %v1625, 16
    %v1689 = vrot.slane %v1687, 5
    %v1690 = vor.u32 %v1686, %v1689
    %v1691 = vrot.slane %v1690, 4
    %v1693 = vshll.u32 %v1641, 16
    %v1695 = vrot.slane %v1693, 5
    %v1696 = vsel %vm537, %v1691, %v1695
    %v1698 = vshrl.u32 %v1626, 16
    %v1700 = vrot.slane %v1698, 4
    %v1701 = vshll.u32 %v1626, 16
    %v1703 = vrot.slane %v1701, 5
    %v1704 = vor.u32 %v1700, %v1703
    %v1705 = vrot.slane %v1704, 4
    %v1707 = vshll.u32 %v1642, 16
    %v1709 = vrot.slane %v1707, 5
    %v1710 = vsel %vm537, %v1705, %v1709
    %v1712 = vshrl.u32 %v1627, 16
    %v1714 = vrot.slane %v1712, 4
    %v1715 = vshll.u32 %v1627, 16
    %v1717 = vrot.slane %v1715, 5
    %v1718 = vor.u32 %v1714, %v1717
    %v1719 = vrot.slane %v1718, 4
    %v1721 = vshll.u32 %v1643, 16
    %v1723 = vrot.slane %v1721, 5
    %v1724 = vsel %vm537, %v1719, %v1723
    %v1726 = vshrl.u32 %v1628, 16
    %v1728 = vrot.slane %v1726, 4
    %v1729 = vshll.u32 %v1628, 16
    %v1731 = vrot.slane %v1729, 5
    %v1732 = vor.u32 %v1728, %v1731
    %v1733 = vrot.slane %v1732, 4
    %v1735 = vshll.u32 %v1644, 16
    %v1737 = vrot.slane %v1735, 5
    %v1738 = vsel %vm537, %v1733, %v1737
    %v1740 = vshrl.u32 %v1629, 16
    %v1742 = vrot.slane %v1740, 4
    %v1743 = vshll.u32 %v1629, 16
    %v1745 = vrot.slane %v1743, 5
    %v1746 = vor.u32 %v1742, %v1745
    %v1747 = vrot.slane %v1746, 4
    %v1749 = vshll.u32 %v1645, 16
    %v1751 = vrot.slane %v1749, 5
    %v1752 = vsel %vm537, %v1747, %v1751
    %v1754 = vshrl.u32 %v1630, 16
    %v1756 = vrot.slane %v1754, 4
    %v1757 = vshll.u32 %v1630, 16
    %v1759 = vrot.slane %v1757, 5
    %v1760 = vor.u32 %v1756, %v1759
    %v1761 = vrot.slane %v1760, 4
    %v1763 = vshll.u32 %v1646, 16
    %v1765 = vrot.slane %v1763, 5
    %v1766 = vsel %vm537, %v1761, %v1765
    %v1768 = vshrl.u32 %v1631, 16
    %v1770 = vrot.slane %v1768, 4
    %v1771 = vshll.u32 %v1631, 16
    %v1773 = vrot.slane %v1771, 5
    %v1774 = vor.u32 %v1770, %v1773
    %v1775 = vrot.slane %v1774, 4
    %v1777 = vshll.u32 %v1647, 16
    %v1779 = vrot.slane %v1777, 5
    %v1780 = vsel %vm537, %v1775, %v1779
    %v1782 = vshrl.u32 %v1632, 16
    %v1784 = vrot.slane %v1782, 4
    %v1785 = vshll.u32 %v1632, 16
    %v1787 = vrot.slane %v1785, 5
    %v1788 = vor.u32 %v1784, %v1787
    %v1789 = vrot.slane %v1788, 4
    %v1791 = vshll.u32 %v1648, 16
    %v1793 = vrot.slane %v1791, 5
    %v1794 = vsel %vm537, %v1789, %v1793
    %v1796 = vshrl.u32 %v1633, 16
    %v1798 = vrot.slane %v1796, 4
    %v1799 = vshll.u32 %v1633, 16
    %v1801 = vrot.slane %v1799, 5
    %v1802 = vor.u32 %v1798, %v1801
    %v1803 = vrot.slane %v1802, 4
    %v1805 = vshll.u32 %v1649, 16
    %v1807 = vrot.slane %v1805, 5
    %v1808 = vsel %vm537, %v1803, %v1807
    %v1810 = vshrl.u32 %v1634, 16
    %v1812 = vrot.slane %v1810, 4
    %v1813 = vshll.u32 %v1634, 16
    %v1815 = vrot.slane %v1813, 5
    %v1816 = vor.u32 %v1812, %v1815
    %v1817 = vrot.slane %v1816, 4
    %v1819 = vshll.u32 %v1650, 16
    %v1821 = vrot.slane %v1819, 5
    %v1822 = vsel %vm537, %v1817, %v1821
    %v1824 = vshrl.u32 %v1635, 16
    %v1826 = vrot.slane %v1824, 4
    %v1827 = vshll.u32 %v1635, 16
    %v1829 = vrot.slane %v1827, 5
    %v1830 = vor.u32 %v1826, %v1829
    %v1831 = vrot.slane %v1830, 4
    %v1833 = vshll.u32 %v1651, 16
    %v1835 = vrot.slane %v1833, 5
    %v1836 = vsel %vm537, %v1831, %v1835
    %v1838 = vshrl.u32 %v1636, 16
    %v1840 = vrot.slane %v1838, 4
    %v1841 = vshll.u32 %v1636, 16
    %v1843 = vrot.slane %v1841, 5
    %v1844 = vor.u32 %v1840, %v1843
    %v1845 = vrot.slane %v1844, 4
    %v1847 = vshll.u32 %v1652, 16
    %v1849 = vrot.slane %v1847, 5
    %v1850 = vsel %vm537, %v1845, %v1849
    %v1852 = vshrl.u32 %v1637, 16
    %v1854 = vrot.slane %v1852, 4
    %v1855 = vshll.u32 %v1637, 16
    %v1857 = vrot.slane %v1855, 5
    %v1858 = vor.u32 %v1854, %v1857
    %v1859 = vrot.slane %v1858, 4
    %v1861 = vshll.u32 %v1653, 16
    %v1863 = vrot.slane %v1861, 5
    %v1864 = vsel %vm537, %v1859, %v1863
    %v1866 = vshrl.u32 %v1638, 16
    %v1868 = vrot.slane %v1866, 4
    %v1869 = vshll.u32 %v1638, 16
    %v1871 = vrot.slane %v1869, 5
    %v1872 = vor.u32 %v1868, %v1871
    %v1873 = vrot.slane %v1872, 4
    %v1875 = vshll.u32 %v1654, 16
    %v1877 = vrot.slane %v1875, 5
    %v1878 = vsel %vm537, %v1873, %v1877
    %v1895 = vunpack.c.l.b16 %v1623
    %v1896 = vunpack.c.l.b16 %v1624
    %v1897 = vunpack.c.l.b16 %v1625
    %v1898 = vunpack.c.l.b16 %v1626
    %v1899 = vunpack.c.l.b16 %v1627
    %v1900 = vunpack.c.l.b16 %v1628
    %v1901 = vunpack.c.l.b16 %v1629
    %v1902 = vunpack.c.l.b16 %v1630
    %v1903 = vunpack.c.l.b16 %v1631
    %v1904 = vunpack.c.l.b16 %v1632
    %v1905 = vunpack.c.l.b16 %v1633
    %v1906 = vunpack.c.l.b16 %v1634
    %v1907 = vunpack.c.l.b16 %v1635
    %v1908 = vunpack.c.l.b16 %v1636
    %v1909 = vunpack.c.l.b16 %v1637
    %v1910 = vunpack.c.l.b16 %v1638
    %v1911 = vpack.c.b16 %v1896, %v1895
    %v1912 = vpack.c.b16 %v1898, %v1897
    %v1913 = vpack.c.b16 %v1900, %v1899
    %v1914 = vpack.c.b16 %v1902, %v1901
    %v1915 = vpack.c.b16 %v1904, %v1903
    %v1916 = vpack.c.b16 %v1906, %v1905
    %v1917 = vpack.c.b16 %v1908, %v1907
    %v1918 = vpack.c.b16 %v1910, %v1909
    %v1919 = vunpack.c.l.b16 %v1668
    %v1920 = vunpack.c.l.b16 %v1682
    %v1921 = vunpack.c.l.b16 %v1696
    %v1922 = vunpack.c.l.b16 %v1710
    %v1923 = vunpack.c.l.b16 %v1724
    %v1924 = vunpack.c.l.b16 %v1738
    %v1925 = vunpack.c.l.b16 %v1752
    %v1926 = vunpack.c.l.b16 %v1766
    %v1927 = vunpack.c.l.b16 %v1780
    %v1928 = vunpack.c.l.b16 %v1794
    %v1929 = vunpack.c.l.b16 %v1808
    %v1930 = vunpack.c.l.b16 %v1822
    %v1931 = vunpack.c.l.b16 %v1836
    %v1932 = vunpack.c.l.b16 %v1850
    %v1933 = vunpack.c.l.b16 %v1864
    %v1934 = vunpack.c.l.b16 %v1878
    %v1935 = vpack.c.b16 %v1920, %v1919
    %v1936 = vpack.c.b16 %v1922, %v1921
    %v1937 = vpack.c.b16 %v1924, %v1923
    %v1938 = vpack.c.b16 %v1926, %v1925
    %v1939 = vpack.c.b16 %v1928, %v1927
    %v1940 = vpack.c.b16 %v1930, %v1929
    %v1941 = vpack.c.b16 %v1932, %v1931
    %v1942 = vpack.c.b16 %v1934, %v1933
    %1943 = vrot.lane.b32.xlu0 %v1935, 64
    %v1944 = vpop.permute.xlu0 %1943
    %1945 = vrot.lane.b32.xlu0 %v1936, 64
    %v1946 = vpop.permute.xlu0 %1945
    %1947 = vrot.lane.b32.xlu0 %v1937, 64
    %v1948 = vpop.permute.xlu0 %1947
    %1949 = vrot.lane.b32.xlu0 %v1938, 64
    %v1950 = vpop.permute.xlu0 %1949
    %1951 = vrot.lane.b32.xlu0 %v1939, 64
    %v1952 = vpop.permute.xlu0 %1951
    %1953 = vrot.lane.b32.xlu0 %v1940, 64
    %v1954 = vpop.permute.xlu0 %1953
    %1955 = vrot.lane.b32.xlu0 %v1941, 64
    %v1956 = vpop.permute.xlu0 %1955
    %1957 = vrot.lane.b32.xlu0 %v1942, 64
    %v1958 = vpop.permute.xlu0 %1957
    %v1961 = vsel %vm842, %v1911, %v1944
    %v1965 = vsel %vm842, %v1912, %v1946
    %v1969 = vsel %vm842, %v1913, %v1948
    %v1973 = vsel %vm842, %v1914, %v1950
    %v1977 = vsel %vm842, %v1915, %v1952
    %v1981 = vsel %vm842, %v1916, %v1954
    %v1985 = vsel %vm842, %v1917, %v1956
    %v1989 = vsel %vm842, %v1918, %v1958
    %1991 = vst [vmem:[#allocation3 + $0x18] sm:$0xff] %v1961
    %1992 = vst [vmem:[#allocation3 + $0x40] sm:$0xff] %v1965
    %1993 = vst [vmem:[#allocation3 + $0x68] sm:$0xff] %v1969
    %1994 = vst [vmem:[#allocation3 + $0x90] sm:$0xff] %v1973
    %1995 = vst [vmem:[#allocation3 + $0xb8] sm:$0xff] %v1977
    %1996 = vst [vmem:[#allocation3 + $0xe0] sm:$0xff] %v1981
    %1997 = vst [vmem:[#allocation3 + $0x108] sm:$0xff] %v1985
    %1998 = vst [vmem:[#allocation3 + $0x130] sm:$0xff] %v1989
    %v1999 = vld [vmem:[%s1622] sm:$0xe]
    %v2000 = vld [vmem:[%s1622 + $0x4] sm:$0x1]
    %v2001 = vld [vmem:[%s1622 + $0x8] sm:$0xe]
    %v2002 = vld [vmem:[%s1622 + $0xc] sm:$0x1]
    %v2003 = vld [vmem:[%s1622 + $0x10] sm:$0xe]
    %v2004 = vld [vmem:[%s1622 + $0x14] sm:$0x1]
    %v2005 = vld [vmem:[%s1622 + $0x18] sm:$0xe]
    %v2006 = vld [vmem:[%s1622 + $0x1c] sm:$0x1]
    %v2007 = vld [vmem:[%s1622 + $0x20] sm:$0xe]
    %v2008 = vld [vmem:[%s1622 + $0x24] sm:$0x1]
    %v2009 = vld [vmem:[%s1622 + $0x28] sm:$0xe]
    %v2010 = vld [vmem:[%s1622 + $0x2c] sm:$0x1]
    %v2011 = vld [vmem:[%s1622 + $0x30] sm:$0xe]
    %v2012 = vld [vmem:[%s1622 + $0x34] sm:$0x1]
    %v2013 = vld [vmem:[%s1622 + $0x38] sm:$0xe]
    %v2014 = vld [vmem:[%s1622 + $0x3c] sm:$0x1]
    %v2015 = vld [vmem:[%s1622 + $0x50] sm:$0xe]
    %v2016 = vld [vmem:[%s1622 + $0x54] sm:$0x1]
    %v2017 = vld [vmem:[%s1622 + $0x58] sm:$0xe]
    %v2018 = vld [vmem:[%s1622 + $0x5c] sm:$0x1]
    %v2019 = vld [vmem:[%s1622 + $0x60] sm:$0xe]
    %v2020 = vld [vmem:[%s1622 + $0x64] sm:$0x1]
    %v2021 = vld [vmem:[%s1622 + $0x68] sm:$0xe]
    %v2022 = vld [vmem:[%s1622 + $0x6c] sm:$0x1]
    %v2023 = vld [vmem:[%s1622 + $0x70] sm:$0xe]
    %v2024 = vld [vmem:[%s1622 + $0x74] sm:$0x1]
    %v2025 = vld [vmem:[%s1622 + $0x78] sm:$0xe]
    %v2026 = vld [vmem:[%s1622 + $0x7c] sm:$0x1]
    %v2027 = vld [vmem:[%s1622 + $0x80] sm:$0xe]
    %v2028 = vld [vmem:[%s1622 + $0x84] sm:$0x1]
    %v2029 = vld [vmem:[%s1622 + $0x88] sm:$0xe]
    %v2030 = vld [vmem:[%s1622 + $0x8c] sm:$0x1]
    %v2063 = vrot.slane %v1999, 5
    %v2064 = vrot.slane %v2063, 4
    %v2065 = vrot.slane %v2000, 5
    %v2066 = vsel %vm949, %v2064, %v2065
    %v2067 = vrot.slane %v2001, 5
    %v2068 = vrot.slane %v2067, 4
    %v2069 = vrot.slane %v2002, 5
    %v2070 = vsel %vm949, %v2068, %v2069
    %v2071 = vrot.slane %v2003, 5
    %v2072 = vrot.slane %v2071, 4
    %v2073 = vrot.slane %v2004, 5
    %v2074 = vsel %vm949, %v2072, %v2073
    %v2075 = vrot.slane %v2005, 5
    %v2076 = vrot.slane %v2075, 4
    %v2077 = vrot.slane %v2006, 5
    %v2078 = vsel %vm949, %v2076, %v2077
    %v2079 = vrot.slane %v2007, 5
    %v2080 = vrot.slane %v2079, 4
    %v2081 = vrot.slane %v2008, 5
    %v2082 = vsel %vm949, %v2080, %v2081
    %v2083 = vrot.slane %v2009, 5
    %v2084 = vrot.slane %v2083, 4
    %v2085 = vrot.slane %v2010, 5
    %v2086 = vsel %vm949, %v2084, %v2085
    %v2087 = vrot.slane %v2011, 5
    %v2088 = vrot.slane %v2087, 4
    %v2089 = vrot.slane %v2012, 5
    %v2090 = vsel %vm949, %v2088, %v2089
    %v2091 = vrot.slane %v2013, 5
    %v2092 = vrot.slane %v2091, 4
    %v2093 = vrot.slane %v2014, 5
    %v2094 = vsel %vm949, %v2092, %v2093
    %v2095 = vrot.slane %v2015, 5
    %v2096 = vrot.slane %v2095, 4
    %v2097 = vrot.slane %v2016, 5
    %v2098 = vsel %vm949, %v2096, %v2097
    %v2099 = vrot.slane %v2017, 5
    %v2100 = vrot.slane %v2099, 4
    %v2101 = vrot.slane %v2018, 5
    %v2102 = vsel %vm949, %v2100, %v2101
    %v2103 = vrot.slane %v2019, 5
    %v2104 = vrot.slane %v2103, 4
    %v2105 = vrot.slane %v2020, 5
    %v2106 = vsel %vm949, %v2104, %v2105
    %v2107 = vrot.slane %v2021, 5
    %v2108 = vrot.slane %v2107, 4
    %v2109 = vrot.slane %v2022, 5
    %v2110 = vsel %vm949, %v2108, %v2109
    %v2111 = vrot.slane %v2023, 5
    %v2112 = vrot.slane %v2111, 4
    %v2113 = vrot.slane %v2024, 5
    %v2114 = vsel %vm949, %v2112, %v2113
    %v2115 = vrot.slane %v2025, 5
    %v2116 = vrot.slane %v2115, 4
    %v2117 = vrot.slane %v2026, 5
    %v2118 = vsel %vm949, %v2116, %v2117
    %v2119 = vrot.slane %v2027, 5
    %v2120 = vrot.slane %v2119, 4
    %v2121 = vrot.slane %v2028, 5
    %v2122 = vsel %vm949, %v2120, %v2121
    %v2123 = vrot.slane %v2029, 5
    %v2124 = vrot.slane %v2123, 4
    %v2125 = vrot.slane %v2030, 5
    %v2126 = vsel %vm949, %v2124, %v2125
    %v2127 = vunpack.c.l.b16 %v2066
    %v2128 = vunpack.c.l.b16 %v2070
    %v2129 = vunpack.c.l.b16 %v2074
    %v2130 = vunpack.c.l.b16 %v2078
    %v2131 = vunpack.c.l.b16 %v2082
    %v2132 = vunpack.c.l.b16 %v2086
    %v2133 = vunpack.c.l.b16 %v2090
    %v2134 = vunpack.c.l.b16 %v2094
    %v2135 = vunpack.c.l.b16 %v2098
    %v2136 = vunpack.c.l.b16 %v2102
    %v2137 = vunpack.c.l.b16 %v2106
    %v2138 = vunpack.c.l.b16 %v2110
    %v2139 = vunpack.c.l.b16 %v2114
    %v2140 = vunpack.c.l.b16 %v2118
    %v2141 = vunpack.c.l.b16 %v2122
    %v2142 = vunpack.c.l.b16 %v2126
    %v2143 = vpack.c.b16 %v2128, %v2127
    %v2144 = vpack.c.b16 %v2130, %v2129
    %v2145 = vpack.c.b16 %v2132, %v2131
    %v2146 = vpack.c.b16 %v2134, %v2133
    %v2147 = vpack.c.b16 %v2136, %v2135
    %v2148 = vpack.c.b16 %v2138, %v2137
    %v2149 = vpack.c.b16 %v2140, %v2139
    %v2150 = vpack.c.b16 %v2142, %v2141
    %2159 = vst.msk [vmem:[#allocation3 + $0x20] sm:$0xff] %vm842, %v2143
    %2160 = vst.msk [vmem:[#allocation3 + $0x48] sm:$0xff] %vm842, %v2144
    %2161 = vst.msk [vmem:[#allocation3 + $0x70] sm:$0xff] %vm842, %v2145
    %2162 = vst.msk [vmem:[#allocation3 + $0x98] sm:$0xff] %vm842, %v2146
    %2163 = vst.msk [vmem:[#allocation3 + $0xc0] sm:$0xff] %vm842, %v2147
    %2164 = vst.msk [vmem:[#allocation3 + $0xe8] sm:$0xff] %vm842, %v2148
    %2165 = vst.msk [vmem:[#allocation3 + $0x110] sm:$0xff] %vm842, %v2149
    %2166 = vst.msk [vmem:[#allocation3 + $0x138] sm:$0xff] %vm842, %v2150
    %v2167 = vld [vmem:[#allocation3] sm:$0xff]
    %v2168 = vld [vmem:[#allocation3 + $0x8] sm:$0xff]
    %v2169 = vld [vmem:[#allocation3 + $0x10] sm:$0xff]
    %v2170 = vld [vmem:[#allocation3 + $0x18] sm:$0xff]
    %v2171 = vld [vmem:[#allocation3 + $0x20] sm:$0xff]
    %v2172 = vld [vmem:[#allocation3 + $0x28] sm:$0xff]
    %v2173 = vld [vmem:[#allocation3 + $0x30] sm:$0xff]
    %v2174 = vld [vmem:[#allocation3 + $0x38] sm:$0xff]
    %v2175 = vld [vmem:[#allocation3 + $0x40] sm:$0xff]
    %v2176 = vld [vmem:[#allocation3 + $0x48] sm:$0xff]
    %v2177 = vld [vmem:[#allocation3 + $0x50] sm:$0xff]
    %v2178 = vld [vmem:[#allocation3 + $0x58] sm:$0xff]
    %v2179 = vld [vmem:[#allocation3 + $0x60] sm:$0xff]
    %v2180 = vld [vmem:[#allocation3 + $0x68] sm:$0xff]
    %v2181 = vld [vmem:[#allocation3 + $0x70] sm:$0xff]
    %v2182 = vld [vmem:[#allocation3 + $0x78] sm:$0xff]
    %v2183 = vld [vmem:[#allocation3 + $0x80] sm:$0xff]
    %v2184 = vld [vmem:[#allocation3 + $0x88] sm:$0xff]
    %v2185 = vld [vmem:[#allocation3 + $0x90] sm:$0xff]
    %v2186 = vld [vmem:[#allocation3 + $0x98] sm:$0xff]
    %v2187 = vld [vmem:[#allocation3 + $0xa0] sm:$0xff]
    %v2188 = vld [vmem:[#allocation3 + $0xa8] sm:$0xff]
    %v2189 = vld [vmem:[#allocation3 + $0xb0] sm:$0xff]
    %v2190 = vld [vmem:[#allocation3 + $0xb8] sm:$0xff]
    %v2191 = vld [vmem:[#allocation3 + $0xc0] sm:$0xff]
    %v2192 = vld [vmem:[#allocation3 + $0xc8] sm:$0xff]
    %v2193 = vld [vmem:[#allocation3 + $0xd0] sm:$0xff]
    %v2194 = vld [vmem:[#allocation3 + $0xd8] sm:$0xff]
    %v2195 = vld [vmem:[#allocation3 + $0xe0] sm:$0xff]
    %v2196 = vld [vmem:[#allocation3 + $0xe8] sm:$0xff]
    %v2197 = vld [vmem:[#allocation3 + $0xf0] sm:$0xff]
    %v2198 = vld [vmem:[#allocation3 + $0xf8] sm:$0xff]
    %v2199 = vld [vmem:[#allocation3 + $0x100] sm:$0xff]
    %v2200 = vld [vmem:[#allocation3 + $0x108] sm:$0xff]
    %v2201 = vld [vmem:[#allocation3 + $0x110] sm:$0xff]
    %v2202 = vld [vmem:[#allocation3 + $0x118] sm:$0xff]
    %v2203 = vld [vmem:[#allocation3 + $0x120] sm:$0xff]
    %v2204 = vld [vmem:[#allocation3 + $0x128] sm:$0xff]
    %v2205 = vld [vmem:[#allocation3 + $0x130] sm:$0xff]
    %v2206 = vld [vmem:[#allocation3 + $0x138] sm:$0xff]
    %v2207 = vld [vmem:[%s1] sm:$0xf]
    %v2208 = vld [vmem:[%s1 + $0x4] sm:$0xf]
    %v2209 = vld [vmem:[%s1 + $0x8] sm:$0xf]
    %v2210 = vld [vmem:[%s1 + $0xc] sm:$0xf]
    %v2211 = vld [vmem:[%s1 + $0x10] sm:$0xf]
    %v2212 = vld [vmem:[%s1 + $0x14] sm:$0xf]
    %v2213 = vld [vmem:[%s1 + $0x18] sm:$0xf]
    %v2214 = vld [vmem:[%s1 + $0x1c] sm:$0xf]
    %v2215 = vld [vmem:[%s1 + $0x20] sm:$0xf]
    %v2216 = vld [vmem:[%s1 + $0x24] sm:$0xf]
    %v2217 = vld [vmem:[%s1 + $0x28] sm:$0xf]
    %v2218 = vld [vmem:[%s1 + $0x2c] sm:$0xf]
    %v2219 = vld [vmem:[%s1 + $0x30] sm:$0xf]
    %v2220 = vld [vmem:[%s1 + $0x34] sm:$0xf]
    %v2221 = vld [vmem:[%s1 + $0x38] sm:$0xf]
    %v2222 = vld [vmem:[%s1 + $0x3c] sm:$0xf]
    %v2223 = vld [vmem:[%s1 + $0x40] sm:$0xf]
    %v2224 = vld [vmem:[%s1 + $0x44] sm:$0xf]
    %v2225 = vld [vmem:[%s1 + $0x48] sm:$0xf]
    %v2226 = vld [vmem:[%s1 + $0x4c] sm:$0xf]
    %v2227 = vld [vmem:[%s1 + $0x50] sm:$0xf]
    %v2228 = vld [vmem:[%s1 + $0x54] sm:$0xf]
    %v2229 = vld [vmem:[%s1 + $0x58] sm:$0xf]
    %v2230 = vld [vmem:[%s1 + $0x5c] sm:$0xf]
    %v2231 = vld [vmem:[%s1 + $0x60] sm:$0xf]
    %v2232 = vld [vmem:[%s1 + $0x64] sm:$0xf]
    %v2233 = vld [vmem:[%s1 + $0x68] sm:$0xf]
    %v2234 = vld [vmem:[%s1 + $0x6c] sm:$0xf]
    %v2235 = vld [vmem:[%s1 + $0x70] sm:$0xf]
    %v2236 = vld [vmem:[%s1 + $0x74] sm:$0xf]
    %v2237 = vld [vmem:[%s1 + $0x78] sm:$0xf]
    %v2238 = vld [vmem:[%s1 + $0x7c] sm:$0xf]
    %v2239 = vld [vmem:[%s1 + $0x80] sm:$0xf]
    %v2240 = vld [vmem:[%s1 + $0x84] sm:$0xf]
    %v2241 = vld [vmem:[%s1 + $0x88] sm:$0xf]
    %v2242 = vld [vmem:[%s1 + $0x8c] sm:$0xf]
    %v2243 = vld [vmem:[%s1 + $0x90] sm:$0xf]
    %v2244 = vld [vmem:[%s1 + $0x94] sm:$0xf]
    %v2245 = vld [vmem:[%s1 + $0x98] sm:$0xf]
    %v2246 = vld [vmem:[%s1 + $0x9c] sm:$0xf]
    %v2247 = vld [vmem:[%s1 + $0xa0] sm:$0xf]
    %v2248 = vld [vmem:[%s1 + $0xa4] sm:$0xf]
    %v2249 = vld [vmem:[%s1 + $0xa8] sm:$0xf]
    %v2250 = vld [vmem:[%s1 + $0xac] sm:$0xf]
    %v2251 = vld [vmem:[%s1 + $0xb0] sm:$0xf]
    %v2252 = vld [vmem:[%s1 + $0xb4] sm:$0xf]
    %v2253 = vld [vmem:[%s1 + $0xb8] sm:$0xf]
    %v2254 = vld [vmem:[%s1 + $0xbc] sm:$0xf]
    %v2255 = vld [vmem:[%s1 + $0xc0] sm:$0xf]
    %v2256 = vld [vmem:[%s1 + $0xc4] sm:$0xf]
    %v2257 = vld [vmem:[%s1 + $0xc8] sm:$0xf]
    %v2258 = vld [vmem:[%s1 + $0xcc] sm:$0xf]
    %v2259 = vld [vmem:[%s1 + $0xd0] sm:$0xf]
    %v2260 = vld [vmem:[%s1 + $0xd4] sm:$0xf]
    %v2261 = vld [vmem:[%s1 + $0xd8] sm:$0xf]
    %v2262 = vld [vmem:[%s1 + $0xdc] sm:$0xf]
    %v2263 = vld [vmem:[%s1 + $0xe0] sm:$0xf]
    %v2264 = vld [vmem:[%s1 + $0xe4] sm:$0xf]
    %v2265 = vld [vmem:[%s1 + $0xe8] sm:$0xf]
    %v2266 = vld [vmem:[%s1 + $0xec] sm:$0xf]
    %v2267 = vld [vmem:[%s1 + $0xf0] sm:$0xf]
    %v2268 = vld [vmem:[%s1 + $0xf4] sm:$0xf]
    %v2269 = vld [vmem:[%s1 + $0xf8] sm:$0xf]
    %v2270 = vld [vmem:[%s1 + $0xfc] sm:$0xf]
    %v2271 = vld [vmem:[%s1 + $0x100] sm:$0xf]
    %v2272 = vld [vmem:[%s1 + $0x104] sm:$0xf]
    %v2273 = vld [vmem:[%s1 + $0x108] sm:$0xf]
    %v2274 = vld [vmem:[%s1 + $0x10c] sm:$0xf]
    %v2275 = vld [vmem:[%s1 + $0x110] sm:$0xf]
    %v2276 = vld [vmem:[%s1 + $0x114] sm:$0xf]
    %v2277 = vld [vmem:[%s1 + $0x118] sm:$0xf]
    %v2278 = vld [vmem:[%s1 + $0x11c] sm:$0xf]
    %v2279 = vld [vmem:[%s2] sm:$0x1]
    %v2281 = vlaneseq
    %v2282 = vshrl.u32 %v2281, 7
    %v2283 = vsub.s32 0, %v2282
    %v2284 = vrot.slane %v2279, %v2283
    %v2358 = vunpack.c.l.b16 %v2207
    %v2359 = vunpack.c.l.b16 %v2208
    %v2360 = vunpack.c.l.b16 %v2209
    %v2361 = vunpack.c.l.b16 %v2210
    %v2362 = vunpack.c.l.b16 %v2211
    %v2363 = vunpack.c.l.b16 %v2212
    %v2364 = vunpack.c.l.b16 %v2213
    %v2365 = vunpack.c.l.b16 %v2214
    %v2366 = vunpack.c.l.b16 %v2215
    %v2367 = vunpack.c.l.b16 %v2216
    %v2368 = vunpack.c.l.b16 %v2217
    %v2369 = vunpack.c.l.b16 %v2218
    %v2370 = vunpack.c.l.b16 %v2219
    %v2371 = vunpack.c.l.b16 %v2220
    %v2372 = vunpack.c.l.b16 %v2221
    %v2373 = vunpack.c.l.b16 %v2222
    %v2374 = vunpack.c.l.b16 %v2223
    %v2375 = vunpack.c.l.b16 %v2224
    %v2376 = vunpack.c.l.b16 %v2225
    %v2377 = vunpack.c.l.b16 %v2226
    %v2378 = vunpack.c.l.b16 %v2227
    %v2379 = vunpack.c.l.b16 %v2228
    %v2380 = vunpack.c.l.b16 %v2229
    %v2381 = vunpack.c.l.b16 %v2230
    %v2382 = vunpack.c.l.b16 %v2231
    %v2383 = vunpack.c.l.b16 %v2232
    %v2384 = vunpack.c.l.b16 %v2233
    %v2385 = vunpack.c.l.b16 %v2234
    %v2386 = vunpack.c.l.b16 %v2235
    %v2387 = vunpack.c.l.b16 %v2236
    %v2388 = vunpack.c.l.b16 %v2237
    %v2389 = vunpack.c.l.b16 %v2238
    %v2390 = vunpack.c.l.b16 %v2239
    %v2391 = vunpack.c.l.b16 %v2240
    %v2392 = vunpack.c.l.b16 %v2241
    %v2393 = vunpack.c.l.b16 %v2242
    %v2394 = vunpack.c.l.b16 %v2243
    %v2395 = vunpack.c.l.b16 %v2244
    %v2396 = vunpack.c.l.b16 %v2245
    %v2397 = vunpack.c.l.b16 %v2246
    %v2398 = vunpack.c.l.b16 %v2247
    %v2399 = vunpack.c.l.b16 %v2248
    %v2400 = vunpack.c.l.b16 %v2249
    %v2401 = vunpack.c.l.b16 %v2250
    %v2402 = vunpack.c.l.b16 %v2251
    %v2403 = vunpack.c.l.b16 %v2252
    %v2404 = vunpack.c.l.b16 %v2253
    %v2405 = vunpack.c.l.b16 %v2254
    %v2406 = vunpack.c.l.b16 %v2255
    %v2407 = vunpack.c.l.b16 %v2256
    %v2408 = vunpack.c.l.b16 %v2257
    %v2409 = vunpack.c.l.b16 %v2258
    %v2410 = vunpack.c.l.b16 %v2259
    %v2411 = vunpack.c.l.b16 %v2260
    %v2412 = vunpack.c.l.b16 %v2261
    %v2413 = vunpack.c.l.b16 %v2262
    %v2414 = vunpack.c.l.b16 %v2263
    %v2415 = vunpack.c.l.b16 %v2264
    %v2416 = vunpack.c.l.b16 %v2265
    %v2417 = vunpack.c.l.b16 %v2266
    %v2418 = vunpack.c.l.b16 %v2267
    %v2419 = vunpack.c.l.b16 %v2268
    %v2420 = vunpack.c.l.b16 %v2269
    %v2421 = vunpack.c.l.b16 %v2270
    %v2422 = vunpack.c.l.b16 %v2271
    %v2423 = vunpack.c.l.b16 %v2272
    %v2424 = vunpack.c.l.b16 %v2273
    %v2425 = vunpack.c.l.b16 %v2274
    %v2426 = vunpack.c.l.b16 %v2275
    %v2427 = vunpack.c.l.b16 %v2276
    %v2428 = vunpack.c.l.b16 %v2277
    %v2429 = vunpack.c.l.b16 %v2278
    %v2430 = vpack.c.b16 %v2359, %v2358
    %v2431 = vpack.c.b16 %v2361, %v2360
    %v2432 = vpack.c.b16 %v2363, %v2362
    %v2433 = vpack.c.b16 %v2365, %v2364
    %v2434 = vpack.c.b16 %v2367, %v2366
    %v2435 = vpack.c.b16 %v2369, %v2368
    %v2436 = vpack.c.b16 %v2371, %v2370
    %v2437 = vpack.c.b16 %v2373, %v2372
    %v2438 = vpack.c.b16 %v2375, %v2374
    %v2439 = vpack.c.b16 %v2377, %v2376
    %v2440 = vpack.c.b16 %v2379, %v2378
    %v2441 = vpack.c.b16 %v2381, %v2380
    %v2442 = vpack.c.b16 %v2383, %v2382
    %v2443 = vpack.c.b16 %v2385, %v2384
    %v2444 = vpack.c.b16 %v2387, %v2386
    %v2445 = vpack.c.b16 %v2389, %v2388
    %v2446 = vpack.c.b16 %v2391, %v2390
    %v2447 = vpack.c.b16 %v2393, %v2392
    %v2448 = vpack.c.b16 %v2395, %v2394
    %v2449 = vpack.c.b16 %v2397, %v2396
    %v2450 = vpack.c.b16 %v2399, %v2398
    %v2451 = vpack.c.b16 %v2401, %v2400
    %v2452 = vpack.c.b16 %v2403, %v2402
    %v2453 = vpack.c.b16 %v2405, %v2404
    %v2454 = vpack.c.b16 %v2407, %v2406
    %v2455 = vpack.c.b16 %v2409, %v2408
    %v2456 = vpack.c.b16 %v2411, %v2410
    %v2457 = vpack.c.b16 %v2413, %v2412
    %v2458 = vpack.c.b16 %v2415, %v2414
    %v2459 = vpack.c.b16 %v2417, %v2416
    %v2460 = vpack.c.b16 %v2419, %v2418
    %v2461 = vpack.c.b16 %v2421, %v2420
    %v2462 = vpack.c.b16 %v2423, %v2422
    %v2463 = vpack.c.b16 %v2425, %v2424
    %v2464 = vpack.c.b16 %v2427, %v2426
    %v2465 = vpack.c.b16 %v2429, %v2428
    %v2503 = vsel %vm842, %v2171, 0
    %v2506 = vsel %vm842, %v2176, 0
    %v2509 = vsel %vm842, %v2181, 0
    %v2512 = vsel %vm842, %v2186, 0
    %v2515 = vsel %vm842, %v2191, 0
    %v2518 = vsel %vm842, %v2196, 0
    %v2521 = vsel %vm842, %v2201, 0
    %v2524 = vsel %vm842, %v2206, 0
    %2526 = vmatprep.subr.bf16.mxu0 0
    %2527 = vmatpush1.bf16.msra.mxu0 %v2430
    %2528 = vmatprep.subr.bf16.mxu0 0
    %2529 = vmatpush1.bf16.msra.mxu0 %v2431
    %2530 = vmatprep.subr.bf16.mxu0 0
    %2531 = vmatpush1.bf16.msra.mxu0 %v2432
    %2532 = vmatprep.subr.bf16.mxu0 0
    %2533 = vmatpush1.bf16.msra.mxu0 %v2433
    %2534 = vmatprep.subr.bf16.mxu0 0
    %2535 = vmatpush1.bf16.msra.mxu0 %v2434
    %2536 = vmatprep.subr.bf16.mxu0 0
    %2537 = vmatpush1.bf16.msra.mxu0 %v2435
    %2538 = vmatprep.subr.bf16.mxu0 0
    %2539 = vmatpush1.bf16.msra.mxu0 %v2436
    %2540 = vmatprep.subr.bf16.mxu0 0
    %2541 = vmatpush1.bf16.msra.mxu0 %v2437
    %2542 = vmatprep.subr.bf16.mxu0 0
    %2543 = vmatpush1.bf16.msra.mxu0 %v2438
    %2544 = vmatprep.subr.bf16.mxu0 0
    %2545 = vmatpush1.bf16.msra.mxu0 %v2439
    %2546 = vmatprep.subr.bf16.mxu0 0
    %2547 = vmatpush1.bf16.msra.mxu0 %v2440
    %2548 = vmatprep.subr.bf16.mxu0 0
    %2549 = vmatpush1.bf16.msra.mxu0 %v2441
    %2550 = vmatprep.subr.bf16.mxu0 0
    %2551 = vmatpush1.bf16.msra.mxu0 %v2442
    %2552 = vmatprep.subr.bf16.mxu0 0
    %2553 = vmatpush1.bf16.msra.mxu0 %v2443
    %2554 = vmatprep.subr.bf16.mxu0 0
    %2555 = vmatpush1.bf16.msra.mxu0 %v2444
    %2556 = vmatprep.subr.bf16.mxu0 0
    %2557 = vmatpush1.bf16.msra.mxu0 %v2445
    %2558 = vmatprep.mubr.bf16.mxu0 %v2168
    %2559 = vmatmul.mubr.bf16.gmra.mrb[0].mxu0 %v2167
    %v2560 = vpop.f32.mrb[0].mxu0
    %v2561 = vadd.f32 %v2284, %v2560
    %v2562 = vpop.f32.mrb[0].mxu0
    %v2563 = vpop.f32.mrb[0].mxu0
    %v2564 = vadd.f32 %v2284, %v2563
    %v2565 = vpop.f32.mrb[0].mxu0
    %2566 = vmatprep.mubr.bf16.mxu0 %v2173
    %2567 = vmatmul.mubr.bf16.gmra.mrb[0].mxu0 %v2172
    %v2568 = vpop.f32.mrb[0].mxu0
    %v2569 = vadd.f32 %v2284, %v2568
    %v2570 = vpop.f32.mrb[0].mxu0
    %v2571 = vpop.f32.mrb[0].mxu0
    %v2572 = vadd.f32 %v2284, %v2571
    %v2573 = vpop.f32.mrb[0].mxu0
    %2574 = vmatprep.mubr.bf16.mxu0 %v2178
    %2575 = vmatmul.mubr.bf16.gmra.mrb[0].mxu0 %v2177
    %v2576 = vpop.f32.mrb[0].mxu0
    %v2577 = vadd.f32 %v2284, %v2576
    %v2578 = vpop.f32.mrb[0].mxu0
    %v2579 = vpop.f32.mrb[0].mxu0
    %v2580 = vadd.f32 %v2284, %v2579
    %v2581 = vpop.f32.mrb[0].mxu0
    %2582 = vmatprep.mubr.bf16.mxu0 %v2183
    %2583 = vmatmul.mubr.bf16.gmra.mrb[0].mxu0 %v2182
    %v2584 = vpop.f32.mrb[0].mxu0
    %v2585 = vadd.f32 %v2284, %v2584
    %v2586 = vpop.f32.mrb[0].mxu0
    %v2587 = vpop.f32.mrb[0].mxu0
    %v2588 = vadd.f32 %v2284, %v2587
    %v2589 = vpop.f32.mrb[0].mxu0
    %2590 = vmatprep.mubr.bf16.mxu0 %v2188
    %2591 = vmatmul.mubr.bf16.gmra.mrb[0].mxu0 %v2187
    %v2592 = vpop.f32.mrb[0].mxu0
    %v2593 = vadd.f32 %v2284, %v2592
    %v2594 = vpop.f32.mrb[0].mxu0
    %v2595 = vpop.f32.mrb[0].mxu0
    %v2596 = vadd.f32 %v2284, %v2595
    %v2597 = vpop.f32.mrb[0].mxu0
    %2598 = vmatprep.mubr.bf16.mxu0 %v2193
    %2599 = vmatmul.mubr.bf16.gmra.mrb[0].mxu0 %v2192
    %v2600 = vpop.f32.mrb[0].mxu0
    %v2601 = vadd.f32 %v2284, %v2600
    %v2602 = vpop.f32.mrb[0].mxu0
    %v2603 = vpop.f32.mrb[0].mxu0
    %v2604 = vadd.f32 %v2284, %v2603
    %v2605 = vpop.f32.mrb[0].mxu0
    %2606 = vmatprep.mubr.bf16.mxu0 %v2198
    %2607 = vmatmul.mubr.bf16.gmra.mrb[0].mxu0 %v2197
    %v2608 = vpop.f32.mrb[0].mxu0
    %v2609 = vadd.f32 %v2284, %v2608
    %v2610 = vpop.f32.mrb[0].mxu0
    %v2611 = vpop.f32.mrb[0].mxu0
    %v2612 = vadd.f32 %v2284, %v2611
    %v2613 = vpop.f32.mrb[0].mxu0
    %2614 = vmatprep.mubr.bf16.mxu0 %v2203
    %2615 = vmatmul.mubr.bf16.gmra.mrb[0].mxu0 %v2202
    %v2616 = vpop.f32.mrb[0].mxu0
    %v2617 = vadd.f32 %v2284, %v2616
    %v2618 = vpop.f32.mrb[0].mxu0
    %v2619 = vpop.f32.mrb[0].mxu0
    %v2620 = vadd.f32 %v2284, %v2619
    %v2621 = vpop.f32.mrb[0].mxu0
    %2622 = vdwg.mxu0
    %2623 = vmatprep.subr.bf16.mxu0 0
    %2624 = vmatpush1.bf16.msra.mxu0 %v2446
    %2625 = vmatprep.subr.bf16.mxu0 0
    %2626 = vmatpush1.bf16.msra.mxu0 %v2447
    %2627 = vmatprep.subr.bf16.mxu0 0
    %2628 = vmatpush1.bf16.msra.mxu0 %v2448
    %2629 = vmatprep.subr.bf16.mxu0 0
    %2630 = vmatpush1.bf16.msra.mxu0 %v2449
    %2631 = vmatprep.subr.bf16.mxu0 0
    %2632 = vmatpush1.bf16.msra.mxu0 %v2450
    %2633 = vmatprep.subr.bf16.mxu0 0
    %2634 = vmatpush1.bf16.msra.mxu0 %v2451
    %2635 = vmatprep.subr.bf16.mxu0 0
    %2636 = vmatpush1.bf16.msra.mxu0 %v2452
    %2637 = vmatprep.subr.bf16.mxu0 0
    %2638 = vmatpush1.bf16.msra.mxu0 %v2453
    %2639 = vmatprep.subr.bf16.mxu0 0
    %2640 = vmatpush1.bf16.msra.mxu0 %v2454
    %2641 = vmatprep.subr.bf16.mxu0 0
    %2642 = vmatpush1.bf16.msra.mxu0 %v2455
    %2643 = vmatprep.subr.bf16.mxu0 0
    %2644 = vmatpush1.bf16.msra.mxu0 %v2456
    %2645 = vmatprep.subr.bf16.mxu0 0
    %2646 = vmatpush1.bf16.msra.mxu0 %v2457
    %2647 = vmatprep.subr.bf16.mxu0 0
    %2648 = vmatpush1.bf16.msra.mxu0 %v2458
    %2649 = vmatprep.subr.bf16.mxu0 0
    %2650 = vmatpush1.bf16.msra.mxu0 %v2459
    %2651 = vmatprep.subr.bf16.mxu0 0
    %2652 = vmatpush1.bf16.msra.mxu0 %v2460
    %2653 = vmatprep.subr.bf16.mxu0 0
    %2654 = vmatpush1.bf16.msra.mxu0 %v2461
    %2655 = vmatprep.mubr.bf16.mxu0 %v2170
    %2656 = vmatmul.mubr.bf16.gmra.mrb[0].mxu0 %v2169
    %v2657 = vpop.f32.mrb[0].mxu0
    %v2658 = vadd.f32 %v2561, %v2657
    %v2659 = vpop.f32.mrb[0].mxu0
    %v2660 = vpop.f32.mrb[0].mxu0
    %v2661 = vadd.f32 %v2564, %v2660
    %v2662 = vpop.f32.mrb[0].mxu0
    %2663 = vmatprep.mubr.bf16.mxu0 %v2175
    %2664 = vmatmul.mubr.bf16.gmra.mrb[0].mxu0 %v2174
    %v2665 = vpop.f32.mrb[0].mxu0
    %v2666 = vadd.f32 %v2569, %v2665
    %v2667 = vpop.f32.mrb[0].mxu0
    %v2668 = vpop.f32.mrb[0].mxu0
    %v2669 = vadd.f32 %v2572, %v2668
    %v2670 = vpop.f32.mrb[0].mxu0
    %2671 = vmatprep.mubr.bf16.mxu0 %v2180
    %2672 = vmatmul.mubr.bf16.gmra.mrb[0].mxu0 %v2179
    %v2673 = vpop.f32.mrb[0].mxu0
    %v2674 = vadd.f32 %v2577, %v2673
    %v2675 = vpop.f32.mrb[0].mxu0
    %v2676 = vpop.f32.mrb[0].mxu0
    %v2677 = vadd.f32 %v2580, %v2676
    %v2678 = vpop.f32.mrb[0].mxu0
    %2679 = vmatprep.mubr.bf16.mxu0 %v2185
    %2680 = vmatmul.mubr.bf16.gmra.mrb[0].mxu0 %v2184
    %v2681 = vpop.f32.mrb[0].mxu0
    %v2682 = vadd.f32 %v2585, %v2681
    %v2683 = vpop.f32.mrb[0].mxu0
    %v2684 = vpop.f32.mrb[0].mxu0
    %v2685 = vadd.f32 %v2588, %v2684
    %v2686 = vpop.f32.mrb[0].mxu0
    %2687 = vmatprep.mubr.bf16.mxu0 %v2190
    %2688 = vmatmul.mubr.bf16.gmra.mrb[0].mxu0 %v2189
    %v2689 = vpop.f32.mrb[0].mxu0
    %v2690 = vadd.f32 %v2593, %v2689
    %v2691 = vpop.f32.mrb[0].mxu0
    %v2692 = vpop.f32.mrb[0].mxu0
    %v2693 = vadd.f32 %v2596, %v2692
    %v2694 = vpop.f32.mrb[0].mxu0
    %2695 = vmatprep.mubr.bf16.mxu0 %v2195
    %2696 = vmatmul.mubr.bf16.gmra.mrb[0].mxu0 %v2194
    %v2697 = vpop.f32.mrb[0].mxu0
    %v2698 = vadd.f32 %v2601, %v2697
    %v2699 = vpop.f32.mrb[0].mxu0
    %v2700 = vpop.f32.mrb[0].mxu0
    %v2701 = vadd.f32 %v2604, %v2700
    %v2702 = vpop.f32.mrb[0].mxu0
    %2703 = vmatprep.mubr.bf16.mxu0 %v2200
    %2704 = vmatmul.mubr.bf16.gmra.mrb[0].mxu0 %v2199
    %v2705 = vpop.f32.mrb[0].mxu0
    %v2706 = vadd.f32 %v2609, %v2705
    %v2707 = vpop.f32.mrb[0].mxu0
    %v2708 = vpop.f32.mrb[0].mxu0
    %v2709 = vadd.f32 %v2612, %v2708
    %v2710 = vpop.f32.mrb[0].mxu0
    %2711 = vmatprep.mubr.bf16.mxu0 %v2205
    %2712 = vmatmul.mubr.bf16.gmra.mrb[0].mxu0 %v2204
    %v2713 = vpop.f32.mrb[0].mxu0
    %v2714 = vadd.f32 %v2617, %v2713
    %v2715 = vpop.f32.mrb[0].mxu0
    %v2716 = vpop.f32.mrb[0].mxu0
    %v2717 = vadd.f32 %v2620, %v2716
    %v2718 = vpop.f32.mrb[0].mxu0
    %2719 = vdwg.mxu0
    %2720 = vmatprep.subr.bf16.mxu0 0
    %2721 = vmatpush1.bf16.msra.mxu0 %v2462
    %2722 = vmatprep.subr.bf16.mxu0 0
    %2723 = vmatpush1.bf16.msra.mxu0 %v2463
    %2724 = vmatprep.subr.bf16.mxu0 0
    %2725 = vmatpush1.bf16.msra.mxu0 %v2464
    %2726 = vmatprep.subr.bf16.mxu0 0
    %2727 = vmatpush1.bf16.msra.mxu0 %v2465
    %2728 = vmatprep.subr.bf16.mxu0 0
    %2729 = vmatpush1.bf16.msra.mxu0 0
    %2730 = vmatprep.subr.bf16.mxu0 0
    %2731 = vmatpush1.bf16.msra.mxu0 0
    %2732 = vmatprep.subr.bf16.mxu0 0
    %2733 = vmatpush1.bf16.msra.mxu0 0
    %2734 = vmatprep.subr.bf16.mxu0 0
    %2735 = vmatpush1.bf16.msra.mxu0 0
    %2736 = vmatprep.subr.bf16.mxu0 0
    %2737 = vmatpush1.bf16.msra.mxu0 0
    %2738 = vmatprep.subr.bf16.mxu0 0
    %2739 = vmatpush1.bf16.msra.mxu0 0
    %2740 = vmatprep.subr.bf16.mxu0 0
    %2741 = vmatpush1.bf16.msra.mxu0 0
    %2742 = vmatprep.subr.bf16.mxu0 0
    %2743 = vmatpush1.bf16.msra.mxu0 0
    %2744 = vmatprep.subr.bf16.mxu0 0
    %2745 = vmatpush1.bf16.msra.mxu0 0
    %2746 = vmatprep.subr.bf16.mxu0 0
    %2747 = vmatpush1.bf16.msra.mxu0 0
    %2748 = vmatprep.subr.bf16.mxu0 0
    %2749 = vmatpush1.bf16.msra.mxu0 0
    %2750 = vmatprep.subr.bf16.mxu0 0
    %2751 = vmatpush1.bf16.msra.mxu0 0
    %2752 = vmatprep.mubr.bf16.mxu0 0
    %2753 = vmatmul.mubr.bf16.gmra.mrb[0].mxu0 %v2503
    %v2754 = vpop.f32.mrb[0].mxu0
    %v2755 = vadd.f32 %v2658, %v2754
    %v2756 = vpop.f32.mrb[0].mxu0
    %v2757 = vpop.f32.mrb[0].mxu0
    %v2758 = vadd.f32 %v2661, %v2757
    %v2759 = vpop.f32.mrb[0].mxu0
    %2760 = vmatprep.mubr.bf16.mxu0 0
    %2761 = vmatmul.mubr.bf16.gmra.mrb[0].mxu0 %v2506
    %v2762 = vpop.f32.mrb[0].mxu0
    %v2763 = vadd.f32 %v2666, %v2762
    %v2764 = vpop.f32.mrb[0].mxu0
    %v2765 = vpop.f32.mrb[0].mxu0
    %v2766 = vadd.f32 %v2669, %v2765
    %v2767 = vpop.f32.mrb[0].mxu0
    %2768 = vmatprep.mubr.bf16.mxu0 0
    %2769 = vmatmul.mubr.bf16.gmra.mrb[0].mxu0 %v2509
    %v2770 = vpop.f32.mrb[0].mxu0
    %v2771 = vadd.f32 %v2674, %v2770
    %v2772 = vpop.f32.mrb[0].mxu0
    %v2773 = vpop.f32.mrb[0].mxu0
    %v2774 = vadd.f32 %v2677, %v2773
    %v2775 = vpop.f32.mrb[0].mxu0
    %2776 = vmatprep.mubr.bf16.mxu0 0
    %2777 = vmatmul.mubr.bf16.gmra.mrb[0].mxu0 %v2512
    %v2778 = vpop.f32.mrb[0].mxu0
    %v2779 = vadd.f32 %v2682, %v2778
    %v2780 = vpop.f32.mrb[0].mxu0
    %v2781 = vpop.f32.mrb[0].mxu0
    %v2782 = vadd.f32 %v2685, %v2781
    %v2783 = vpop.f32.mrb[0].mxu0
    %2784 = vmatprep.mubr.bf16.mxu0 0
    %2785 = vmatmul.mubr.bf16.gmra.mrb[0].mxu0 %v2515
    %v2786 = vpop.f32.mrb[0].mxu0
    %v2787 = vadd.f32 %v2690, %v2786
    %v2788 = vpop.f32.mrb[0].mxu0
    %v2789 = vpop.f32.mrb[0].mxu0
    %v2790 = vadd.f32 %v2693, %v2789
    %v2791 = vpop.f32.mrb[0].mxu0
    %2792 = vmatprep.mubr.bf16.mxu0 0
    %2793 = vmatmul.mubr.bf16.gmra.mrb[0].mxu0 %v2518
    %v2794 = vpop.f32.mrb[0].mxu0
    %v2795 = vadd.f32 %v2698, %v2794
    %v2796 = vpop.f32.mrb[0].mxu0
    %v2797 = vpop.f32.mrb[0].mxu0
    %v2798 = vadd.f32 %v2701, %v2797
    %v2799 = vpop.f32.mrb[0].mxu0
    %2800 = vmatprep.mubr.bf16.mxu0 0
    %2801 = vmatmul.mubr.bf16.gmra.mrb[0].mxu0 %v2521
    %v2802 = vpop.f32.mrb[0].mxu0
    %v2803 = vadd.f32 %v2706, %v2802
    %v2804 = vpop.f32.mrb[0].mxu0
    %v2805 = vpop.f32.mrb[0].mxu0
    %v2806 = vadd.f32 %v2709, %v2805
    %v2807 = vpop.f32.mrb[0].mxu0
    %2808 = vmatprep.mubr.bf16.mxu0 0
    %2809 = vmatmul.mubr.bf16.gmra.mrb[0].mxu0 %v2524
    %v2810 = vpop.f32.mrb[0].mxu0
    %v2811 = vadd.f32 %v2714, %v2810
    %v2812 = vpop.f32.mrb[0].mxu0
    %v2813 = vpop.f32.mrb[0].mxu0
    %v2814 = vadd.f32 %v2717, %v2813
    %v2815 = vpop.f32.mrb[0].mxu0
    %2816 = vdwg.mxu0
    %vm2817 = vcmp.ge.f32.partialorder %v2755, 0.0
    %vm2818 = vcmp.ge.f32.partialorder %v2758, 0.0
    %vm2819 = vcmp.ge.f32.partialorder %v2763, 0.0
    %vm2820 = vcmp.ge.f32.partialorder %v2766, 0.0
    %vm2821 = vcmp.ge.f32.partialorder %v2771, 0.0
    %vm2822 = vcmp.ge.f32.partialorder %v2774, 0.0
    %vm2823 = vcmp.ge.f32.partialorder %v2779, 0.0
    %vm2824 = vcmp.ge.f32.partialorder %v2782, 0.0
    %vm2825 = vcmp.ge.f32.partialorder %v2787, 0.0
    %vm2826 = vcmp.ge.f32.partialorder %v2790, 0.0
    %vm2827 = vcmp.ge.f32.partialorder %v2795, 0.0
    %vm2828 = vcmp.ge.f32.partialorder %v2798, 0.0
    %vm2829 = vcmp.ge.f32.partialorder %v2803, 0.0
    %vm2830 = vcmp.ge.f32.partialorder %v2806, 0.0
    %vm2831 = vcmp.ge.f32.partialorder %v2811, 0.0
    %vm2832 = vcmp.ge.f32.partialorder %v2814, 0.0
    %v2833 = vmul.f32 %v2755, 0.01
    %v2834 = vmul.f32 %v2758, 0.01
    %v2835 = vmul.f32 %v2763, 0.01
    %v2836 = vmul.f32 %v2766, 0.01
    %v2837 = vmul.f32 %v2771, 0.01
    %v2838 = vmul.f32 %v2774, 0.01
    %v2839 = vmul.f32 %v2779, 0.01
    %v2840 = vmul.f32 %v2782, 0.01
    %v2841 = vmul.f32 %v2787, 0.01
    %v2842 = vmul.f32 %v2790, 0.01
    %v2843 = vmul.f32 %v2795, 0.01
    %v2844 = vmul.f32 %v2798, 0.01
    %v2845 = vmul.f32 %v2803, 0.01
    %v2846 = vmul.f32 %v2806, 0.01
    %v2847 = vmul.f32 %v2811, 0.01
    %v2848 = vmul.f32 %v2814, 0.01
    %v2849 = vsel %vm2817, %v2755, %v2833
    %v2850 = vsel %vm2818, %v2758, %v2834
    %v2851 = vsel %vm2819, %v2763, %v2835
    %v2852 = vsel %vm2820, %v2766, %v2836
    %v2853 = vsel %vm2821, %v2771, %v2837
    %v2854 = vsel %vm2822, %v2774, %v2838
    %v2855 = vsel %vm2823, %v2779, %v2839
    %v2856 = vsel %vm2824, %v2782, %v2840
    %v2857 = vsel %vm2825, %v2787, %v2841
    %v2858 = vsel %vm2826, %v2790, %v2842
    %v2859 = vsel %vm2827, %v2795, %v2843
    %v2860 = vsel %vm2828, %v2798, %v2844
    %v2861 = vsel %vm2829, %v2803, %v2845
    %v2862 = vsel %vm2830, %v2806, %v2846
    %v2863 = vsel %vm2831, %v2811, %v2847
    %v2864 = vsel %vm2832, %v2814, %v2848
    %v2865 = vsel %vm842, %v2849, 0.0
    %v2866 = vsel %vm842, %v2850, 0.0
    %v2867 = vadd.f32 %v2865, %v2866
    %v2868 = vsel %vm842, %v2851, 0.0
    %v2869 = vadd.f32 %v2867, %v2868
    %v2870 = vsel %vm842, %v2852, 0.0
    %v2871 = vadd.f32 %v2869, %v2870
    %v2872 = vsel %vm842, %v2853, 0.0
    %v2873 = vadd.f32 %v2871, %v2872
    %v2874 = vsel %vm842, %v2854, 0.0
    %v2875 = vadd.f32 %v2873, %v2874
    %v2876 = vsel %vm842, %v2855, 0.0
    %v2877 = vadd.f32 %v2875, %v2876
    %v2878 = vsel %vm842, %v2856, 0.0
    %v2879 = vadd.f32 %v2877, %v2878
    %v2880 = vsel %vm842, %v2857, 0.0
    %v2881 = vadd.f32 %v2879, %v2880
    %v2882 = vsel %vm842, %v2858, 0.0
    %v2883 = vadd.f32 %v2881, %v2882
    %v2884 = vsel %vm842, %v2859, 0.0
    %v2885 = vadd.f32 %v2883, %v2884
    %v2886 = vsel %vm842, %v2860, 0.0
    %v2887 = vadd.f32 %v2885, %v2886
    %v2888 = vsel %vm842, %v2861, 0.0
    %v2889 = vadd.f32 %v2887, %v2888
    %v2890 = vsel %vm842, %v2862, 0.0
    %v2891 = vadd.f32 %v2889, %v2890
    %v2892 = vsel %vm842, %v2863, 0.0
    %v2893 = vadd.f32 %v2891, %v2892
    %v2894 = vsel %vm842, %v2864, 0.0
    %v2895 = vadd.f32 %v2893, %v2894
    %v2896 = vrot.slane %v2895, 4
    %v2897 = vadd.f32 %v2895, %v2896
    %v2898 = vrot.slane %v2897, 2
    %v2899 = vadd.f32 %v2897, %v2898
    %v2900 = vrot.slane %v2899, 1
    %v2901 = vadd.f32 %v2899, %v2900
    %v2902 = vmul.f32 %v2849, %v2849
    %v2903 = vmul.f32 %v2850, %v2850
    %v2904 = vmul.f32 %v2851, %v2851
    %v2905 = vmul.f32 %v2852, %v2852
    %v2906 = vmul.f32 %v2853, %v2853
    %v2907 = vmul.f32 %v2854, %v2854
    %v2908 = vmul.f32 %v2855, %v2855
    %v2909 = vmul.f32 %v2856, %v2856
    %v2910 = vmul.f32 %v2857, %v2857
    %v2911 = vmul.f32 %v2858, %v2858
    %v2912 = vmul.f32 %v2859, %v2859
    %v2913 = vmul.f32 %v2860, %v2860
    %v2914 = vmul.f32 %v2861, %v2861
    %v2915 = vmul.f32 %v2862, %v2862
    %v2916 = vmul.f32 %v2863, %v2863
    %v2917 = vmul.f32 %v2864, %v2864
    %v2918 = vsel %vm842, %v2902, 0.0
    %v2919 = vsel %vm842, %v2903, 0.0
    %v2920 = vadd.f32 %v2918, %v2919
    %v2921 = vsel %vm842, %v2904, 0.0
    %v2922 = vadd.f32 %v2920, %v2921
    %v2923 = vsel %vm842, %v2905, 0.0
    %v2924 = vadd.f32 %v2922, %v2923
    %v2925 = vsel %vm842, %v2906, 0.0
    %v2926 = vadd.f32 %v2924, %v2925
    %v2927 = vsel %vm842, %v2907, 0.0
    %v2928 = vadd.f32 %v2926, %v2927
    %v2929 = vsel %vm842, %v2908, 0.0
    %v2930 = vadd.f32 %v2928, %v2929
    %v2931 = vsel %vm842, %v2909, 0.0
    %v2932 = vadd.f32 %v2930, %v2931
    %v2933 = vsel %vm842, %v2910, 0.0
    %v2934 = vadd.f32 %v2932, %v2933
    %v2935 = vsel %vm842, %v2911, 0.0
    %v2936 = vadd.f32 %v2934, %v2935
    %v2937 = vsel %vm842, %v2912, 0.0
    %v2938 = vadd.f32 %v2936, %v2937
    %v2939 = vsel %vm842, %v2913, 0.0
    %v2940 = vadd.f32 %v2938, %v2939
    %v2941 = vsel %vm842, %v2914, 0.0
    %v2942 = vadd.f32 %v2940, %v2941
    %v2943 = vsel %vm842, %v2915, 0.0
    %v2944 = vadd.f32 %v2942, %v2943
    %v2945 = vsel %vm842, %v2916, 0.0
    %v2946 = vadd.f32 %v2944, %v2945
    %v2947 = vsel %vm842, %v2917, 0.0
    %v2948 = vadd.f32 %v2946, %v2947
    %v2949 = vrot.slane %v2948, 4
    %v2950 = vadd.f32 %v2948, %v2949
    %v2951 = vrot.slane %v2950, 2
    %v2952 = vadd.f32 %v2950, %v2951
    %v2953 = vrot.slane %v2952, 1
    %v2954 = vadd.f32 %v2952, %v2953
    %v2955 = vmul.f32 %v2901, 0.0078125
    %v2956 = vmul.f32 %v2954, 0.0078125
    %v2957 = vmul.f32 %v2955, %v2955
    %v2958 = vsub.f32 %v2956, %v2957
    %v2959 = vmax.f32 %v2958, 0.0
    %v2960 = vld [vmem:[%s5] sm:$0x1]
    %v2961 = vadd.f32 %v2959, 1e-05
    %v2962 = vrsqrt.pop %v2961
    %v2963 = vmul.f32 %v2960, %v2962
    %v2964 = vld [vmem:[%s6] sm:$0x1]
    %v2965 = vmul.f32 %v2955, %v2963
    %v2966 = vsub.f32 %v2964, %v2965
    %v2968 = vlaneseq
    %v2969 = vshrl.u32 %v2968, 7
    %v2970 = vsub.s32 0, %v2969
    %v2971 = vrot.slane %v2963, %v2970
    %v2973 = vmul.f32 %v2849, %v2971
    %v2974 = vmul.f32 %v2850, %v2971
    %v2975 = vmul.f32 %v2851, %v2971
    %v2976 = vmul.f32 %v2852, %v2971
    %v2977 = vmul.f32 %v2853, %v2971
    %v2978 = vmul.f32 %v2854, %v2971
    %v2979 = vmul.f32 %v2855, %v2971
    %v2980 = vmul.f32 %v2856, %v2971
    %v2981 = vmul.f32 %v2857, %v2971
    %v2982 = vmul.f32 %v2858, %v2971
    %v2983 = vmul.f32 %v2859, %v2971
    %v2984 = vmul.f32 %v2860, %v2971
    %v2985 = vmul.f32 %v2861, %v2971
    %v2986 = vmul.f32 %v2862, %v2971
    %v2987 = vmul.f32 %v2863, %v2971
    %v2988 = vmul.f32 %v2864, %v2971
    %v2990 = vlaneseq
    %v2991 = vshrl.u32 %v2990, 7
    %v2992 = vsub.s32 0, %v2991
    %v2993 = vrot.slane %v2966, %v2992
    %v2995 = vadd.f32 %v2973, %v2993
    %v2996 = vadd.f32 %v2974, %v2993
    %v2997 = vadd.f32 %v2975, %v2993
    %v2998 = vadd.f32 %v2976, %v2993
    %v2999 = vadd.f32 %v2977, %v2993
    %v3000 = vadd.f32 %v2978, %v2993
    %v3001 = vadd.f32 %v2979, %v2993
    %v3002 = vadd.f32 %v2980, %v2993
    %v3003 = vadd.f32 %v2981, %v2993
    %v3004 = vadd.f32 %v2982, %v2993
    %v3005 = vadd.f32 %v2983, %v2993
    %v3006 = vadd.f32 %v2984, %v2993
    %v3007 = vadd.f32 %v2985, %v2993
    %v3008 = vadd.f32 %v2986, %v2993
    %v3009 = vadd.f32 %v2987, %v2993
    %v3010 = vadd.f32 %v2988, %v2993
    %v3011 = vpack.c.bf16 %v2995, %v2995
    %v3012 = vpack.c.bf16 %v2996, %v2996
    %v3013 = vpack.c.bf16 %v2997, %v2997
    %v3014 = vpack.c.bf16 %v2998, %v2998
    %v3015 = vpack.c.bf16 %v2999, %v2999
    %v3016 = vpack.c.bf16 %v3000, %v3000
    %v3017 = vpack.c.bf16 %v3001, %v3001
    %v3018 = vpack.c.bf16 %v3002, %v3002
    %v3019 = vpack.c.bf16 %v3003, %v3003
    %v3020 = vpack.c.bf16 %v3004, %v3004
    %v3021 = vpack.c.bf16 %v3005, %v3005
    %v3022 = vpack.c.bf16 %v3006, %v3006
    %v3023 = vpack.c.bf16 %v3007, %v3007
    %v3024 = vpack.c.bf16 %v3008, %v3008
    %v3025 = vpack.c.bf16 %v3009, %v3009
    %v3026 = vpack.c.bf16 %v3010, %v3010
    %v3043 = vunpack.c.l.b16 %v3011
    %v3044 = vunpack.c.l.b16 %v3012
    %v3045 = vunpack.c.l.b16 %v3013
    %v3046 = vunpack.c.l.b16 %v3014
    %v3047 = vunpack.c.l.b16 %v3015
    %v3048 = vunpack.c.l.b16 %v3016
    %v3049 = vunpack.c.l.b16 %v3017
    %v3050 = vunpack.c.l.b16 %v3018
    %v3051 = vunpack.c.l.b16 %v3019
    %v3052 = vunpack.c.l.b16 %v3020
    %v3053 = vunpack.c.l.b16 %v3021
    %v3054 = vunpack.c.l.b16 %v3022
    %v3055 = vunpack.c.l.b16 %v3023
    %v3056 = vunpack.c.l.b16 %v3024
    %v3057 = vunpack.c.l.b16 %v3025
    %v3058 = vunpack.c.l.b16 %v3026
    %v3059 = vpack.c.b16 %v3043, %v3043
    %v3060 = vpack.c.b16 %v3044, %v3044
    %v3061 = vpack.c.b16 %v3045, %v3045
    %v3062 = vpack.c.b16 %v3046, %v3046
    %v3063 = vpack.c.b16 %v3047, %v3047
    %v3064 = vpack.c.b16 %v3048, %v3048
    %v3065 = vpack.c.b16 %v3049, %v3049
    %v3066 = vpack.c.b16 %v3050, %v3050
    %v3067 = vpack.c.b16 %v3051, %v3051
    %v3068 = vpack.c.b16 %v3052, %v3052
    %v3069 = vpack.c.b16 %v3053, %v3053
    %v3070 = vpack.c.b16 %v3054, %v3054
    %v3071 = vpack.c.b16 %v3055, %v3055
    %v3072 = vpack.c.b16 %v3056, %v3056
    %v3073 = vpack.c.b16 %v3057, %v3057
    %v3074 = vpack.c.b16 %v3058, %v3058
    %v3076 = vshrl.u32 %v3059, 16
    %v3078 = vrot.slane %v3076, 7
    %v3079 = vshll.u32 %v3059, 16
    %v3081 = vor.u32 %v3078, %v3079
    %v3082 = vrot.slane %v3078, 4
    %v3084 = vshrl.u32 %v3060, 16
    %v3086 = vrot.slane %v3084, 7
    %v3087 = vshll.u32 %v3060, 16
    %v3089 = vor.u32 %v3086, %v3087
    %v3090 = vrot.slane %v3086, 4
    %v3092 = vshrl.u32 %v3061, 16
    %v3094 = vrot.slane %v3092, 7
    %v3095 = vshll.u32 %v3061, 16
    %v3097 = vor.u32 %v3094, %v3095
    %v3098 = vrot.slane %v3094, 4
    %v3100 = vshrl.u32 %v3062, 16
    %v3102 = vrot.slane %v3100, 7
    %v3103 = vshll.u32 %v3062, 16
    %v3105 = vor.u32 %v3102, %v3103
    %v3106 = vrot.slane %v3102, 4
    %v3108 = vshrl.u32 %v3063, 16
    %v3110 = vrot.slane %v3108, 7
    %v3111 = vshll.u32 %v3063, 16
    %v3113 = vor.u32 %v3110, %v3111
    %v3114 = vrot.slane %v3110, 4
    %v3116 = vshrl.u32 %v3064, 16
    %v3118 = vrot.slane %v3116, 7
    %v3119 = vshll.u32 %v3064, 16
    %v3121 = vor.u32 %v3118, %v3119
    %v3122 = vrot.slane %v3118, 4
    %v3124 = vshrl.u32 %v3065, 16
    %v3126 = vrot.slane %v3124, 7
    %v3127 = vshll.u32 %v3065, 16
    %v3129 = vor.u32 %v3126, %v3127
    %v3130 = vrot.slane %v3126, 4
    %v3132 = vshrl.u32 %v3066, 16
    %v3134 = vrot.slane %v3132, 7
    %v3135 = vshll.u32 %v3066, 16
    %v3137 = vor.u32 %v3134, %v3135
    %v3138 = vrot.slane %v3134, 4
    %v3140 = vshrl.u32 %v3067, 16
    %v3142 = vrot.slane %v3140, 7
    %v3143 = vshll.u32 %v3067, 16
    %v3145 = vor.u32 %v3142, %v3143
    %v3146 = vrot.slane %v3142, 4
    %v3148 = vshrl.u32 %v3068, 16
    %v3150 = vrot.slane %v3148, 7
    %v3151 = vshll.u32 %v3068, 16
    %v3153 = vor.u32 %v3150, %v3151
    %v3154 = vrot.slane %v3150, 4
    %v3156 = vshrl.u32 %v3069, 16
    %v3158 = vrot.slane %v3156, 7
    %v3159 = vshll.u32 %v3069, 16
    %v3161 = vor.u32 %v3158, %v3159
    %v3162 = vrot.slane %v3158, 4
    %v3164 = vshrl.u32 %v3070, 16
    %v3166 = vrot.slane %v3164, 7
    %v3167 = vshll.u32 %v3070, 16
    %v3169 = vor.u32 %v3166, %v3167
    %v3170 = vrot.slane %v3166, 4
    %v3172 = vshrl.u32 %v3071, 16
    %v3174 = vrot.slane %v3172, 7
    %v3175 = vshll.u32 %v3071, 16
    %v3177 = vor.u32 %v3174, %v3175
    %v3178 = vrot.slane %v3174, 4
    %v3180 = vshrl.u32 %v3072, 16
    %v3182 = vrot.slane %v3180, 7
    %v3183 = vshll.u32 %v3072, 16
    %v3185 = vor.u32 %v3182, %v3183
    %v3186 = vrot.slane %v3182, 4
    %v3188 = vshrl.u32 %v3073, 16
    %v3190 = vrot.slane %v3188, 7
    %v3191 = vshll.u32 %v3073, 16
    %v3193 = vor.u32 %v3190, %v3191
    %v3194 = vrot.slane %v3190, 4
    %v3196 = vshrl.u32 %v3074, 16
    %v3198 = vrot.slane %v3196, 7
    %v3199 = vshll.u32 %v3074, 16
    %v3201 = vor.u32 %v3198, %v3199
    %v3202 = vrot.slane %v3198, 4
    %v3235 = vld [vmem:[%s404] sm:$0xf]
    %v3236 = vsel %vm406, %v3081, %v3235
    %3237 = vst [vmem:[%s404] sm:$0xf] %v3236
    %v3238 = vld [vmem:[%s404 + $0x4] sm:$0x1]
    %v3239 = vsel %vm41, %v3082, %v3238
    %3240 = vst [vmem:[%s404 + $0x4] sm:$0x1] %v3239
    %v3241 = vld [vmem:[%s404 + $0x8] sm:$0xf]
    %v3242 = vsel %vm406, %v3089, %v3241
    %3243 = vst [vmem:[%s404 + $0x8] sm:$0xf] %v3242
    %v3244 = vld [vmem:[%s404 + $0xc] sm:$0x1]
    %v3245 = vsel %vm41, %v3090, %v3244
    %3246 = vst [vmem:[%s404 + $0xc] sm:$0x1] %v3245
    %v3247 = vld [vmem:[%s404 + $0x10] sm:$0xf]
    %v3248 = vsel %vm406, %v3097, %v3247
    %3249 = vst [vmem:[%s404 + $0x10] sm:$0xf] %v3248
    %v3250 = vld [vmem:[%s404 + $0x14] sm:$0x1]
    %v3251 = vsel %vm41, %v3098, %v3250
    %3252 = vst [vmem:[%s404 + $0x14] sm:$0x1] %v3251
    %v3253 = vld [vmem:[%s404 + $0x18] sm:$0xf]
    %v3254 = vsel %vm406, %v3105, %v3253
    %3255 = vst [vmem:[%s404 + $0x18] sm:$0xf] %v3254
    %v3256 = vld [vmem:[%s404 + $0x1c] sm:$0x1]
    %v3257 = vsel %vm41, %v3106, %v3256
    %3258 = vst [vmem:[%s404 + $0x1c] sm:$0x1] %v3257
    %v3259 = vld [vmem:[%s404 + $0x20] sm:$0xf]
    %v3260 = vsel %vm406, %v3113, %v3259
    %3261 = vst [vmem:[%s404 + $0x20] sm:$0xf] %v3260
    %v3262 = vld [vmem:[%s404 + $0x24] sm:$0x1]
    %v3263 = vsel %vm41, %v3114, %v3262
    %3264 = vst [vmem:[%s404 + $0x24] sm:$0x1] %v3263
    %v3265 = vld [vmem:[%s404 + $0x28] sm:$0xf]
    %v3266 = vsel %vm406, %v3121, %v3265
    %3267 = vst [vmem:[%s404 + $0x28] sm:$0xf] %v3266
    %v3268 = vld [vmem:[%s404 + $0x2c] sm:$0x1]
    %v3269 = vsel %vm41, %v3122, %v3268
    %3270 = vst [vmem:[%s404 + $0x2c] sm:$0x1] %v3269
    %v3271 = vld [vmem:[%s404 + $0x30] sm:$0xf]
    %v3272 = vsel %vm406, %v3129, %v3271
    %3273 = vst [vmem:[%s404 + $0x30] sm:$0xf] %v3272
    %v3274 = vld [vmem:[%s404 + $0x34] sm:$0x1]
    %v3275 = vsel %vm41, %v3130, %v3274
    %3276 = vst [vmem:[%s404 + $0x34] sm:$0x1] %v3275
    %v3277 = vld [vmem:[%s404 + $0x38] sm:$0xf]
    %v3278 = vsel %vm406, %v3137, %v3277
    %3279 = vst [vmem:[%s404 + $0x38] sm:$0xf] %v3278
    %v3280 = vld [vmem:[%s404 + $0x3c] sm:$0x1]
    %v3281 = vsel %vm41, %v3138, %v3280
    %3282 = vst [vmem:[%s404 + $0x3c] sm:$0x1] %v3281
    %v3283 = vld [vmem:[%s404 + $0x50] sm:$0xf]
    %v3284 = vsel %vm406, %v3145, %v3283
    %3285 = vst [vmem:[%s404 + $0x50] sm:$0xf] %v3284
    %v3286 = vld [vmem:[%s404 + $0x54] sm:$0x1]
    %v3287 = vsel %vm41, %v3146, %v3286
    %3288 = vst [vmem:[%s404 + $0x54] sm:$0x1] %v3287
    %v3289 = vld [vmem:[%s404 + $0x58] sm:$0xf]
    %v3290 = vsel %vm406, %v3153, %v3289
    %3291 = vst [vmem:[%s404 + $0x58] sm:$0xf] %v3290
    %v3292 = vld [vmem:[%s404 + $0x5c] sm:$0x1]
    %v3293 = vsel %vm41, %v3154, %v3292
    %3294 = vst [vmem:[%s404 + $0x5c] sm:$0x1] %v3293
    %v3295 = vld [vmem:[%s404 + $0x60] sm:$0xf]
    %v3296 = vsel %vm406, %v3161, %v3295
    %3297 = vst [vmem:[%s404 + $0x60] sm:$0xf] %v3296
    %v3298 = vld [vmem:[%s404 + $0x64] sm:$0x1]
    %v3299 = vsel %vm41, %v3162, %v3298
    %3300 = vst [vmem:[%s404 + $0x64] sm:$0x1] %v3299
    %v3301 = vld [vmem:[%s404 + $0x68] sm:$0xf]
    %v3302 = vsel %vm406, %v3169, %v3301
    %3303 = vst [vmem:[%s404 + $0x68] sm:$0xf] %v3302
    %v3304 = vld [vmem:[%s404 + $0x6c] sm:$0x1]
    %v3305 = vsel %vm41, %v3170, %v3304
    %3306 = vst [vmem:[%s404 + $0x6c] sm:$0x1] %v3305
    %v3307 = vld [vmem:[%s404 + $0x70] sm:$0xf]
    %v3308 = vsel %vm406, %v3177, %v3307
    %3309 = vst [vmem:[%s404 + $0x70] sm:$0xf] %v3308
    %v3310 = vld [vmem:[%s404 + $0x74] sm:$0x1]
    %v3311 = vsel %vm41, %v3178, %v3310
    %3312 = vst [vmem:[%s404 + $0x74] sm:$0x1] %v3311
    %v3313 = vld [vmem:[%s404 + $0x78] sm:$0xf]
    %v3314 = vsel %vm406, %v3185, %v3313
    %3315 = vst [vmem:[%s404 + $0x78] sm:$0xf] %v3314
    %v3316 = vld [vmem:[%s404 + $0x7c] sm:$0x1]
    %v3317 = vsel %vm41, %v3186, %v3316
    %3318 = vst [vmem:[%s404 + $0x7c] sm:$0x1] %v3317
    %v3319 = vld [vmem:[%s404 + $0x80] sm:$0xf]
    %v3320 = vsel %vm406, %v3193, %v3319
    %3321 = vst [vmem:[%s404 + $0x80] sm:$0xf] %v3320
    %v3322 = vld [vmem:[%s404 + $0x84] sm:$0x1]
    %v3323 = vsel %vm41, %v3194, %v3322
    %3324 = vst [vmem:[%s404 + $0x84] sm:$0x1] %v3323
    %v3325 = vld [vmem:[%s404 + $0x88] sm:$0xf]
    %v3326 = vsel %vm406, %v3201, %v3325
    %3327 = vst [vmem:[%s404 + $0x88] sm:$0xf] %v3326
    %v3328 = vld [vmem:[%s404 + $0x8c] sm:$0x1]
    %v3329 = vsel %vm41, %v3202, %v3328
    %3330 = vst [vmem:[%s404 + $0x8c] sm:$0x1] %v3329
    %v3331 = vld [vmem:[#allocation2] sm:$0xf]
    %v3332 = vld [vmem:[#allocation2 + $0x8] sm:$0xf]
    %v3333 = vld [vmem:[#allocation2 + $0x10] sm:$0xf]
    %v3334 = vld [vmem:[#allocation2 + $0x18] sm:$0xf]
    %v3335 = vld [vmem:[#allocation2 + $0x20] sm:$0xf]
    %v3336 = vld [vmem:[#allocation2 + $0x28] sm:$0xf]
    %v3337 = vld [vmem:[#allocation2 + $0x30] sm:$0xf]
    %v3338 = vld [vmem:[#allocation2 + $0x38] sm:$0xf]
    %v3339 = vld [vmem:[#allocation2 + $0x50] sm:$0xf]
    %v3340 = vld [vmem:[#allocation2 + $0x58] sm:$0xf]
    %v3341 = vld [vmem:[#allocation2 + $0x60] sm:$0xf]
    %v3342 = vld [vmem:[#allocation2 + $0x68] sm:$0xf]
    %v3343 = vld [vmem:[#allocation2 + $0x70] sm:$0xf]
    %v3344 = vld [vmem:[#allocation2 + $0x78] sm:$0xf]
    %v3345 = vld [vmem:[#allocation2 + $0x80] sm:$0xf]
    %v3346 = vld [vmem:[#allocation2 + $0x88] sm:$0xf]
    %v3347 = vld [vmem:[#allocation2 + $0x4] sm:$0x1]
    %v3348 = vld [vmem:[#allocation2 + $0xc] sm:$0x1]
    %v3349 = vld [vmem:[#allocation2 + $0x14] sm:$0x1]
    %v3350 = vld [vmem:[#allocation2 + $0x1c] sm:$0x1]
    %v3351 = vld [vmem:[#allocation2 + $0x24] sm:$0x1]
    %v3352 = vld [vmem:[#allocation2 + $0x2c] sm:$0x1]
    %v3353 = vld [vmem:[#allocation2 + $0x34] sm:$0x1]
    %v3354 = vld [vmem:[#allocation2 + $0x3c] sm:$0x1]
    %v3355 = vld [vmem:[#allocation2 + $0x54] sm:$0x1]
    %v3356 = vld [vmem:[#allocation2 + $0x5c] sm:$0x1]
    %v3357 = vld [vmem:[#allocation2 + $0x64] sm:$0x1]
    %v3358 = vld [vmem:[#allocation2 + $0x6c] sm:$0x1]
    %v3359 = vld [vmem:[#allocation2 + $0x74] sm:$0x1]
    %v3360 = vld [vmem:[#allocation2 + $0x7c] sm:$0x1]
    %v3361 = vld [vmem:[#allocation2 + $0x84] sm:$0x1]
    %v3362 = vld [vmem:[#allocation2 + $0x8c] sm:$0x1]
    %v3364 = vshrl.u32 %v3331, 16
    %v3366 = vrot.slane %v3364, 4
    %v3367 = vshll.u32 %v3331, 16
    %v3369 = vrot.slane %v3367, 5
    %v3370 = vor.u32 %v3366, %v3369
    %v3371 = vrot.slane %v3370, 4
    %v3373 = vshll.u32 %v3347, 16
    %v3375 = vrot.slane %v3373, 5
    %v3376 = vsel %vm537, %v3371, %v3375
    %v3378 = vshrl.u32 %v3332, 16
    %v3380 = vrot.slane %v3378, 4
    %v3381 = vshll.u32 %v3332, 16
    %v3383 = vrot.slane %v3381, 5
    %v3384 = vor.u32 %v3380, %v3383
    %v3385 = vrot.slane %v3384, 4
    %v3387 = vshll.u32 %v3348, 16
    %v3389 = vrot.slane %v3387, 5
    %v3390 = vsel %vm537, %v3385, %v3389
    %v3392 = vshrl.u32 %v3333, 16
    %v3394 = vrot.slane %v3392, 4
    %v3395 = vshll.u32 %v3333, 16
    %v3397 = vrot.slane %v3395, 5
    %v3398 = vor.u32 %v3394, %v3397
    %v3399 = vrot.slane %v3398, 4
    %v3401 = vshll.u32 %v3349, 16
    %v3403 = vrot.slane %v3401, 5
    %v3404 = vsel %vm537, %v3399, %v3403
    %v3406 = vshrl.u32 %v3334, 16
    %v3408 = vrot.slane %v3406, 4
    %v3409 = vshll.u32 %v3334, 16
    %v3411 = vrot.slane %v3409, 5
    %v3412 = vor.u32 %v3408, %v3411
    %v3413 = vrot.slane %v3412, 4
    %v3415 = vshll.u32 %v3350, 16
    %v3417 = vrot.slane %v3415, 5
    %v3418 = vsel %vm537, %v3413, %v3417
    %v3420 = vshrl.u32 %v3335, 16
    %v3422 = vrot.slane %v3420, 4
    %v3423 = vshll.u32 %v3335, 16
    %v3425 = vrot.slane %v3423, 5
    %v3426 = vor.u32 %v3422, %v3425
    %v3427 = vrot.slane %v3426, 4
    %v3429 = vshll.u32 %v3351, 16
    %v3431 = vrot.slane %v3429, 5
    %v3432 = vsel %vm537, %v3427, %v3431
    %v3434 = vshrl.u32 %v3336, 16
    %v3436 = vrot.slane %v3434, 4
    %v3437 = vshll.u32 %v3336, 16
    %v3439 = vrot.slane %v3437, 5
    %v3440 = vor.u32 %v3436, %v3439
    %v3441 = vrot.slane %v3440, 4
    %v3443 = vshll.u32 %v3352, 16
    %v3445 = vrot.slane %v3443, 5
    %v3446 = vsel %vm537, %v3441, %v3445
    %v3448 = vshrl.u32 %v3337, 16
    %v3450 = vrot.slane %v3448, 4
    %v3451 = vshll.u32 %v3337, 16
    %v3453 = vrot.slane %v3451, 5
    %v3454 = vor.u32 %v3450, %v3453
    %v3455 = vrot.slane %v3454, 4
    %v3457 = vshll.u32 %v3353, 16
    %v3459 = vrot.slane %v3457, 5
    %v3460 = vsel %vm537, %v3455, %v3459
    %v3462 = vshrl.u32 %v3338, 16
    %v3464 = vrot.slane %v3462, 4
    %v3465 = vshll.u32 %v3338, 16
    %v3467 = vrot.slane %v3465, 5
    %v3468 = vor.u32 %v3464, %v3467
    %v3469 = vrot.slane %v3468, 4
    %v3471 = vshll.u32 %v3354, 16
    %v3473 = vrot.slane %v3471, 5
    %v3474 = vsel %vm537, %v3469, %v3473
    %v3476 = vshrl.u32 %v3339, 16
    %v3478 = vrot.slane %v3476, 4
    %v3479 = vshll.u32 %v3339, 16
    %v3481 = vrot.slane %v3479, 5
    %v3482 = vor.u32 %v3478, %v3481
    %v3483 = vrot.slane %v3482, 4
    %v3485 = vshll.u32 %v3355, 16
    %v3487 = vrot.slane %v3485, 5
    %v3488 = vsel %vm537, %v3483, %v3487
    %v3490 = vshrl.u32 %v3340, 16
    %v3492 = vrot.slane %v3490, 4
    %v3493 = vshll.u32 %v3340, 16
    %v3495 = vrot.slane %v3493, 5
    %v3496 = vor.u32 %v3492, %v3495
    %v3497 = vrot.slane %v3496, 4
    %v3499 = vshll.u32 %v3356, 16
    %v3501 = vrot.slane %v3499, 5
    %v3502 = vsel %vm537, %v3497, %v3501
    %v3504 = vshrl.u32 %v3341, 16
    %v3506 = vrot.slane %v3504, 4
    %v3507 = vshll.u32 %v3341, 16
    %v3509 = vrot.slane %v3507, 5
    %v3510 = vor.u32 %v3506, %v3509
    %v3511 = vrot.slane %v3510, 4
    %v3513 = vshll.u32 %v3357, 16
    %v3515 = vrot.slane %v3513, 5
    %v3516 = vsel %vm537, %v3511, %v3515
    %v3518 = vshrl.u32 %v3342, 16
    %v3520 = vrot.slane %v3518, 4
    %v3521 = vshll.u32 %v3342, 16
    %v3523 = vrot.slane %v3521, 5
    %v3524 = vor.u32 %v3520, %v3523
    %v3525 = vrot.slane %v3524, 4
    %v3527 = vshll.u32 %v3358, 16
    %v3529 = vrot.slane %v3527, 5
    %v3530 = vsel %vm537, %v3525, %v3529
    %v3532 = vshrl.u32 %v3343, 16
    %v3534 = vrot.slane %v3532, 4
    %v3535 = vshll.u32 %v3343, 16
    %v3537 = vrot.slane %v3535, 5
    %v3538 = vor.u32 %v3534, %v3537
    %v3539 = vrot.slane %v3538, 4
    %v3541 = vshll.u32 %v3359, 16
    %v3543 = vrot.slane %v3541, 5
    %v3544 = vsel %vm537, %v3539, %v3543
    %v3546 = vshrl.u32 %v3344, 16
    %v3548 = vrot.slane %v3546, 4
    %v3549 = vshll.u32 %v3344, 16
    %v3551 = vrot.slane %v3549, 5
    %v3552 = vor.u32 %v3548, %v3551
    %v3553 = vrot.slane %v3552, 4
    %v3555 = vshll.u32 %v3360, 16
    %v3557 = vrot.slane %v3555, 5
    %v3558 = vsel %vm537, %v3553, %v3557
    %v3560 = vshrl.u32 %v3345, 16
    %v3562 = vrot.slane %v3560, 4
    %v3563 = vshll.u32 %v3345, 16
    %v3565 = vrot.slane %v3563, 5
    %v3566 = vor.u32 %v3562, %v3565
    %v3567 = vrot.slane %v3566, 4
    %v3569 = vshll.u32 %v3361, 16
    %v3571 = vrot.slane %v3569, 5
    %v3572 = vsel %vm537, %v3567, %v3571
    %v3574 = vshrl.u32 %v3346, 16
    %v3576 = vrot.slane %v3574, 4
    %v3577 = vshll.u32 %v3346, 16
    %v3579 = vrot.slane %v3577, 5
    %v3580 = vor.u32 %v3576, %v3579
    %v3581 = vrot.slane %v3580, 4
    %v3583 = vshll.u32 %v3362, 16
    %v3585 = vrot.slane %v3583, 5
    %v3586 = vsel %vm537, %v3581, %v3585
    %v3603 = vunpack.c.l.b16 %v3331
    %v3604 = vunpack.c.l.b16 %v3332
    %v3605 = vunpack.c.l.b16 %v3333
    %v3606 = vunpack.c.l.b16 %v3334
    %v3607 = vunpack.c.l.b16 %v3335
    %v3608 = vunpack.c.l.b16 %v3336
    %v3609 = vunpack.c.l.b16 %v3337
    %v3610 = vunpack.c.l.b16 %v3338
    %v3611 = vunpack.c.l.b16 %v3339
    %v3612 = vunpack.c.l.b16 %v3340
    %v3613 = vunpack.c.l.b16 %v3341
    %v3614 = vunpack.c.l.b16 %v3342
    %v3615 = vunpack.c.l.b16 %v3343
    %v3616 = vunpack.c.l.b16 %v3344
    %v3617 = vunpack.c.l.b16 %v3345
    %v3618 = vunpack.c.l.b16 %v3346
    %v3619 = vpack.c.b16 %v3604, %v3603
    %v3620 = vpack.c.b16 %v3606, %v3605
    %v3621 = vpack.c.b16 %v3608, %v3607
    %v3622 = vpack.c.b16 %v3610, %v3609
    %v3623 = vpack.c.b16 %v3612, %v3611
    %v3624 = vpack.c.b16 %v3614, %v3613
    %v3625 = vpack.c.b16 %v3616, %v3615
    %v3626 = vpack.c.b16 %v3618, %v3617
    %v3627 = vunpack.c.l.b16 %v3376
    %v3628 = vunpack.c.l.b16 %v3390
    %v3629 = vunpack.c.l.b16 %v3404
    %v3630 = vunpack.c.l.b16 %v3418
    %v3631 = vunpack.c.l.b16 %v3432
    %v3632 = vunpack.c.l.b16 %v3446
    %v3633 = vunpack.c.l.b16 %v3460
    %v3634 = vunpack.c.l.b16 %v3474
    %v3635 = vunpack.c.l.b16 %v3488
    %v3636 = vunpack.c.l.b16 %v3502
    %v3637 = vunpack.c.l.b16 %v3516
    %v3638 = vunpack.c.l.b16 %v3530
    %v3639 = vunpack.c.l.b16 %v3544
    %v3640 = vunpack.c.l.b16 %v3558
    %v3641 = vunpack.c.l.b16 %v3572
    %v3642 = vunpack.c.l.b16 %v3586
    %v3643 = vpack.c.b16 %v3628, %v3627
    %v3644 = vpack.c.b16 %v3630, %v3629
    %v3645 = vpack.c.b16 %v3632, %v3631
    %v3646 = vpack.c.b16 %v3634, %v3633
    %v3647 = vpack.c.b16 %v3636, %v3635
    %v3648 = vpack.c.b16 %v3638, %v3637
    %v3649 = vpack.c.b16 %v3640, %v3639
    %v3650 = vpack.c.b16 %v3642, %v3641
    %3651 = vrot.lane.b32.xlu0 %v3643, 64
    %v3652 = vpop.permute.xlu0 %3651
    %3653 = vrot.lane.b32.xlu0 %v3644, 64
    %v3654 = vpop.permute.xlu0 %3653
    %3655 = vrot.lane.b32.xlu0 %v3645, 64
    %v3656 = vpop.permute.xlu0 %3655
    %3657 = vrot.lane.b32.xlu0 %v3646, 64
    %v3658 = vpop.permute.xlu0 %3657
    %3659 = vrot.lane.b32.xlu0 %v3647, 64
    %v3660 = vpop.permute.xlu0 %3659
    %3661 = vrot.lane.b32.xlu0 %v3648, 64
    %v3662 = vpop.permute.xlu0 %3661
    %3663 = vrot.lane.b32.xlu0 %v3649, 64
    %v3664 = vpop.permute.xlu0 %3663
    %3665 = vrot.lane.b32.xlu0 %v3650, 64
    %v3666 = vpop.permute.xlu0 %3665
    %v3669 = vsel %vm842, %v3619, %v3652
    %v3673 = vsel %vm842, %v3620, %v3654
    %v3677 = vsel %vm842, %v3621, %v3656
    %v3681 = vsel %vm842, %v3622, %v3658
    %v3685 = vsel %vm842, %v3623, %v3660
    %v3689 = vsel %vm842, %v3624, %v3662
    %v3693 = vsel %vm842, %v3625, %v3664
    %v3697 = vsel %vm842, %v3626, %v3666
    %3699 = vst [vmem:[#allocation3] sm:$0xff] %v3669
    %3700 = vst [vmem:[#allocation3 + $0x28] sm:$0xff] %v3673
    %3701 = vst [vmem:[#allocation3 + $0x50] sm:$0xff] %v3677
    %3702 = vst [vmem:[#allocation3 + $0x78] sm:$0xff] %v3681
    %3703 = vst [vmem:[#allocation3 + $0xa0] sm:$0xff] %v3685
    %3704 = vst [vmem:[#allocation3 + $0xc8] sm:$0xff] %v3689
    %3705 = vst [vmem:[#allocation3 + $0xf0] sm:$0xff] %v3693
    %3706 = vst [vmem:[#allocation3 + $0x118] sm:$0xff] %v3697
    %v3707 = vld [vmem:[#allocation2] sm:$0xe]
    %v3708 = vld [vmem:[#allocation2 + $0x4] sm:$0x1]
    %v3709 = vld [vmem:[#allocation2 + $0x8] sm:$0xe]
    %v3710 = vld [vmem:[#allocation2 + $0xc] sm:$0x1]
    %v3711 = vld [vmem:[#allocation2 + $0x10] sm:$0xe]
    %v3712 = vld [vmem:[#allocation2 + $0x14] sm:$0x1]
    %v3713 = vld [vmem:[#allocation2 + $0x18] sm:$0xe]
    %v3714 = vld [vmem:[#allocation2 + $0x1c] sm:$0x1]
    %v3715 = vld [vmem:[#allocation2 + $0x20] sm:$0xe]
    %v3716 = vld [vmem:[#allocation2 + $0x24] sm:$0x1]
    %v3717 = vld [vmem:[#allocation2 + $0x28] sm:$0xe]
    %v3718 = vld [vmem:[#allocation2 + $0x2c] sm:$0x1]
    %v3719 = vld [vmem:[#allocation2 + $0x30] sm:$0xe]
    %v3720 = vld [vmem:[#allocation2 + $0x34] sm:$0x1]
    %v3721 = vld [vmem:[#allocation2 + $0x38] sm:$0xe]
    %v3722 = vld [vmem:[#allocation2 + $0x3c] sm:$0x1]
    %v3723 = vld [vmem:[#allocation2 + $0x50] sm:$0xe]
    %v3724 = vld [vmem:[#allocation2 + $0x54] sm:$0x1]
    %v3725 = vld [vmem:[#allocation2 + $0x58] sm:$0xe]
    %v3726 = vld [vmem:[#allocation2 + $0x5c] sm:$0x1]
    %v3727 = vld [vmem:[#allocation2 + $0x60] sm:$0xe]
    %v3728 = vld [vmem:[#allocation2 + $0x64] sm:$0x1]
    %v3729 = vld [vmem:[#allocation2 + $0x68] sm:$0xe]
    %v3730 = vld [vmem:[#allocation2 + $0x6c] sm:$0x1]
    %v3731 = vld [vmem:[#allocation2 + $0x70] sm:$0xe]
    %v3732 = vld [vmem:[#allocation2 + $0x74] sm:$0x1]
    %v3733 = vld [vmem:[#allocation2 + $0x78] sm:$0xe]
    %v3734 = vld [vmem:[#allocation2 + $0x7c] sm:$0x1]
    %v3735 = vld [vmem:[#allocation2 + $0x80] sm:$0xe]
    %v3736 = vld [vmem:[#allocation2 + $0x84] sm:$0x1]
    %v3737 = vld [vmem:[#allocation2 + $0x88] sm:$0xe]
    %v3738 = vld [vmem:[#allocation2 + $0x8c] sm:$0x1]
    %v3771 = vrot.slane %v3707, 5
    %v3772 = vrot.slane %v3771, 4
    %v3773 = vrot.slane %v3708, 5
    %v3774 = vsel %vm949, %v3772, %v3773
    %v3775 = vrot.slane %v3709, 5
    %v3776 = vrot.slane %v3775, 4
    %v3777 = vrot.slane %v3710, 5
    %v3778 = vsel %vm949, %v3776, %v3777
    %v3779 = vrot.slane %v3711, 5
    %v3780 = vrot.slane %v3779, 4
    %v3781 = vrot.slane %v3712, 5
    %v3782 = vsel %vm949, %v3780, %v3781
    %v3783 = vrot.slane %v3713, 5
    %v3784 = vrot.slane %v3783, 4
    %v3785 = vrot.slane %v3714, 5
    %v3786 = vsel %vm949, %v3784, %v3785
    %v3787 = vrot.slane %v3715, 5
    %v3788 = vrot.slane %v3787, 4
    %v3789 = vrot.slane %v3716, 5
    %v3790 = vsel %vm949, %v3788, %v3789
    %v3791 = vrot.slane %v3717, 5
    %v3792 = vrot.slane %v3791, 4
    %v3793 = vrot.slane %v3718, 5
    %v3794 = vsel %vm949, %v3792, %v3793
    %v3795 = vrot.slane %v3719, 5
    %v3796 = vrot.slane %v3795, 4
    %v3797 = vrot.slane %v3720, 5
    %v3798 = vsel %vm949, %v3796, %v3797
    %v3799 = vrot.slane %v3721, 5
    %v3800 = vrot.slane %v3799, 4
    %v3801 = vrot.slane %v3722, 5
    %v3802 = vsel %vm949, %v3800, %v3801
    %v3803 = vrot.slane %v3723, 5
    %v3804 = vrot.slane %v3803, 4
    %v3805 = vrot.slane %v3724, 5
    %v3806 = vsel %vm949, %v3804, %v3805
    %v3807 = vrot.slane %v3725, 5
    %v3808 = vrot.slane %v3807, 4
    %v3809 = vrot.slane %v3726, 5
    %v3810 = vsel %vm949, %v3808, %v3809
    %v3811 = vrot.slane %v3727, 5
    %v3812 = vrot.slane %v3811, 4
    %v3813 = vrot.slane %v3728, 5
    %v3814 = vsel %vm949, %v3812, %v3813
    %v3815 = vrot.slane %v3729, 5
    %v3816 = vrot.slane %v3815, 4
    %v3817 = vrot.slane %v3730, 5
    %v3818 = vsel %vm949, %v3816, %v3817
    %v3819 = vrot.slane %v3731, 5
    %v3820 = vrot.slane %v3819, 4
    %v3821 = vrot.slane %v3732, 5
    %v3822 = vsel %vm949, %v3820, %v3821
    %v3823 = vrot.slane %v3733, 5
    %v3824 = vrot.slane %v3823, 4
    %v3825 = vrot.slane %v3734, 5
    %v3826 = vsel %vm949, %v3824, %v3825
    %v3827 = vrot.slane %v3735, 5
    %v3828 = vrot.slane %v3827, 4
    %v3829 = vrot.slane %v3736, 5
    %v3830 = vsel %vm949, %v3828, %v3829
    %v3831 = vrot.slane %v3737, 5
    %v3832 = vrot.slane %v3831, 4
    %v3833 = vrot.slane %v3738, 5
    %v3834 = vsel %vm949, %v3832, %v3833
    %v3835 = vld [vmem:[%s404] sm:$0xf]
    %v3836 = vld [vmem:[%s404 + $0x8] sm:$0xf]
    %v3837 = vld [vmem:[%s404 + $0x10] sm:$0xf]
    %v3838 = vld [vmem:[%s404 + $0x18] sm:$0xf]
    %v3839 = vld [vmem:[%s404 + $0x20] sm:$0xf]
    %v3840 = vld [vmem:[%s404 + $0x28] sm:$0xf]
    %v3841 = vld [vmem:[%s404 + $0x30] sm:$0xf]
    %v3842 = vld [vmem:[%s404 + $0x38] sm:$0xf]
    %v3843 = vld [vmem:[%s404 + $0x50] sm:$0xf]
    %v3844 = vld [vmem:[%s404 + $0x58] sm:$0xf]
    %v3845 = vld [vmem:[%s404 + $0x60] sm:$0xf]
    %v3846 = vld [vmem:[%s404 + $0x68] sm:$0xf]
    %v3847 = vld [vmem:[%s404 + $0x70] sm:$0xf]
    %v3848 = vld [vmem:[%s404 + $0x78] sm:$0xf]
    %v3849 = vld [vmem:[%s404 + $0x80] sm:$0xf]
    %v3850 = vld [vmem:[%s404 + $0x88] sm:$0xf]
    %v3851 = vunpack.c.l.b16 %v3774
    %v3852 = vunpack.c.l.b16 %v3778
    %v3853 = vunpack.c.l.b16 %v3782
    %v3854 = vunpack.c.l.b16 %v3786
    %v3855 = vunpack.c.l.b16 %v3790
    %v3856 = vunpack.c.l.b16 %v3794
    %v3857 = vunpack.c.l.b16 %v3798
    %v3858 = vunpack.c.l.b16 %v3802
    %v3859 = vunpack.c.l.b16 %v3806
    %v3860 = vunpack.c.l.b16 %v3810
    %v3861 = vunpack.c.l.b16 %v3814
    %v3862 = vunpack.c.l.b16 %v3818
    %v3863 = vunpack.c.l.b16 %v3822
    %v3864 = vunpack.c.l.b16 %v3826
    %v3865 = vunpack.c.l.b16 %v3830
    %v3866 = vunpack.c.l.b16 %v3834
    %v3867 = vpack.c.b16 %v3852, %v3851
    %v3868 = vpack.c.b16 %v3854, %v3853
    %v3869 = vpack.c.b16 %v3856, %v3855
    %v3870 = vpack.c.b16 %v3858, %v3857
    %v3871 = vpack.c.b16 %v3860, %v3859
    %v3872 = vpack.c.b16 %v3862, %v3861
    %v3873 = vpack.c.b16 %v3864, %v3863
    %v3874 = vpack.c.b16 %v3866, %v3865
    %v3891 = vunpack.c.l.b16 %v3835
    %v3892 = vunpack.c.l.b16 %v3836
    %v3893 = vunpack.c.l.b16 %v3837
    %v3894 = vunpack.c.l.b16 %v3838
    %v3895 = vunpack.c.l.b16 %v3839
    %v3896 = vunpack.c.l.b16 %v3840
    %v3897 = vunpack.c.l.b16 %v3841
    %v3898 = vunpack.c.l.b16 %v3842
    %v3899 = vunpack.c.l.b16 %v3843
    %v3900 = vunpack.c.l.b16 %v3844
    %v3901 = vunpack.c.l.b16 %v3845
    %v3902 = vunpack.c.l.b16 %v3846
    %v3903 = vunpack.c.l.b16 %v3847
    %v3904 = vunpack.c.l.b16 %v3848
    %v3905 = vunpack.c.l.b16 %v3849
    %v3906 = vunpack.c.l.b16 %v3850
    %v3907 = vpack.c.b16 %v3892, %v3891
    %v3908 = vpack.c.b16 %v3894, %v3893
    %v3909 = vpack.c.b16 %v3896, %v3895
    %v3910 = vpack.c.b16 %v3898, %v3897
    %v3911 = vpack.c.b16 %v3900, %v3899
    %v3912 = vpack.c.b16 %v3902, %v3901
    %v3913 = vpack.c.b16 %v3904, %v3903
    %v3914 = vpack.c.b16 %v3906, %v3905
    %3915 = vrot.lane.b32.xlu0 %v3907, 64
    %v3916 = vpop.permute.xlu0 %3915
    %3917 = vrot.lane.b32.xlu0 %v3908, 64
    %v3918 = vpop.permute.xlu0 %3917
    %3919 = vrot.lane.b32.xlu0 %v3909, 64
    %v3920 = vpop.permute.xlu0 %3919
    %3921 = vrot.lane.b32.xlu0 %v3910, 64
    %v3922 = vpop.permute.xlu0 %3921
    %3923 = vrot.lane.b32.xlu0 %v3911, 64
    %v3924 = vpop.permute.xlu0 %3923
    %3925 = vrot.lane.b32.xlu0 %v3912, 64
    %v3926 = vpop.permute.xlu0 %3925
    %3927 = vrot.lane.b32.xlu0 %v3913, 64
    %v3928 = vpop.permute.xlu0 %3927
    %3929 = vrot.lane.b32.xlu0 %v3914, 64
    %v3930 = vpop.permute.xlu0 %3929
    %v3933 = vsel %vm842, %v3867, %v3916
    %v3937 = vsel %vm842, %v3868, %v3918
    %v3941 = vsel %vm842, %v3869, %v3920
    %v3945 = vsel %vm842, %v3870, %v3922
    %v3949 = vsel %vm842, %v3871, %v3924
    %v3953 = vsel %vm842, %v3872, %v3926
    %v3957 = vsel %vm842, %v3873, %v3928
    %v3961 = vsel %vm842, %v3874, %v3930
    %3963 = vst [vmem:[#allocation3 + $0x8] sm:$0xff] %v3933
    %3964 = vst [vmem:[#allocation3 + $0x30] sm:$0xff] %v3937
    %3965 = vst [vmem:[#allocation3 + $0x58] sm:$0xff] %v3941
    %3966 = vst [vmem:[#allocation3 + $0x80] sm:$0xff] %v3945
    %3967 = vst [vmem:[#allocation3 + $0xa8] sm:$0xff] %v3949
    %3968 = vst [vmem:[#allocation3 + $0xd0] sm:$0xff] %v3953
    %3969 = vst [vmem:[#allocation3 + $0xf8] sm:$0xff] %v3957
    %3970 = vst [vmem:[#allocation3 + $0x120] sm:$0xff] %v3961
    %v3971 = vld [vmem:[%s404] sm:$0xf]
    %v3972 = vld [vmem:[%s404 + $0x4] sm:$0x1]
    %v3973 = vld [vmem:[%s404 + $0x8] sm:$0xf]
    %v3974 = vld [vmem:[%s404 + $0xc] sm:$0x1]
    %v3975 = vld [vmem:[%s404 + $0x10] sm:$0xf]
    %v3976 = vld [vmem:[%s404 + $0x14] sm:$0x1]
    %v3977 = vld [vmem:[%s404 + $0x18] sm:$0xf]
    %v3978 = vld [vmem:[%s404 + $0x1c] sm:$0x1]
    %v3979 = vld [vmem:[%s404 + $0x20] sm:$0xf]
    %v3980 = vld [vmem:[%s404 + $0x24] sm:$0x1]
    %v3981 = vld [vmem:[%s404 + $0x28] sm:$0xf]
    %v3982 = vld [vmem:[%s404 + $0x2c] sm:$0x1]
    %v3983 = vld [vmem:[%s404 + $0x30] sm:$0xf]
    %v3984 = vld [vmem:[%s404 + $0x34] sm:$0x1]
    %v3985 = vld [vmem:[%s404 + $0x38] sm:$0xf]
    %v3986 = vld [vmem:[%s404 + $0x3c] sm:$0x1]
    %v3987 = vld [vmem:[%s404 + $0x50] sm:$0xf]
    %v3988 = vld [vmem:[%s404 + $0x54] sm:$0x1]
    %v3989 = vld [vmem:[%s404 + $0x58] sm:$0xf]
    %v3990 = vld [vmem:[%s404 + $0x5c] sm:$0x1]
    %v3991 = vld [vmem:[%s404 + $0x60] sm:$0xf]
    %v3992 = vld [vmem:[%s404 + $0x64] sm:$0x1]
    %v3993 = vld [vmem:[%s404 + $0x68] sm:$0xf]
    %v3994 = vld [vmem:[%s404 + $0x6c] sm:$0x1]
    %v3995 = vld [vmem:[%s404 + $0x70] sm:$0xf]
    %v3996 = vld [vmem:[%s404 + $0x74] sm:$0x1]
    %v3997 = vld [vmem:[%s404 + $0x78] sm:$0xf]
    %v3998 = vld [vmem:[%s404 + $0x7c] sm:$0x1]
    %v3999 = vld [vmem:[%s404 + $0x80] sm:$0xf]
    %v4000 = vld [vmem:[%s404 + $0x84] sm:$0x1]
    %v4001 = vld [vmem:[%s404 + $0x88] sm:$0xf]
    %v4002 = vld [vmem:[%s404 + $0x8c] sm:$0x1]
    %v4004 = vshrl.u32 %v3971, 16
    %v4006 = vrot.slane %v4004, 4
    %v4007 = vshll.u32 %v3971, 16
    %v4009 = vrot.slane %v4007, 5
    %v4010 = vor.u32 %v4006, %v4009
    %v4011 = vrot.slane %v4010, 4
    %v4013 = vshll.u32 %v3972, 16
    %v4015 = vrot.slane %v4013, 5
    %v4016 = vsel %vm537, %v4011, %v4015
    %v4018 = vshrl.u32 %v3973, 16
    %v4020 = vrot.slane %v4018, 4
    %v4021 = vshll.u32 %v3973, 16
    %v4023 = vrot.slane %v4021, 5
    %v4024 = vor.u32 %v4020, %v4023
    %v4025 = vrot.slane %v4024, 4
    %v4027 = vshll.u32 %v3974, 16
    %v4029 = vrot.slane %v4027, 5
    %v4030 = vsel %vm537, %v4025, %v4029
    %v4032 = vshrl.u32 %v3975, 16
    %v4034 = vrot.slane %v4032, 4
    %v4035 = vshll.u32 %v3975, 16
    %v4037 = vrot.slane %v4035, 5
    %v4038 = vor.u32 %v4034, %v4037
    %v4039 = vrot.slane %v4038, 4
    %v4041 = vshll.u32 %v3976, 16
    %v4043 = vrot.slane %v4041, 5
    %v4044 = vsel %vm537, %v4039, %v4043
    %v4046 = vshrl.u32 %v3977, 16
    %v4048 = vrot.slane %v4046, 4
    %v4049 = vshll.u32 %v3977, 16
    %v4051 = vrot.slane %v4049, 5
    %v4052 = vor.u32 %v4048, %v4051
    %v4053 = vrot.slane %v4052, 4
    %v4055 = vshll.u32 %v3978, 16
    %v4057 = vrot.slane %v4055, 5
    %v4058 = vsel %vm537, %v4053, %v4057
    %v4060 = vshrl.u32 %v3979, 16
    %v4062 = vrot.slane %v4060, 4
    %v4063 = vshll.u32 %v3979, 16
    %v4065 = vrot.slane %v4063, 5
    %v4066 = vor.u32 %v4062, %v4065
    %v4067 = vrot.slane %v4066, 4
    %v4069 = vshll.u32 %v3980, 16
    %v4071 = vrot.slane %v4069, 5
    %v4072 = vsel %vm537, %v4067, %v4071
    %v4074 = vshrl.u32 %v3981, 16
    %v4076 = vrot.slane %v4074, 4
    %v4077 = vshll.u32 %v3981, 16
    %v4079 = vrot.slane %v4077, 5
    %v4080 = vor.u32 %v4076, %v4079
    %v4081 = vrot.slane %v4080, 4
    %v4083 = vshll.u32 %v3982, 16
    %v4085 = vrot.slane %v4083, 5
    %v4086 = vsel %vm537, %v4081, %v4085
    %v4088 = vshrl.u32 %v3983, 16
    %v4090 = vrot.slane %v4088, 4
    %v4091 = vshll.u32 %v3983, 16
    %v4093 = vrot.slane %v4091, 5
    %v4094 = vor.u32 %v4090, %v4093
    %v4095 = vrot.slane %v4094, 4
    %v4097 = vshll.u32 %v3984, 16
    %v4099 = vrot.slane %v4097, 5
    %v4100 = vsel %vm537, %v4095, %v4099
    %v4102 = vshrl.u32 %v3985, 16
    %v4104 = vrot.slane %v4102, 4
    %v4105 = vshll.u32 %v3985, 16
    %v4107 = vrot.slane %v4105, 5
    %v4108 = vor.u32 %v4104, %v4107
    %v4109 = vrot.slane %v4108, 4
    %v4111 = vshll.u32 %v3986, 16
    %v4113 = vrot.slane %v4111, 5
    %v4114 = vsel %vm537, %v4109, %v4113
    %v4116 = vshrl.u32 %v3987, 16
    %v4118 = vrot.slane %v4116, 4
    %v4119 = vshll.u32 %v3987, 16
    %v4121 = vrot.slane %v4119, 5
    %v4122 = vor.u32 %v4118, %v4121
    %v4123 = vrot.slane %v4122, 4
    %v4125 = vshll.u32 %v3988, 16
    %v4127 = vrot.slane %v4125, 5
    %v4128 = vsel %vm537, %v4123, %v4127
    %v4130 = vshrl.u32 %v3989, 16
    %v4132 = vrot.slane %v4130, 4
    %v4133 = vshll.u32 %v3989, 16
    %v4135 = vrot.slane %v4133, 5
    %v4136 = vor.u32 %v4132, %v4135
    %v4137 = vrot.slane %v4136, 4
    %v4139 = vshll.u32 %v3990, 16
    %v4141 = vrot.slane %v4139, 5
    %v4142 = vsel %vm537, %v4137, %v4141
    %v4144 = vshrl.u32 %v3991, 16
    %v4146 = vrot.slane %v4144, 4
    %v4147 = vshll.u32 %v3991, 16
    %v4149 = vrot.slane %v4147, 5
    %v4150 = vor.u32 %v4146, %v4149
    %v4151 = vrot.slane %v4150, 4
    %v4153 = vshll.u32 %v3992, 16
    %v4155 = vrot.slane %v4153, 5
    %v4156 = vsel %vm537, %v4151, %v4155
    %v4158 = vshrl.u32 %v3993, 16
    %v4160 = vrot.slane %v4158, 4
    %v4161 = vshll.u32 %v3993, 16
    %v4163 = vrot.slane %v4161, 5
    %v4164 = vor.u32 %v4160, %v4163
    %v4165 = vrot.slane %v4164, 4
    %v4167 = vshll.u32 %v3994, 16
    %v4169 = vrot.slane %v4167, 5
    %v4170 = vsel %vm537, %v4165, %v4169
    %v4172 = vshrl.u32 %v3995, 16
    %v4174 = vrot.slane %v4172, 4
    %v4175 = vshll.u32 %v3995, 16
    %v4177 = vrot.slane %v4175, 5
    %v4178 = vor.u32 %v4174, %v4177
    %v4179 = vrot.slane %v4178, 4
    %v4181 = vshll.u32 %v3996, 16
    %v4183 = vrot.slane %v4181, 5
    %v4184 = vsel %vm537, %v4179, %v4183
    %v4186 = vshrl.u32 %v3997, 16
    %v4188 = vrot.slane %v4186, 4
    %v4189 = vshll.u32 %v3997, 16
    %v4191 = vrot.slane %v4189, 5
    %v4192 = vor.u32 %v4188, %v4191
    %v4193 = vrot.slane %v4192, 4
    %v4195 = vshll.u32 %v3998, 16
    %v4197 = vrot.slane %v4195, 5
    %v4198 = vsel %vm537, %v4193, %v4197
    %v4200 = vshrl.u32 %v3999, 16
    %v4202 = vrot.slane %v4200, 4
    %v4203 = vshll.u32 %v3999, 16
    %v4205 = vrot.slane %v4203, 5
    %v4206 = vor.u32 %v4202, %v4205
    %v4207 = vrot.slane %v4206, 4
    %v4209 = vshll.u32 %v4000, 16
    %v4211 = vrot.slane %v4209, 5
    %v4212 = vsel %vm537, %v4207, %v4211
    %v4214 = vshrl.u32 %v4001, 16
    %v4216 = vrot.slane %v4214, 4
    %v4217 = vshll.u32 %v4001, 16
    %v4219 = vrot.slane %v4217, 5
    %v4220 = vor.u32 %v4216, %v4219
    %v4221 = vrot.slane %v4220, 4
    %v4223 = vshll.u32 %v4002, 16
    %v4225 = vrot.slane %v4223, 5
    %v4226 = vsel %vm537, %v4221, %v4225
    %v4227 = vld [vmem:[%s404] sm:$0xe]
    %v4228 = vld [vmem:[%s404 + $0x8] sm:$0xe]
    %v4229 = vld [vmem:[%s404 + $0x10] sm:$0xe]
    %v4230 = vld [vmem:[%s404 + $0x18] sm:$0xe]
    %v4231 = vld [vmem:[%s404 + $0x20] sm:$0xe]
    %v4232 = vld [vmem:[%s404 + $0x28] sm:$0xe]
    %v4233 = vld [vmem:[%s404 + $0x30] sm:$0xe]
    %v4234 = vld [vmem:[%s404 + $0x38] sm:$0xe]
    %v4235 = vld [vmem:[%s404 + $0x50] sm:$0xe]
    %v4236 = vld [vmem:[%s404 + $0x58] sm:$0xe]
    %v4237 = vld [vmem:[%s404 + $0x60] sm:$0xe]
    %v4238 = vld [vmem:[%s404 + $0x68] sm:$0xe]
    %v4239 = vld [vmem:[%s404 + $0x70] sm:$0xe]
    %v4240 = vld [vmem:[%s404 + $0x78] sm:$0xe]
    %v4241 = vld [vmem:[%s404 + $0x80] sm:$0xe]
    %v4242 = vld [vmem:[%s404 + $0x88] sm:$0xe]
    %v4275 = vrot.slane %v4227, 5
    %v4276 = vrot.slane %v4275, 4
    %v4277 = vrot.slane %v3972, 5
    %v4278 = vsel %vm949, %v4276, %v4277
    %v4279 = vrot.slane %v4228, 5
    %v4280 = vrot.slane %v4279, 4
    %v4281 = vrot.slane %v3974, 5
    %v4282 = vsel %vm949, %v4280, %v4281
    %v4283 = vrot.slane %v4229, 5
    %v4284 = vrot.slane %v4283, 4
    %v4285 = vrot.slane %v3976, 5
    %v4286 = vsel %vm949, %v4284, %v4285
    %v4287 = vrot.slane %v4230, 5
    %v4288 = vrot.slane %v4287, 4
    %v4289 = vrot.slane %v3978, 5
    %v4290 = vsel %vm949, %v4288, %v4289
    %v4291 = vrot.slane %v4231, 5
    %v4292 = vrot.slane %v4291, 4
    %v4293 = vrot.slane %v3980, 5
    %v4294 = vsel %vm949, %v4292, %v4293
    %v4295 = vrot.slane %v4232, 5
    %v4296 = vrot.slane %v4295, 4
    %v4297 = vrot.slane %v3982, 5
    %v4298 = vsel %vm949, %v4296, %v4297
    %v4299 = vrot.slane %v4233, 5
    %v4300 = vrot.slane %v4299, 4
    %v4301 = vrot.slane %v3984, 5
    %v4302 = vsel %vm949, %v4300, %v4301
    %v4303 = vrot.slane %v4234, 5
    %v4304 = vrot.slane %v4303, 4
    %v4305 = vrot.slane %v3986, 5
    %v4306 = vsel %vm949, %v4304, %v4305
    %v4307 = vrot.slane %v4235, 5
    %v4308 = vrot.slane %v4307, 4
    %v4309 = vrot.slane %v3988, 5
    %v4310 = vsel %vm949, %v4308, %v4309
    %v4311 = vrot.slane %v4236, 5
    %v4312 = vrot.slane %v4311, 4
    %v4313 = vrot.slane %v3990, 5
    %v4314 = vsel %vm949, %v4312, %v4313
    %v4315 = vrot.slane %v4237, 5
    %v4316 = vrot.slane %v4315, 4
    %v4317 = vrot.slane %v3992, 5
    %v4318 = vsel %vm949, %v4316, %v4317
    %v4319 = vrot.slane %v4238, 5
    %v4320 = vrot.slane %v4319, 4
    %v4321 = vrot.slane %v3994, 5
    %v4322 = vsel %vm949, %v4320, %v4321
    %v4323 = vrot.slane %v4239, 5
    %v4324 = vrot.slane %v4323, 4
    %v4325 = vrot.slane %v3996, 5
    %v4326 = vsel %vm949, %v4324, %v4325
    %v4327 = vrot.slane %v4240, 5
    %v4328 = vrot.slane %v4327, 4
    %v4329 = vrot.slane %v3998, 5
    %v4330 = vsel %vm949, %v4328, %v4329
    %v4331 = vrot.slane %v4241, 5
    %v4332 = vrot.slane %v4331, 4
    %v4333 = vrot.slane %v4000, 5
    %v4334 = vsel %vm949, %v4332, %v4333
    %v4335 = vrot.slane %v4242, 5
    %v4336 = vrot.slane %v4335, 4
    %v4337 = vrot.slane %v4002, 5
    %v4338 = vsel %vm949, %v4336, %v4337
    %v4339 = vunpack.c.l.b16 %v4016
    %v4340 = vunpack.c.l.b16 %v4030
    %v4341 = vunpack.c.l.b16 %v4044
    %v4342 = vunpack.c.l.b16 %v4058
    %v4343 = vunpack.c.l.b16 %v4072
    %v4344 = vunpack.c.l.b16 %v4086
    %v4345 = vunpack.c.l.b16 %v4100
    %v4346 = vunpack.c.l.b16 %v4114
    %v4347 = vunpack.c.l.b16 %v4128
    %v4348 = vunpack.c.l.b16 %v4142
    %v4349 = vunpack.c.l.b16 %v4156
    %v4350 = vunpack.c.l.b16 %v4170
    %v4351 = vunpack.c.l.b16 %v4184
    %v4352 = vunpack.c.l.b16 %v4198
    %v4353 = vunpack.c.l.b16 %v4212
    %v4354 = vunpack.c.l.b16 %v4226
    %v4355 = vpack.c.b16 %v4340, %v4339
    %v4356 = vpack.c.b16 %v4342, %v4341
    %v4357 = vpack.c.b16 %v4344, %v4343
    %v4358 = vpack.c.b16 %v4346, %v4345
    %v4359 = vpack.c.b16 %v4348, %v4347
    %v4360 = vpack.c.b16 %v4350, %v4349
    %v4361 = vpack.c.b16 %v4352, %v4351
    %v4362 = vpack.c.b16 %v4354, %v4353
    %v4363 = vunpack.c.l.b16 %v4278
    %v4364 = vunpack.c.l.b16 %v4282
    %v4365 = vunpack.c.l.b16 %v4286
    %v4366 = vunpack.c.l.b16 %v4290
    %v4367 = vunpack.c.l.b16 %v4294
    %v4368 = vunpack.c.l.b16 %v4298
    %v4369 = vunpack.c.l.b16 %v4302
    %v4370 = vunpack.c.l.b16 %v4306
    %v4371 = vunpack.c.l.b16 %v4310
    %v4372 = vunpack.c.l.b16 %v4314
    %v4373 = vunpack.c.l.b16 %v4318
    %v4374 = vunpack.c.l.b16 %v4322
    %v4375 = vunpack.c.l.b16 %v4326
    %v4376 = vunpack.c.l.b16 %v4330
    %v4377 = vunpack.c.l.b16 %v4334
    %v4378 = vunpack.c.l.b16 %v4338
    %v4379 = vpack.c.b16 %v4364, %v4363
    %v4380 = vpack.c.b16 %v4366, %v4365
    %v4381 = vpack.c.b16 %v4368, %v4367
    %v4382 = vpack.c.b16 %v4370, %v4369
    %v4383 = vpack.c.b16 %v4372, %v4371
    %v4384 = vpack.c.b16 %v4374, %v4373
    %v4385 = vpack.c.b16 %v4376, %v4375
    %v4386 = vpack.c.b16 %v4378, %v4377
    %4387 = vrot.lane.b32.xlu0 %v4379, 64
    %v4388 = vpop.permute.xlu0 %4387
    %4389 = vrot.lane.b32.xlu0 %v4380, 64
    %v4390 = vpop.permute.xlu0 %4389
    %4391 = vrot.lane.b32.xlu0 %v4381, 64
    %v4392 = vpop.permute.xlu0 %4391
    %4393 = vrot.lane.b32.xlu0 %v4382, 64
    %v4394 = vpop.permute.xlu0 %4393
    %4395 = vrot.lane.b32.xlu0 %v4383, 64
    %v4396 = vpop.permute.xlu0 %4395
    %4397 = vrot.lane.b32.xlu0 %v4384, 64
    %v4398 = vpop.permute.xlu0 %4397
    %4399 = vrot.lane.b32.xlu0 %v4385, 64
    %v4400 = vpop.permute.xlu0 %4399
    %4401 = vrot.lane.b32.xlu0 %v4386, 64
    %v4402 = vpop.permute.xlu0 %4401
    %v4405 = vsel %vm842, %v4355, %v4388
    %v4409 = vsel %vm842, %v4356, %v4390
    %v4413 = vsel %vm842, %v4357, %v4392
    %v4417 = vsel %vm842, %v4358, %v4394
    %v4421 = vsel %vm842, %v4359, %v4396
    %v4425 = vsel %vm842, %v4360, %v4398
    %v4429 = vsel %vm842, %v4361, %v4400
    %v4433 = vsel %vm842, %v4362, %v4402
    %4435 = vst [vmem:[#allocation3 + $0x10] sm:$0xff] %v4405
    %4436 = vst [vmem:[#allocation3 + $0x38] sm:$0xff] %v4409
    %4437 = vst [vmem:[#allocation3 + $0x60] sm:$0xff] %v4413
    %4438 = vst [vmem:[#allocation3 + $0x88] sm:$0xff] %v4417
    %4439 = vst [vmem:[#allocation3 + $0xb0] sm:$0xff] %v4421
    %4440 = vst [vmem:[#allocation3 + $0xd8] sm:$0xff] %v4425
    %4441 = vst [vmem:[#allocation3 + $0x100] sm:$0xff] %v4429
    %4442 = vst [vmem:[#allocation3 + $0x128] sm:$0xff] %v4433
    %v4443 = vld [vmem:[%s1622] sm:$0xf]
    %v4444 = vld [vmem:[%s1622 + $0x8] sm:$0xf]
    %v4445 = vld [vmem:[%s1622 + $0x10] sm:$0xf]
    %v4446 = vld [vmem:[%s1622 + $0x18] sm:$0xf]
    %v4447 = vld [vmem:[%s1622 + $0x20] sm:$0xf]
    %v4448 = vld [vmem:[%s1622 + $0x28] sm:$0xf]
    %v4449 = vld [vmem:[%s1622 + $0x30] sm:$0xf]
    %v4450 = vld [vmem:[%s1622 + $0x38] sm:$0xf]
    %v4451 = vld [vmem:[%s1622 + $0x50] sm:$0xf]
    %v4452 = vld [vmem:[%s1622 + $0x58] sm:$0xf]
    %v4453 = vld [vmem:[%s1622 + $0x60] sm:$0xf]
    %v4454 = vld [vmem:[%s1622 + $0x68] sm:$0xf]
    %v4455 = vld [vmem:[%s1622 + $0x70] sm:$0xf]
    %v4456 = vld [vmem:[%s1622 + $0x78] sm:$0xf]
    %v4457 = vld [vmem:[%s1622 + $0x80] sm:$0xf]
    %v4458 = vld [vmem:[%s1622 + $0x88] sm:$0xf]
    %v4459 = vld [vmem:[%s1622 + $0x4] sm:$0x1]
    %v4460 = vld [vmem:[%s1622 + $0xc] sm:$0x1]
    %v4461 = vld [vmem:[%s1622 + $0x14] sm:$0x1]
    %v4462 = vld [vmem:[%s1622 + $0x1c] sm:$0x1]
    %v4463 = vld [vmem:[%s1622 + $0x24] sm:$0x1]
    %v4464 = vld [vmem:[%s1622 + $0x2c] sm:$0x1]
    %v4465 = vld [vmem:[%s1622 + $0x34] sm:$0x1]
    %v4466 = vld [vmem:[%s1622 + $0x3c] sm:$0x1]
    %v4467 = vld [vmem:[%s1622 + $0x54] sm:$0x1]
    %v4468 = vld [vmem:[%s1622 + $0x5c] sm:$0x1]
    %v4469 = vld [vmem:[%s1622 + $0x64] sm:$0x1]
    %v4470 = vld [vmem:[%s1622 + $0x6c] sm:$0x1]
    %v4471 = vld [vmem:[%s1622 + $0x74] sm:$0x1]
    %v4472 = vld [vmem:[%s1622 + $0x7c] sm:$0x1]
    %v4473 = vld [vmem:[%s1622 + $0x84] sm:$0x1]
    %v4474 = vld [vmem:[%s1622 + $0x8c] sm:$0x1]
    %v4476 = vshrl.u32 %v4443, 16
    %v4478 = vrot.slane %v4476, 4
    %v4479 = vshll.u32 %v4443, 16
    %v4481 = vrot.slane %v4479, 5
    %v4482 = vor.u32 %v4478, %v4481
    %v4483 = vrot.slane %v4482, 4
    %v4485 = vshll.u32 %v4459, 16
    %v4487 = vrot.slane %v4485, 5
    %v4488 = vsel %vm537, %v4483, %v4487
    %v4490 = vshrl.u32 %v4444, 16
    %v4492 = vrot.slane %v4490, 4
    %v4493 = vshll.u32 %v4444, 16
    %v4495 = vrot.slane %v4493, 5
    %v4496 = vor.u32 %v4492, %v4495
    %v4497 = vrot.slane %v4496, 4
    %v4499 = vshll.u32 %v4460, 16
    %v4501 = vrot.slane %v4499, 5
    %v4502 = vsel %vm537, %v4497, %v4501
    %v4504 = vshrl.u32 %v4445, 16
    %v4506 = vrot.slane %v4504, 4
    %v4507 = vshll.u32 %v4445, 16
    %v4509 = vrot.slane %v4507, 5
    %v4510 = vor.u32 %v4506, %v4509
    %v4511 = vrot.slane %v4510, 4
    %v4513 = vshll.u32 %v4461, 16
    %v4515 = vrot.slane %v4513, 5
    %v4516 = vsel %vm537, %v4511, %v4515
    %v4518 = vshrl.u32 %v4446, 16
    %v4520 = vrot.slane %v4518, 4
    %v4521 = vshll.u32 %v4446, 16
    %v4523 = vrot.slane %v4521, 5
    %v4524 = vor.u32 %v4520, %v4523
    %v4525 = vrot.slane %v4524, 4
    %v4527 = vshll.u32 %v4462, 16
    %v4529 = vrot.slane %v4527, 5
    %v4530 = vsel %vm537, %v4525, %v4529
    %v4532 = vshrl.u32 %v4447, 16
    %v4534 = vrot.slane %v4532, 4
    %v4535 = vshll.u32 %v4447, 16
    %v4537 = vrot.slane %v4535, 5
    %v4538 = vor.u32 %v4534, %v4537
    %v4539 = vrot.slane %v4538, 4
    %v4541 = vshll.u32 %v4463, 16
    %v4543 = vrot.slane %v4541, 5
    %v4544 = vsel %vm537, %v4539, %v4543
    %v4546 = vshrl.u32 %v4448, 16
    %v4548 = vrot.slane %v4546, 4
    %v4549 = vshll.u32 %v4448, 16
    %v4551 = vrot.slane %v4549, 5
    %v4552 = vor.u32 %v4548, %v4551
    %v4553 = vrot.slane %v4552, 4
    %v4555 = vshll.u32 %v4464, 16
    %v4557 = vrot.slane %v4555, 5
    %v4558 = vsel %vm537, %v4553, %v4557
    %v4560 = vshrl.u32 %v4449, 16
    %v4562 = vrot.slane %v4560, 4
    %v4563 = vshll.u32 %v4449, 16
    %v4565 = vrot.slane %v4563, 5
    %v4566 = vor.u32 %v4562, %v4565
    %v4567 = vrot.slane %v4566, 4
    %v4569 = vshll.u32 %v4465, 16
    %v4571 = vrot.slane %v4569, 5
    %v4572 = vsel %vm537, %v4567, %v4571
    %v4574 = vshrl.u32 %v4450, 16
    %v4576 = vrot.slane %v4574, 4
    %v4577 = vshll.u32 %v4450, 16
    %v4579 = vrot.slane %v4577, 5
    %v4580 = vor.u32 %v4576, %v4579
    %v4581 = vrot.slane %v4580, 4
    %v4583 = vshll.u32 %v4466, 16
    %v4585 = vrot.slane %v4583, 5
    %v4586 = vsel %vm537, %v4581, %v4585
    %v4588 = vshrl.u32 %v4451, 16
    %v4590 = vrot.slane %v4588, 4
    %v4591 = vshll.u32 %v4451, 16
    %v4593 = vrot.slane %v4591, 5
    %v4594 = vor.u32 %v4590, %v4593
    %v4595 = vrot.slane %v4594, 4
    %v4597 = vshll.u32 %v4467, 16
    %v4599 = vrot.slane %v4597, 5
    %v4600 = vsel %vm537, %v4595, %v4599
    %v4602 = vshrl.u32 %v4452, 16
    %v4604 = vrot.slane %v4602, 4
    %v4605 = vshll.u32 %v4452, 16
    %v4607 = vrot.slane %v4605, 5
    %v4608 = vor.u32 %v4604, %v4607
    %v4609 = vrot.slane %v4608, 4
    %v4611 = vshll.u32 %v4468, 16
    %v4613 = vrot.slane %v4611, 5
    %v4614 = vsel %vm537, %v4609, %v4613
    %v4616 = vshrl.u32 %v4453, 16
    %v4618 = vrot.slane %v4616, 4
    %v4619 = vshll.u32 %v4453, 16
    %v4621 = vrot.slane %v4619, 5
    %v4622 = vor.u32 %v4618, %v4621
    %v4623 = vrot.slane %v4622, 4
    %v4625 = vshll.u32 %v4469, 16
    %v4627 = vrot.slane %v4625, 5
    %v4628 = vsel %vm537, %v4623, %v4627
    %v4630 = vshrl.u32 %v4454, 16
    %v4632 = vrot.slane %v4630, 4
    %v4633 = vshll.u32 %v4454, 16
    %v4635 = vrot.slane %v4633, 5
    %v4636 = vor.u32 %v4632, %v4635
    %v4637 = vrot.slane %v4636, 4
    %v4639 = vshll.u32 %v4470, 16
    %v4641 = vrot.slane %v4639, 5
    %v4642 = vsel %vm537, %v4637, %v4641
    %v4644 = vshrl.u32 %v4455, 16
    %v4646 = vrot.slane %v4644, 4
    %v4647 = vshll.u32 %v4455, 16
    %v4649 = vrot.slane %v4647, 5
    %v4650 = vor.u32 %v4646, %v4649
    %v4651 = vrot.slane %v4650, 4
    %v4653 = vshll.u32 %v4471, 16
    %v4655 = vrot.slane %v4653, 5
    %v4656 = vsel %vm537, %v4651, %v4655
    %v4658 = vshrl.u32 %v4456, 16
    %v4660 = vrot.slane %v4658, 4
    %v4661 = vshll.u32 %v4456, 16
    %v4663 = vrot.slane %v4661, 5
    %v4664 = vor.u32 %v4660, %v4663
    %v4665 = vrot.slane %v4664, 4
    %v4667 = vshll.u32 %v4472, 16
    %v4669 = vrot.slane %v4667, 5
    %v4670 = vsel %vm537, %v4665, %v4669
    %v4672 = vshrl.u32 %v4457, 16
    %v4674 = vrot.slane %v4672, 4
    %v4675 = vshll.u32 %v4457, 16
    %v4677 = vrot.slane %v4675, 5
    %v4678 = vor.u32 %v4674, %v4677
    %v4679 = vrot.slane %v4678, 4
    %v4681 = vshll.u32 %v4473, 16
    %v4683 = vrot.slane %v4681, 5
    %v4684 = vsel %vm537, %v4679, %v4683
    %v4686 = vshrl.u32 %v4458, 16
    %v4688 = vrot.slane %v4686, 4
    %v4689 = vshll.u32 %v4458, 16
    %v4691 = vrot.slane %v4689, 5
    %v4692 = vor.u32 %v4688, %v4691
    %v4693 = vrot.slane %v4692, 4
    %v4695 = vshll.u32 %v4474, 16
    %v4697 = vrot.slane %v4695, 5
    %v4698 = vsel %vm537, %v4693, %v4697
    %v4715 = vunpack.c.l.b16 %v4443
    %v4716 = vunpack.c.l.b16 %v4444
    %v4717 = vunpack.c.l.b16 %v4445
    %v4718 = vunpack.c.l.b16 %v4446
    %v4719 = vunpack.c.l.b16 %v4447
    %v4720 = vunpack.c.l.b16 %v4448
    %v4721 = vunpack.c.l.b16 %v4449
    %v4722 = vunpack.c.l.b16 %v4450
    %v4723 = vunpack.c.l.b16 %v4451
    %v4724 = vunpack.c.l.b16 %v4452
    %v4725 = vunpack.c.l.b16 %v4453
    %v4726 = vunpack.c.l.b16 %v4454
    %v4727 = vunpack.c.l.b16 %v4455
    %v4728 = vunpack.c.l.b16 %v4456
    %v4729 = vunpack.c.l.b16 %v4457
    %v4730 = vunpack.c.l.b16 %v4458
    %v4731 = vpack.c.b16 %v4716, %v4715
    %v4732 = vpack.c.b16 %v4718, %v4717
    %v4733 = vpack.c.b16 %v4720, %v4719
    %v4734 = vpack.c.b16 %v4722, %v4721
    %v4735 = vpack.c.b16 %v4724, %v4723
    %v4736 = vpack.c.b16 %v4726, %v4725
    %v4737 = vpack.c.b16 %v4728, %v4727
    %v4738 = vpack.c.b16 %v4730, %v4729
    %v4739 = vunpack.c.l.b16 %v4488
    %v4740 = vunpack.c.l.b16 %v4502
    %v4741 = vunpack.c.l.b16 %v4516
    %v4742 = vunpack.c.l.b16 %v4530
    %v4743 = vunpack.c.l.b16 %v4544
    %v4744 = vunpack.c.l.b16 %v4558
    %v4745 = vunpack.c.l.b16 %v4572
    %v4746 = vunpack.c.l.b16 %v4586
    %v4747 = vunpack.c.l.b16 %v4600
    %v4748 = vunpack.c.l.b16 %v4614
    %v4749 = vunpack.c.l.b16 %v4628
    %v4750 = vunpack.c.l.b16 %v4642
    %v4751 = vunpack.c.l.b16 %v4656
    %v4752 = vunpack.c.l.b16 %v4670
    %v4753 = vunpack.c.l.b16 %v4684
    %v4754 = vunpack.c.l.b16 %v4698
    %v4755 = vpack.c.b16 %v4740, %v4739
    %v4756 = vpack.c.b16 %v4742, %v4741
    %v4757 = vpack.c.b16 %v4744, %v4743
    %v4758 = vpack.c.b16 %v4746, %v4745
    %v4759 = vpack.c.b16 %v4748, %v4747
    %v4760 = vpack.c.b16 %v4750, %v4749
    %v4761 = vpack.c.b16 %v4752, %v4751
    %v4762 = vpack.c.b16 %v4754, %v4753
    %4763 = vrot.lane.b32.xlu0 %v4755, 64
    %v4764 = vpop.permute.xlu0 %4763
    %4765 = vrot.lane.b32.xlu0 %v4756, 64
    %v4766 = vpop.permute.xlu0 %4765
    %4767 = vrot.lane.b32.xlu0 %v4757, 64
    %v4768 = vpop.permute.xlu0 %4767
    %4769 = vrot.lane.b32.xlu0 %v4758, 64
    %v4770 = vpop.permute.xlu0 %4769
    %4771 = vrot.lane.b32.xlu0 %v4759, 64
    %v4772 = vpop.permute.xlu0 %4771
    %4773 = vrot.lane.b32.xlu0 %v4760, 64
    %v4774 = vpop.permute.xlu0 %4773
    %4775 = vrot.lane.b32.xlu0 %v4761, 64
    %v4776 = vpop.permute.xlu0 %4775
    %4777 = vrot.lane.b32.xlu0 %v4762, 64
    %v4778 = vpop.permute.xlu0 %4777
    %v4781 = vsel %vm842, %v4731, %v4764
    %v4785 = vsel %vm842, %v4732, %v4766
    %v4789 = vsel %vm842, %v4733, %v4768
    %v4793 = vsel %vm842, %v4734, %v4770
    %v4797 = vsel %vm842, %v4735, %v4772
    %v4801 = vsel %vm842, %v4736, %v4774
    %v4805 = vsel %vm842, %v4737, %v4776
    %v4809 = vsel %vm842, %v4738, %v4778
    %4811 = vst [vmem:[#allocation3 + $0x18] sm:$0xff] %v4781
    %4812 = vst [vmem:[#allocation3 + $0x40] sm:$0xff] %v4785
    %4813 = vst [vmem:[#allocation3 + $0x68] sm:$0xff] %v4789
    %4814 = vst [vmem:[#allocation3 + $0x90] sm:$0xff] %v4793
    %4815 = vst [vmem:[#allocation3 + $0xb8] sm:$0xff] %v4797
    %4816 = vst [vmem:[#allocation3 + $0xe0] sm:$0xff] %v4801
    %4817 = vst [vmem:[#allocation3 + $0x108] sm:$0xff] %v4805
    %4818 = vst [vmem:[#allocation3 + $0x130] sm:$0xff] %v4809
    %v4819 = vld [vmem:[%s1622] sm:$0xe]
    %v4820 = vld [vmem:[%s1622 + $0x4] sm:$0x1]
    %v4821 = vld [vmem:[%s1622 + $0x8] sm:$0xe]
    %v4822 = vld [vmem:[%s1622 + $0xc] sm:$0x1]
    %v4823 = vld [vmem:[%s1622 + $0x10] sm:$0xe]
    %v4824 = vld [vmem:[%s1622 + $0x14] sm:$0x1]
    %v4825 = vld [vmem:[%s1622 + $0x18] sm:$0xe]
    %v4826 = vld [vmem:[%s1622 + $0x1c] sm:$0x1]
    %v4827 = vld [vmem:[%s1622 + $0x20] sm:$0xe]
    %v4828 = vld [vmem:[%s1622 + $0x24] sm:$0x1]
    %v4829 = vld [vmem:[%s1622 + $0x28] sm:$0xe]
    %v4830 = vld [vmem:[%s1622 + $0x2c] sm:$0x1]
    %v4831 = vld [vmem:[%s1622 + $0x30] sm:$0xe]
    %v4832 = vld [vmem:[%s1622 + $0x34] sm:$0x1]
    %v4833 = vld [vmem:[%s1622 + $0x38] sm:$0xe]
    %v4834 = vld [vmem:[%s1622 + $0x3c] sm:$0x1]
    %v4835 = vld [vmem:[%s1622 + $0x50] sm:$0xe]
    %v4836 = vld [vmem:[%s1622 + $0x54] sm:$0x1]
    %v4837 = vld [vmem:[%s1622 + $0x58] sm:$0xe]
    %v4838 = vld [vmem:[%s1622 + $0x5c] sm:$0x1]
    %v4839 = vld [vmem:[%s1622 + $0x60] sm:$0xe]
    %v4840 = vld [vmem:[%s1622 + $0x64] sm:$0x1]
    %v4841 = vld [vmem:[%s1622 + $0x68] sm:$0xe]
    %v4842 = vld [vmem:[%s1622 + $0x6c] sm:$0x1]
    %v4843 = vld [vmem:[%s1622 + $0x70] sm:$0xe]
    %v4844 = vld [vmem:[%s1622 + $0x74] sm:$0x1]
    %v4845 = vld [vmem:[%s1622 + $0x78] sm:$0xe]
    %v4846 = vld [vmem:[%s1622 + $0x7c] sm:$0x1]
    %v4847 = vld [vmem:[%s1622 + $0x80] sm:$0xe]
    %v4848 = vld [vmem:[%s1622 + $0x84] sm:$0x1]
    %v4849 = vld [vmem:[%s1622 + $0x88] sm:$0xe]
    %v4850 = vld [vmem:[%s1622 + $0x8c] sm:$0x1]
    %v4883 = vrot.slane %v4819, 5
    %v4884 = vrot.slane %v4883, 4
    %v4885 = vrot.slane %v4820, 5
    %v4886 = vsel %vm949, %v4884, %v4885
    %v4887 = vrot.slane %v4821, 5
    %v4888 = vrot.slane %v4887, 4
    %v4889 = vrot.slane %v4822, 5
    %v4890 = vsel %vm949, %v4888, %v4889
    %v4891 = vrot.slane %v4823, 5
    %v4892 = vrot.slane %v4891, 4
    %v4893 = vrot.slane %v4824, 5
    %v4894 = vsel %vm949, %v4892, %v4893
    %v4895 = vrot.slane %v4825, 5
    %v4896 = vrot.slane %v4895, 4
    %v4897 = vrot.slane %v4826, 5
    %v4898 = vsel %vm949, %v4896, %v4897
    %v4899 = vrot.slane %v4827, 5
    %v4900 = vrot.slane %v4899, 4
    %v4901 = vrot.slane %v4828, 5
    %v4902 = vsel %vm949, %v4900, %v4901
    %v4903 = vrot.slane %v4829, 5
    %v4904 = vrot.slane %v4903, 4
    %v4905 = vrot.slane %v4830, 5
    %v4906 = vsel %vm949, %v4904, %v4905
    %v4907 = vrot.slane %v4831, 5
    %v4908 = vrot.slane %v4907, 4
    %v4909 = vrot.slane %v4832, 5
    %v4910 = vsel %vm949, %v4908, %v4909
    %v4911 = vrot.slane %v4833, 5
    %v4912 = vrot.slane %v4911, 4
    %v4913 = vrot.slane %v4834, 5
    %v4914 = vsel %vm949, %v4912, %v4913
    %v4915 = vrot.slane %v4835, 5
    %v4916 = vrot.slane %v4915, 4
    %v4917 = vrot.slane %v4836, 5
    %v4918 = vsel %vm949, %v4916, %v4917
    %v4919 = vrot.slane %v4837, 5
    %v4920 = vrot.slane %v4919, 4
    %v4921 = vrot.slane %v4838, 5
    %v4922 = vsel %vm949, %v4920, %v4921
    %v4923 = vrot.slane %v4839, 5
    %v4924 = vrot.slane %v4923, 4
    %v4925 = vrot.slane %v4840, 5
    %v4926 = vsel %vm949, %v4924, %v4925
    %v4927 = vrot.slane %v4841, 5
    %v4928 = vrot.slane %v4927, 4
    %v4929 = vrot.slane %v4842, 5
    %v4930 = vsel %vm949, %v4928, %v4929
    %v4931 = vrot.slane %v4843, 5
    %v4932 = vrot.slane %v4931, 4
    %v4933 = vrot.slane %v4844, 5
    %v4934 = vsel %vm949, %v4932, %v4933
    %v4935 = vrot.slane %v4845, 5
    %v4936 = vrot.slane %v4935, 4
    %v4937 = vrot.slane %v4846, 5
    %v4938 = vsel %vm949, %v4936, %v4937
    %v4939 = vrot.slane %v4847, 5
    %v4940 = vrot.slane %v4939, 4
    %v4941 = vrot.slane %v4848, 5
    %v4942 = vsel %vm949, %v4940, %v4941
    %v4943 = vrot.slane %v4849, 5
    %v4944 = vrot.slane %v4943, 4
    %v4945 = vrot.slane %v4850, 5
    %v4946 = vsel %vm949, %v4944, %v4945
    %v4947 = vunpack.c.l.b16 %v4886
    %v4948 = vunpack.c.l.b16 %v4890
    %v4949 = vunpack.c.l.b16 %v4894
    %v4950 = vunpack.c.l.b16 %v4898
    %v4951 = vunpack.c.l.b16 %v4902
    %v4952 = vunpack.c.l.b16 %v4906
    %v4953 = vunpack.c.l.b16 %v4910
    %v4954 = vunpack.c.l.b16 %v4914
    %v4955 = vunpack.c.l.b16 %v4918
    %v4956 = vunpack.c.l.b16 %v4922
    %v4957 = vunpack.c.l.b16 %v4926
    %v4958 = vunpack.c.l.b16 %v4930
    %v4959 = vunpack.c.l.b16 %v4934
    %v4960 = vunpack.c.l.b16 %v4938
    %v4961 = vunpack.c.l.b16 %v4942
    %v4962 = vunpack.c.l.b16 %v4946
    %v4963 = vpack.c.b16 %v4948, %v4947
    %v4964 = vpack.c.b16 %v4950, %v4949
    %v4965 = vpack.c.b16 %v4952, %v4951
    %v4966 = vpack.c.b16 %v4954, %v4953
    %v4967 = vpack.c.b16 %v4956, %v4955
    %v4968 = vpack.c.b16 %v4958, %v4957
    %v4969 = vpack.c.b16 %v4960, %v4959
    %v4970 = vpack.c.b16 %v4962, %v4961
    %4979 = vst.msk [vmem:[#allocation3 + $0x20] sm:$0xff] %vm842, %v4963
    %4980 = vst.msk [vmem:[#allocation3 + $0x48] sm:$0xff] %vm842, %v4964
    %4981 = vst.msk [vmem:[#allocation3 + $0x70] sm:$0xff] %vm842, %v4965
    %4982 = vst.msk [vmem:[#allocation3 + $0x98] sm:$0xff] %vm842, %v4966
    %4983 = vst.msk [vmem:[#allocation3 + $0xc0] sm:$0xff] %vm842, %v4967
    %4984 = vst.msk [vmem:[#allocation3 + $0xe8] sm:$0xff] %vm842, %v4968
    %4985 = vst.msk [vmem:[#allocation3 + $0x110] sm:$0xff] %vm842, %v4969
    %4986 = vst.msk [vmem:[#allocation3 + $0x138] sm:$0xff] %vm842, %v4970
    %v4987 = vld [vmem:[#allocation3] sm:$0xff]
    %v4988 = vld [vmem:[#allocation3 + $0x8] sm:$0xff]
    %v4989 = vld [vmem:[#allocation3 + $0x10] sm:$0xff]
    %v4990 = vld [vmem:[#allocation3 + $0x18] sm:$0xff]
    %v4991 = vld [vmem:[#allocation3 + $0x20] sm:$0xff]
    %v4992 = vld [vmem:[#allocation3 + $0x28] sm:$0xff]
    %v4993 = vld [vmem:[#allocation3 + $0x30] sm:$0xff]
    %v4994 = vld [vmem:[#allocation3 + $0x38] sm:$0xff]
    %v4995 = vld [vmem:[#allocation3 + $0x40] sm:$0xff]
    %v4996 = vld [vmem:[#allocation3 + $0x48] sm:$0xff]
    %v4997 = vld [vmem:[#allocation3 + $0x50] sm:$0xff]
    %v4998 = vld [vmem:[#allocation3 + $0x58] sm:$0xff]
    %v4999 = vld [vmem:[#allocation3 + $0x60] sm:$0xff]
    %v5000 = vld [vmem:[#allocation3 + $0x68] sm:$0xff]
    %v5001 = vld [vmem:[#allocation3 + $0x70] sm:$0xff]
    %v5002 = vld [vmem:[#allocation3 + $0x78] sm:$0xff]
    %v5003 = vld [vmem:[#allocation3 + $0x80] sm:$0xff]
    %v5004 = vld [vmem:[#allocation3 + $0x88] sm:$0xff]
    %v5005 = vld [vmem:[#allocation3 + $0x90] sm:$0xff]
    %v5006 = vld [vmem:[#allocation3 + $0x98] sm:$0xff]
    %v5007 = vld [vmem:[#allocation3 + $0xa0] sm:$0xff]
    %v5008 = vld [vmem:[#allocation3 + $0xa8] sm:$0xff]
    %v5009 = vld [vmem:[#allocation3 + $0xb0] sm:$0xff]
    %v5010 = vld [vmem:[#allocation3 + $0xb8] sm:$0xff]
    %v5011 = vld [vmem:[#allocation3 + $0xc0] sm:$0xff]
    %v5012 = vld [vmem:[#allocation3 + $0xc8] sm:$0xff]
    %v5013 = vld [vmem:[#allocation3 + $0xd0] sm:$0xff]
    %v5014 = vld [vmem:[#allocation3 + $0xd8] sm:$0xff]
    %v5015 = vld [vmem:[#allocation3 + $0xe0] sm:$0xff]
    %v5016 = vld [vmem:[#allocation3 + $0xe8] sm:$0xff]
    %v5017 = vld [vmem:[#allocation3 + $0xf0] sm:$0xff]
    %v5018 = vld [vmem:[#allocation3 + $0xf8] sm:$0xff]
    %v5019 = vld [vmem:[#allocation3 + $0x100] sm:$0xff]
    %v5020 = vld [vmem:[#allocation3 + $0x108] sm:$0xff]
    %v5021 = vld [vmem:[#allocation3 + $0x110] sm:$0xff]
    %v5022 = vld [vmem:[#allocation3 + $0x118] sm:$0xff]
    %v5023 = vld [vmem:[#allocation3 + $0x120] sm:$0xff]
    %v5024 = vld [vmem:[#allocation3 + $0x128] sm:$0xff]
    %v5025 = vld [vmem:[#allocation3 + $0x130] sm:$0xff]
    %v5026 = vld [vmem:[#allocation3 + $0x138] sm:$0xff]
    %v5027 = vld [vmem:[%s3] sm:$0xf]
    %v5028 = vld [vmem:[%s3 + $0x4] sm:$0xf]
    %v5029 = vld [vmem:[%s3 + $0x8] sm:$0xf]
    %v5030 = vld [vmem:[%s3 + $0xc] sm:$0xf]
    %v5031 = vld [vmem:[%s3 + $0x10] sm:$0xf]
    %v5032 = vld [vmem:[%s3 + $0x14] sm:$0xf]
    %v5033 = vld [vmem:[%s3 + $0x18] sm:$0xf]
    %v5034 = vld [vmem:[%s3 + $0x1c] sm:$0xf]
    %v5035 = vld [vmem:[%s3 + $0x20] sm:$0xf]
    %v5036 = vld [vmem:[%s3 + $0x24] sm:$0xf]
    %v5037 = vld [vmem:[%s3 + $0x28] sm:$0xf]
    %v5038 = vld [vmem:[%s3 + $0x2c] sm:$0xf]
    %v5039 = vld [vmem:[%s3 + $0x30] sm:$0xf]
    %v5040 = vld [vmem:[%s3 + $0x34] sm:$0xf]
    %v5041 = vld [vmem:[%s3 + $0x38] sm:$0xf]
    %v5042 = vld [vmem:[%s3 + $0x3c] sm:$0xf]
    %v5043 = vld [vmem:[%s3 + $0x40] sm:$0xf]
    %v5044 = vld [vmem:[%s3 + $0x44] sm:$0xf]
    %v5045 = vld [vmem:[%s3 + $0x48] sm:$0xf]
    %v5046 = vld [vmem:[%s3 + $0x4c] sm:$0xf]
    %v5047 = vld [vmem:[%s3 + $0x50] sm:$0xf]
    %v5048 = vld [vmem:[%s3 + $0x54] sm:$0xf]
    %v5049 = vld [vmem:[%s3 + $0x58] sm:$0xf]
    %v5050 = vld [vmem:[%s3 + $0x5c] sm:$0xf]
    %v5051 = vld [vmem:[%s3 + $0x60] sm:$0xf]
    %v5052 = vld [vmem:[%s3 + $0x64] sm:$0xf]
    %v5053 = vld [vmem:[%s3 + $0x68] sm:$0xf]
    %v5054 = vld [vmem:[%s3 + $0x6c] sm:$0xf]
    %v5055 = vld [vmem:[%s3 + $0x70] sm:$0xf]
    %v5056 = vld [vmem:[%s3 + $0x74] sm:$0xf]
    %v5057 = vld [vmem:[%s3 + $0x78] sm:$0xf]
    %v5058 = vld [vmem:[%s3 + $0x7c] sm:$0xf]
    %v5059 = vld [vmem:[%s3 + $0x80] sm:$0xf]
    %v5060 = vld [vmem:[%s3 + $0x84] sm:$0xf]
    %v5061 = vld [vmem:[%s3 + $0x88] sm:$0xf]
    %v5062 = vld [vmem:[%s3 + $0x8c] sm:$0xf]
    %v5063 = vld [vmem:[%s3 + $0x90] sm:$0xf]
    %v5064 = vld [vmem:[%s3 + $0x94] sm:$0xf]
    %v5065 = vld [vmem:[%s3 + $0x98] sm:$0xf]
    %v5066 = vld [vmem:[%s3 + $0x9c] sm:$0xf]
    %v5067 = vld [vmem:[%s3 + $0xa0] sm:$0xf]
    %v5068 = vld [vmem:[%s3 + $0xa4] sm:$0xf]
    %v5069 = vld [vmem:[%s3 + $0xa8] sm:$0xf]
    %v5070 = vld [vmem:[%s3 + $0xac] sm:$0xf]
    %v5071 = vld [vmem:[%s3 + $0xb0] sm:$0xf]
    %v5072 = vld [vmem:[%s3 + $0xb4] sm:$0xf]
    %v5073 = vld [vmem:[%s3 + $0xb8] sm:$0xf]
    %v5074 = vld [vmem:[%s3 + $0xbc] sm:$0xf]
    %v5075 = vld [vmem:[%s3 + $0xc0] sm:$0xf]
    %v5076 = vld [vmem:[%s3 + $0xc4] sm:$0xf]
    %v5077 = vld [vmem:[%s3 + $0xc8] sm:$0xf]
    %v5078 = vld [vmem:[%s3 + $0xcc] sm:$0xf]
    %v5079 = vld [vmem:[%s3 + $0xd0] sm:$0xf]
    %v5080 = vld [vmem:[%s3 + $0xd4] sm:$0xf]
    %v5081 = vld [vmem:[%s3 + $0xd8] sm:$0xf]
    %v5082 = vld [vmem:[%s3 + $0xdc] sm:$0xf]
    %v5083 = vld [vmem:[%s3 + $0xe0] sm:$0xf]
    %v5084 = vld [vmem:[%s3 + $0xe4] sm:$0xf]
    %v5085 = vld [vmem:[%s3 + $0xe8] sm:$0xf]
    %v5086 = vld [vmem:[%s3 + $0xec] sm:$0xf]
    %v5087 = vld [vmem:[%s3 + $0xf0] sm:$0xf]
    %v5088 = vld [vmem:[%s3 + $0xf4] sm:$0xf]
    %v5089 = vld [vmem:[%s3 + $0xf8] sm:$0xf]
    %v5090 = vld [vmem:[%s3 + $0xfc] sm:$0xf]
    %v5091 = vld [vmem:[%s3 + $0x100] sm:$0xf]
    %v5092 = vld [vmem:[%s3 + $0x104] sm:$0xf]
    %v5093 = vld [vmem:[%s3 + $0x108] sm:$0xf]
    %v5094 = vld [vmem:[%s3 + $0x10c] sm:$0xf]
    %v5095 = vld [vmem:[%s3 + $0x110] sm:$0xf]
    %v5096 = vld [vmem:[%s3 + $0x114] sm:$0xf]
    %v5097 = vld [vmem:[%s3 + $0x118] sm:$0xf]
    %v5098 = vld [vmem:[%s3 + $0x11c] sm:$0xf]
    %v5099 = vld [vmem:[%s4] sm:$0x1]
    %v5101 = vlaneseq
    %v5102 = vshrl.u32 %v5101, 7
    %v5103 = vsub.s32 0, %v5102
    %v5104 = vrot.slane %v5099, %v5103
    %v5178 = vunpack.c.l.b16 %v5027
    %v5179 = vunpack.c.l.b16 %v5028
    %v5180 = vunpack.c.l.b16 %v5029
    %v5181 = vunpack.c.l.b16 %v5030
    %v5182 = vunpack.c.l.b16 %v5031
    %v5183 = vunpack.c.l.b16 %v5032
    %v5184 = vunpack.c.l.b16 %v5033
    %v5185 = vunpack.c.l.b16 %v5034
    %v5186 = vunpack.c.l.b16 %v5035
    %v5187 = vunpack.c.l.b16 %v5036
    %v5188 = vunpack.c.l.b16 %v5037
    %v5189 = vunpack.c.l.b16 %v5038
    %v5190 = vunpack.c.l.b16 %v5039
    %v5191 = vunpack.c.l.b16 %v5040
    %v5192 = vunpack.c.l.b16 %v5041
    %v5193 = vunpack.c.l.b16 %v5042
    %v5194 = vunpack.c.l.b16 %v5043
    %v5195 = vunpack.c.l.b16 %v5044
    %v5196 = vunpack.c.l.b16 %v5045
    %v5197 = vunpack.c.l.b16 %v5046
    %v5198 = vunpack.c.l.b16 %v5047
    %v5199 = vunpack.c.l.b16 %v5048
    %v5200 = vunpack.c.l.b16 %v5049
    %v5201 = vunpack.c.l.b16 %v5050
    %v5202 = vunpack.c.l.b16 %v5051
    %v5203 = vunpack.c.l.b16 %v5052
    %v5204 = vunpack.c.l.b16 %v5053
    %v5205 = vunpack.c.l.b16 %v5054
    %v5206 = vunpack.c.l.b16 %v5055
    %v5207 = vunpack.c.l.b16 %v5056
    %v5208 = vunpack.c.l.b16 %v5057
    %v5209 = vunpack.c.l.b16 %v5058
    %v5210 = vunpack.c.l.b16 %v5059
    %v5211 = vunpack.c.l.b16 %v5060
    %v5212 = vunpack.c.l.b16 %v5061
    %v5213 = vunpack.c.l.b16 %v5062
    %v5214 = vunpack.c.l.b16 %v5063
    %v5215 = vunpack.c.l.b16 %v5064
    %v5216 = vunpack.c.l.b16 %v5065
    %v5217 = vunpack.c.l.b16 %v5066
    %v5218 = vunpack.c.l.b16 %v5067
    %v5219 = vunpack.c.l.b16 %v5068
    %v5220 = vunpack.c.l.b16 %v5069
    %v5221 = vunpack.c.l.b16 %v5070
    %v5222 = vunpack.c.l.b16 %v5071
    %v5223 = vunpack.c.l.b16 %v5072
    %v5224 = vunpack.c.l.b16 %v5073
    %v5225 = vunpack.c.l.b16 %v5074
    %v5226 = vunpack.c.l.b16 %v5075
    %v5227 = vunpack.c.l.b16 %v5076
    %v5228 = vunpack.c.l.b16 %v5077
    %v5229 = vunpack.c.l.b16 %v5078
    %v5230 = vunpack.c.l.b16 %v5079
    %v5231 = vunpack.c.l.b16 %v5080
    %v5232 = vunpack.c.l.b16 %v5081
    %v5233 = vunpack.c.l.b16 %v5082
    %v5234 = vunpack.c.l.b16 %v5083
    %v5235 = vunpack.c.l.b16 %v5084
    %v5236 = vunpack.c.l.b16 %v5085
    %v5237 = vunpack.c.l.b16 %v5086
    %v5238 = vunpack.c.l.b16 %v5087
    %v5239 = vunpack.c.l.b16 %v5088
    %v5240 = vunpack.c.l.b16 %v5089
    %v5241 = vunpack.c.l.b16 %v5090
    %v5242 = vunpack.c.l.b16 %v5091
    %v5243 = vunpack.c.l.b16 %v5092
    %v5244 = vunpack.c.l.b16 %v5093
    %v5245 = vunpack.c.l.b16 %v5094
    %v5246 = vunpack.c.l.b16 %v5095
    %v5247 = vunpack.c.l.b16 %v5096
    %v5248 = vunpack.c.l.b16 %v5097
    %v5249 = vunpack.c.l.b16 %v5098
    %v5250 = vpack.c.b16 %v5179, %v5178
    %v5251 = vpack.c.b16 %v5181, %v5180
    %v5252 = vpack.c.b16 %v5183, %v5182
    %v5253 = vpack.c.b16 %v5185, %v5184
    %v5254 = vpack.c.b16 %v5187, %v5186
    %v5255 = vpack.c.b16 %v5189, %v5188
    %v5256 = vpack.c.b16 %v5191, %v5190
    %v5257 = vpack.c.b16 %v5193, %v5192
    %v5258 = vpack.c.b16 %v5195, %v5194
    %v5259 = vpack.c.b16 %v5197, %v5196
    %v5260 = vpack.c.b16 %v5199, %v5198
    %v5261 = vpack.c.b16 %v5201, %v5200
    %v5262 = vpack.c.b16 %v5203, %v5202
    %v5263 = vpack.c.b16 %v5205, %v5204
    %v5264 = vpack.c.b16 %v5207, %v5206
    %v5265 = vpack.c.b16 %v5209, %v5208
    %v5266 = vpack.c.b16 %v5211, %v5210
    %v5267 = vpack.c.b16 %v5213, %v5212
    %v5268 = vpack.c.b16 %v5215, %v5214
    %v5269 = vpack.c.b16 %v5217, %v5216
    %v5270 = vpack.c.b16 %v5219, %v5218
    %v5271 = vpack.c.b16 %v5221, %v5220
    %v5272 = vpack.c.b16 %v5223, %v5222
    %v5273 = vpack.c.b16 %v5225, %v5224
    %v5274 = vpack.c.b16 %v5227, %v5226
    %v5275 = vpack.c.b16 %v5229, %v5228
    %v5276 = vpack.c.b16 %v5231, %v5230
    %v5277 = vpack.c.b16 %v5233, %v5232
    %v5278 = vpack.c.b16 %v5235, %v5234
    %v5279 = vpack.c.b16 %v5237, %v5236
    %v5280 = vpack.c.b16 %v5239, %v5238
    %v5281 = vpack.c.b16 %v5241, %v5240
    %v5282 = vpack.c.b16 %v5243, %v5242
    %v5283 = vpack.c.b16 %v5245, %v5244
    %v5284 = vpack.c.b16 %v5247, %v5246
    %v5285 = vpack.c.b16 %v5249, %v5248
    %v5323 = vsel %vm842, %v4991, 0
    %v5326 = vsel %vm842, %v4996, 0
    %v5329 = vsel %vm842, %v5001, 0
    %v5332 = vsel %vm842, %v5006, 0
    %v5335 = vsel %vm842, %v5011, 0
    %v5338 = vsel %vm842, %v5016, 0
    %v5341 = vsel %vm842, %v5021, 0
    %v5344 = vsel %vm842, %v5026, 0
    %5346 = vmatprep.subr.bf16.mxu0 0
    %5347 = vmatpush1.bf16.msra.mxu0 %v5250
    %5348 = vmatprep.subr.bf16.mxu0 0
    %5349 = vmatpush1.bf16.msra.mxu0 %v5251
    %5350 = vmatprep.subr.bf16.mxu0 0
    %5351 = vmatpush1.bf16.msra.mxu0 %v5252
    %5352 = vmatprep.subr.bf16.mxu0 0
    %5353 = vmatpush1.bf16.msra.mxu0 %v5253
    %5354 = vmatprep.subr.bf16.mxu0 0
    %5355 = vmatpush1.bf16.msra.mxu0 %v5254
    %5356 = vmatprep.subr.bf16.mxu0 0
    %5357 = vmatpush1.bf16.msra.mxu0 %v5255
    %5358 = vmatprep.subr.bf16.mxu0 0
    %5359 = vmatpush1.bf16.msra.mxu0 %v5256
    %5360 = vmatprep.subr.bf16.mxu0 0
    %5361 = vmatpush1.bf16.msra.mxu0 %v5257
    %5362 = vmatprep.subr.bf16.mxu0 0
    %5363 = vmatpush1.bf16.msra.mxu0 %v5258
    %5364 = vmatprep.subr.bf16.mxu0 0
    %5365 = vmatpush1.bf16.msra.mxu0 %v5259
    %5366 = vmatprep.subr.bf16.mxu0 0
    %5367 = vmatpush1.bf16.msra.mxu0 %v5260
    %5368 = vmatprep.subr.bf16.mxu0 0
    %5369 = vmatpush1.bf16.msra.mxu0 %v5261
    %5370 = vmatprep.subr.bf16.mxu0 0
    %5371 = vmatpush1.bf16.msra.mxu0 %v5262
    %5372 = vmatprep.subr.bf16.mxu0 0
    %5373 = vmatpush1.bf16.msra.mxu0 %v5263
    %5374 = vmatprep.subr.bf16.mxu0 0
    %5375 = vmatpush1.bf16.msra.mxu0 %v5264
    %5376 = vmatprep.subr.bf16.mxu0 0
    %5377 = vmatpush1.bf16.msra.mxu0 %v5265
    %5378 = vmatprep.mubr.bf16.mxu0 %v4988
    %5379 = vmatmul.mubr.bf16.gmra.mrb[0].mxu0 %v4987
    %v5380 = vpop.f32.mrb[0].mxu0
    %v5381 = vadd.f32 %v5104, %v5380
    %v5382 = vpop.f32.mrb[0].mxu0
    %v5383 = vpop.f32.mrb[0].mxu0
    %v5384 = vadd.f32 %v5104, %v5383
    %v5385 = vpop.f32.mrb[0].mxu0
    %5386 = vmatprep.mubr.bf16.mxu0 %v4993
    %5387 = vmatmul.mubr.bf16.gmra.mrb[0].mxu0 %v4992
    %v5388 = vpop.f32.mrb[0].mxu0
    %v5389 = vadd.f32 %v5104, %v5388
    %v5390 = vpop.f32.mrb[0].mxu0
    %v5391 = vpop.f32.mrb[0].mxu0
    %v5392 = vadd.f32 %v5104, %v5391
    %v5393 = vpop.f32.mrb[0].mxu0
    %5394 = vmatprep.mubr.bf16.mxu0 %v4998
    %5395 = vmatmul.mubr.bf16.gmra.mrb[0].mxu0 %v4997
    %v5396 = vpop.f32.mrb[0].mxu0
    %v5397 = vadd.f32 %v5104, %v5396
    %v5398 = vpop.f32.mrb[0].mxu0
    %v5399 = vpop.f32.mrb[0].mxu0
    %v5400 = vadd.f32 %v5104, %v5399
    %v5401 = vpop.f32.mrb[0].mxu0
    %5402 = vmatprep.mubr.bf16.mxu0 %v5003
    %5403 = vmatmul.mubr.bf16.gmra.mrb[0].mxu0 %v5002
    %v5404 = vpop.f32.mrb[0].mxu0
    %v5405 = vadd.f32 %v5104, %v5404
    %v5406 = vpop.f32.mrb[0].mxu0
    %v5407 = vpop.f32.mrb[0].mxu0
    %v5408 = vadd.f32 %v5104, %v5407
    %v5409 = vpop.f32.mrb[0].mxu0
    %5410 = vmatprep.mubr.bf16.mxu0 %v5008
    %5411 = vmatmul.mubr.bf16.gmra.mrb[0].mxu0 %v5007
    %v5412 = vpop.f32.mrb[0].mxu0
    %v5413 = vadd.f32 %v5104, %v5412
    %v5414 = vpop.f32.mrb[0].mxu0
    %v5415 = vpop.f32.mrb[0].mxu0
    %v5416 = vadd.f32 %v5104, %v5415
    %v5417 = vpop.f32.mrb[0].mxu0
    %5418 = vmatprep.mubr.bf16.mxu0 %v5013
    %5419 = vmatmul.mubr.bf16.gmra.mrb[0].mxu0 %v5012
    %v5420 = vpop.f32.mrb[0].mxu0
    %v5421 = vadd.f32 %v5104, %v5420
    %v5422 = vpop.f32.mrb[0].mxu0
    %v5423 = vpop.f32.mrb[0].mxu0
    %v5424 = vadd.f32 %v5104, %v5423
    %v5425 = vpop.f32.mrb[0].mxu0
    %5426 = vmatprep.mubr.bf16.mxu0 %v5018
    %5427 = vmatmul.mubr.bf16.gmra.mrb[0].mxu0 %v5017
    %v5428 = vpop.f32.mrb[0].mxu0
    %v5429 = vadd.f32 %v5104, %v5428
    %v5430 = vpop.f32.mrb[0].mxu0
    %v5431 = vpop.f32.mrb[0].mxu0
    %v5432 = vadd.f32 %v5104, %v5431
    %v5433 = vpop.f32.mrb[0].mxu0
    %5434 = vmatprep.mubr.bf16.mxu0 %v5023
    %5435 = vmatmul.mubr.bf16.gmra.mrb[0].mxu0 %v5022
    %v5436 = vpop.f32.mrb[0].mxu0
    %v5437 = vadd.f32 %v5104, %v5436
    %v5438 = vpop.f32.mrb[0].mxu0
    %v5439 = vpop.f32.mrb[0].mxu0
    %v5440 = vadd.f32 %v5104, %v5439
    %v5441 = vpop.f32.mrb[0].mxu0
    %5442 = vdwg.mxu0
    %5443 = vmatprep.subr.bf16.mxu0 0
    %5444 = vmatpush1.bf16.msra.mxu0 %v5266
    %5445 = vmatprep.subr.bf16.mxu0 0
    %5446 = vmatpush1.bf16.msra.mxu0 %v5267
    %5447 = vmatprep.subr.bf16.mxu0 0
    %5448 = vmatpush1.bf16.msra.mxu0 %v5268
    %5449 = vmatprep.subr.bf16.mxu0 0
    %5450 = vmatpush1.bf16.msra.mxu0 %v5269
    %5451 = vmatprep.subr.bf16.mxu0 0
    %5452 = vmatpush1.bf16.msra.mxu0 %v5270
    %5453 = vmatprep.subr.bf16.mxu0 0
    %5454 = vmatpush1.bf16.msra.mxu0 %v5271
    %5455 = vmatprep.subr.bf16.mxu0 0
    %5456 = vmatpush1.bf16.msra.mxu0 %v5272
    %5457 = vmatprep.subr.bf16.mxu0 0
    %5458 = vmatpush1.bf16.msra.mxu0 %v5273
    %5459 = vmatprep.subr.bf16.mxu0 0
    %5460 = vmatpush1.bf16.msra.mxu0 %v5274
    %5461 = vmatprep.subr.bf16.mxu0 0
    %5462 = vmatpush1.bf16.msra.mxu0 %v5275
    %5463 = vmatprep.subr.bf16.mxu0 0
    %5464 = vmatpush1.bf16.msra.mxu0 %v5276
    %5465 = vmatprep.subr.bf16.mxu0 0
    %5466 = vmatpush1.bf16.msra.mxu0 %v5277
    %5467 = vmatprep.subr.bf16.mxu0 0
    %5468 = vmatpush1.bf16.msra.mxu0 %v5278
    %5469 = vmatprep.subr.bf16.mxu0 0
    %5470 = vmatpush1.bf16.msra.mxu0 %v5279
    %5471 = vmatprep.subr.bf16.mxu0 0
    %5472 = vmatpush1.bf16.msra.mxu0 %v5280
    %5473 = vmatprep.subr.bf16.mxu0 0
    %5474 = vmatpush1.bf16.msra.mxu0 %v5281
    %5475 = vmatprep.mubr.bf16.mxu0 %v4990
    %5476 = vmatmul.mubr.bf16.gmra.mrb[0].mxu0 %v4989
    %v5477 = vpop.f32.mrb[0].mxu0
    %v5478 = vadd.f32 %v5381, %v5477
    %v5479 = vpop.f32.mrb[0].mxu0
    %v5480 = vpop.f32.mrb[0].mxu0
    %v5481 = vadd.f32 %v5384, %v5480
    %v5482 = vpop.f32.mrb[0].mxu0
    %5483 = vmatprep.mubr.bf16.mxu0 %v4995
    %5484 = vmatmul.mubr.bf16.gmra.mrb[0].mxu0 %v4994
    %v5485 = vpop.f32.mrb[0].mxu0
    %v5486 = vadd.f32 %v5389, %v5485
    %v5487 = vpop.f32.mrb[0].mxu0
    %v5488 = vpop.f32.mrb[0].mxu0
    %v5489 = vadd.f32 %v5392, %v5488
    %v5490 = vpop.f32.mrb[0].mxu0
    %5491 = vmatprep.mubr.bf16.mxu0 %v5000
    %5492 = vmatmul.mubr.bf16.gmra.mrb[0].mxu0 %v4999
    %v5493 = vpop.f32.mrb[0].mxu0
    %v5494 = vadd.f32 %v5397, %v5493
    %v5495 = vpop.f32.mrb[0].mxu0
    %v5496 = vpop.f32.mrb[0].mxu0
    %v5497 = vadd.f32 %v5400, %v5496
    %v5498 = vpop.f32.mrb[0].mxu0
    %5499 = vmatprep.mubr.bf16.mxu0 %v5005
    %5500 = vmatmul.mubr.bf16.gmra.mrb[0].mxu0 %v5004
    %v5501 = vpop.f32.mrb[0].mxu0
    %v5502 = vadd.f32 %v5405, %v5501
    %v5503 = vpop.f32.mrb[0].mxu0
    %v5504 = vpop.f32.mrb[0].mxu0
    %v5505 = vadd.f32 %v5408, %v5504
    %v5506 = vpop.f32.mrb[0].mxu0
    %5507 = vmatprep.mubr.bf16.mxu0 %v5010
    %5508 = vmatmul.mubr.bf16.gmra.mrb[0].mxu0 %v5009
    %v5509 = vpop.f32.mrb[0].mxu0
    %v5510 = vadd.f32 %v5413, %v5509
    %v5511 = vpop.f32.mrb[0].mxu0
    %v5512 = vpop.f32.mrb[0].mxu0
    %v5513 = vadd.f32 %v5416, %v5512
    %v5514 = vpop.f32.mrb[0].mxu0
    %5515 = vmatprep.mubr.bf16.mxu0 %v5015
    %5516 = vmatmul.mubr.bf16.gmra.mrb[0].mxu0 %v5014
    %v5517 = vpop.f32.mrb[0].mxu0
    %v5518 = vadd.f32 %v5421, %v5517
    %v5519 = vpop.f32.mrb[0].mxu0
    %v5520 = vpop.f32.mrb[0].mxu0
    %v5521 = vadd.f32 %v5424, %v5520
    %v5522 = vpop.f32.mrb[0].mxu0
    %5523 = vmatprep.mubr.bf16.mxu0 %v5020
    %5524 = vmatmul.mubr.bf16.gmra.mrb[0].mxu0 %v5019
    %v5525 = vpop.f32.mrb[0].mxu0
    %v5526 = vadd.f32 %v5429, %v5525
    %v5527 = vpop.f32.mrb[0].mxu0
    %v5528 = vpop.f32.mrb[0].mxu0
    %v5529 = vadd.f32 %v5432, %v5528
    %v5530 = vpop.f32.mrb[0].mxu0
    %5531 = vmatprep.mubr.bf16.mxu0 %v5025
    %5532 = vmatmul.mubr.bf16.gmra.mrb[0].mxu0 %v5024
    %v5533 = vpop.f32.mrb[0].mxu0
    %v5534 = vadd.f32 %v5437, %v5533
    %v5535 = vpop.f32.mrb[0].mxu0
    %v5536 = vpop.f32.mrb[0].mxu0
    %v5537 = vadd.f32 %v5440, %v5536
    %v5538 = vpop.f32.mrb[0].mxu0
    %5539 = vdwg.mxu0
    %5540 = vmatprep.subr.bf16.mxu0 0
    %5541 = vmatpush1.bf16.msra.mxu0 %v5282
    %5542 = vmatprep.subr.bf16.mxu0 0
    %5543 = vmatpush1.bf16.msra.mxu0 %v5283
    %5544 = vmatprep.subr.bf16.mxu0 0
    %5545 = vmatpush1.bf16.msra.mxu0 %v5284
    %5546 = vmatprep.subr.bf16.mxu0 0
    %5547 = vmatpush1.bf16.msra.mxu0 %v5285
    %5548 = vmatprep.subr.bf16.mxu0 0
    %5549 = vmatpush1.bf16.msra.mxu0 0
    %5550 = vmatprep.subr.bf16.mxu0 0
    %5551 = vmatpush1.bf16.msra.mxu0 0
    %5552 = vmatprep.subr.bf16.mxu0 0
    %5553 = vmatpush1.bf16.msra.mxu0 0
    %5554 = vmatprep.subr.bf16.mxu0 0
    %5555 = vmatpush1.bf16.msra.mxu0 0
    %5556 = vmatprep.subr.bf16.mxu0 0
    %5557 = vmatpush1.bf16.msra.mxu0 0
    %5558 = vmatprep.subr.bf16.mxu0 0
    %5559 = vmatpush1.bf16.msra.mxu0 0
    %5560 = vmatprep.subr.bf16.mxu0 0
    %5561 = vmatpush1.bf16.msra.mxu0 0
    %5562 = vmatprep.subr.bf16.mxu0 0
    %5563 = vmatpush1.bf16.msra.mxu0 0
    %5564 = vmatprep.subr.bf16.mxu0 0
    %5565 = vmatpush1.bf16.msra.mxu0 0
    %5566 = vmatprep.subr.bf16.mxu0 0
    %5567 = vmatpush1.bf16.msra.mxu0 0
    %5568 = vmatprep.subr.bf16.mxu0 0
    %5569 = vmatpush1.bf16.msra.mxu0 0
    %5570 = vmatprep.subr.bf16.mxu0 0
    %5571 = vmatpush1.bf16.msra.mxu0 0
    %5572 = vmatprep.mubr.bf16.mxu0 0
    %5573 = vmatmul.mubr.bf16.gmra.mrb[0].mxu0 %v5323
    %v5574 = vpop.f32.mrb[0].mxu0
    %v5575 = vadd.f32 %v5478, %v5574
    %v5576 = vpop.f32.mrb[0].mxu0
    %v5577 = vpop.f32.mrb[0].mxu0
    %v5578 = vadd.f32 %v5481, %v5577
    %v5579 = vpop.f32.mrb[0].mxu0
    %5580 = vmatprep.mubr.bf16.mxu0 0
    %5581 = vmatmul.mubr.bf16.gmra.mrb[0].mxu0 %v5326
    %v5582 = vpop.f32.mrb[0].mxu0
    %v5583 = vadd.f32 %v5486, %v5582
    %v5584 = vpop.f32.mrb[0].mxu0
    %v5585 = vpop.f32.mrb[0].mxu0
    %v5586 = vadd.f32 %v5489, %v5585
    %v5587 = vpop.f32.mrb[0].mxu0
    %5588 = vmatprep.mubr.bf16.mxu0 0
    %5589 = vmatmul.mubr.bf16.gmra.mrb[0].mxu0 %v5329
    %v5590 = vpop.f32.mrb[0].mxu0
    %v5591 = vadd.f32 %v5494, %v5590
    %v5592 = vpop.f32.mrb[0].mxu0
    %v5593 = vpop.f32.mrb[0].mxu0
    %v5594 = vadd.f32 %v5497, %v5593
    %v5595 = vpop.f32.mrb[0].mxu0
    %5596 = vmatprep.mubr.bf16.mxu0 0
    %5597 = vmatmul.mubr.bf16.gmra.mrb[0].mxu0 %v5332
    %v5598 = vpop.f32.mrb[0].mxu0
    %v5599 = vadd.f32 %v5502, %v5598
    %v5600 = vpop.f32.mrb[0].mxu0
    %v5601 = vpop.f32.mrb[0].mxu0
    %v5602 = vadd.f32 %v5505, %v5601
    %v5603 = vpop.f32.mrb[0].mxu0
    %5604 = vmatprep.mubr.bf16.mxu0 0
    %5605 = vmatmul.mubr.bf16.gmra.mrb[0].mxu0 %v5335
    %v5606 = vpop.f32.mrb[0].mxu0
    %v5607 = vadd.f32 %v5510, %v5606
    %v5608 = vpop.f32.mrb[0].mxu0
    %v5609 = vpop.f32.mrb[0].mxu0
    %v5610 = vadd.f32 %v5513, %v5609
    %v5611 = vpop.f32.mrb[0].mxu0
    %5612 = vmatprep.mubr.bf16.mxu0 0
    %5613 = vmatmul.mubr.bf16.gmra.mrb[0].mxu0 %v5338
    %v5614 = vpop.f32.mrb[0].mxu0
    %v5615 = vadd.f32 %v5518, %v5614
    %v5616 = vpop.f32.mrb[0].mxu0
    %v5617 = vpop.f32.mrb[0].mxu0
    %v5618 = vadd.f32 %v5521, %v5617
    %v5619 = vpop.f32.mrb[0].mxu0
    %5620 = vmatprep.mubr.bf16.mxu0 0
    %5621 = vmatmul.mubr.bf16.gmra.mrb[0].mxu0 %v5341
    %v5622 = vpop.f32.mrb[0].mxu0
    %v5623 = vadd.f32 %v5526, %v5622
    %v5624 = vpop.f32.mrb[0].mxu0
    %v5625 = vpop.f32.mrb[0].mxu0
    %v5626 = vadd.f32 %v5529, %v5625
    %v5627 = vpop.f32.mrb[0].mxu0
    %5628 = vmatprep.mubr.bf16.mxu0 0
    %5629 = vmatmul.mubr.bf16.gmra.mrb[0].mxu0 %v5344
    %v5630 = vpop.f32.mrb[0].mxu0
    %v5631 = vadd.f32 %v5534, %v5630
    %v5632 = vpop.f32.mrb[0].mxu0
    %v5633 = vpop.f32.mrb[0].mxu0
    %v5634 = vadd.f32 %v5537, %v5633
    %v5635 = vpop.f32.mrb[0].mxu0
    %5636 = vdwg.mxu0
    %vm5637 = vcmp.ge.f32.partialorder %v5575, 0.0
    %vm5638 = vcmp.ge.f32.partialorder %v5578, 0.0
    %vm5639 = vcmp.ge.f32.partialorder %v5583, 0.0
    %vm5640 = vcmp.ge.f32.partialorder %v5586, 0.0
    %vm5641 = vcmp.ge.f32.partialorder %v5591, 0.0
    %vm5642 = vcmp.ge.f32.partialorder %v5594, 0.0
    %vm5643 = vcmp.ge.f32.partialorder %v5599, 0.0
    %vm5644 = vcmp.ge.f32.partialorder %v5602, 0.0
    %vm5645 = vcmp.ge.f32.partialorder %v5607, 0.0
    %vm5646 = vcmp.ge.f32.partialorder %v5610, 0.0
    %vm5647 = vcmp.ge.f32.partialorder %v5615, 0.0
    %vm5648 = vcmp.ge.f32.partialorder %v5618, 0.0
    %vm5649 = vcmp.ge.f32.partialorder %v5623, 0.0
    %vm5650 = vcmp.ge.f32.partialorder %v5626, 0.0
    %vm5651 = vcmp.ge.f32.partialorder %v5631, 0.0
    %vm5652 = vcmp.ge.f32.partialorder %v5634, 0.0
    %v5653 = vmul.f32 %v5575, 0.01
    %v5654 = vmul.f32 %v5578, 0.01
    %v5655 = vmul.f32 %v5583, 0.01
    %v5656 = vmul.f32 %v5586, 0.01
    %v5657 = vmul.f32 %v5591, 0.01
    %v5658 = vmul.f32 %v5594, 0.01
    %v5659 = vmul.f32 %v5599, 0.01
    %v5660 = vmul.f32 %v5602, 0.01
    %v5661 = vmul.f32 %v5607, 0.01
    %v5662 = vmul.f32 %v5610, 0.01
    %v5663 = vmul.f32 %v5615, 0.01
    %v5664 = vmul.f32 %v5618, 0.01
    %v5665 = vmul.f32 %v5623, 0.01
    %v5666 = vmul.f32 %v5626, 0.01
    %v5667 = vmul.f32 %v5631, 0.01
    %v5668 = vmul.f32 %v5634, 0.01
    %v5669 = vsel %vm5637, %v5575, %v5653
    %v5670 = vsel %vm5638, %v5578, %v5654
    %v5671 = vsel %vm5639, %v5583, %v5655
    %v5672 = vsel %vm5640, %v5586, %v5656
    %v5673 = vsel %vm5641, %v5591, %v5657
    %v5674 = vsel %vm5642, %v5594, %v5658
    %v5675 = vsel %vm5643, %v5599, %v5659
    %v5676 = vsel %vm5644, %v5602, %v5660
    %v5677 = vsel %vm5645, %v5607, %v5661
    %v5678 = vsel %vm5646, %v5610, %v5662
    %v5679 = vsel %vm5647, %v5615, %v5663
    %v5680 = vsel %vm5648, %v5618, %v5664
    %v5681 = vsel %vm5649, %v5623, %v5665
    %v5682 = vsel %vm5650, %v5626, %v5666
    %v5683 = vsel %vm5651, %v5631, %v5667
    %v5684 = vsel %vm5652, %v5634, %v5668
    %v5685 = vld [vmem:[%s0] sm:$0xff]
    %v5686 = vld [vmem:[%s0 + $0x8] sm:$0xff]
    %v5687 = vld [vmem:[%s0 + $0x10] sm:$0xff]
    %v5688 = vld [vmem:[%s0 + $0x18] sm:$0xff]
    %v5689 = vld [vmem:[%s0 + $0x20] sm:$0xff]
    %v5690 = vld [vmem:[%s0 + $0x28] sm:$0xff]
    %v5691 = vld [vmem:[%s0 + $0x30] sm:$0xff]
    %v5692 = vld [vmem:[%s0 + $0x38] sm:$0xff]
    %v5693 = vld [vmem:[%s0 + $0x40] sm:$0xff]
    %v5694 = vld [vmem:[%s0 + $0x48] sm:$0xff]
    %v5695 = vld [vmem:[%s0 + $0x50] sm:$0xff]
    %v5696 = vld [vmem:[%s0 + $0x58] sm:$0xff]
    %v5697 = vld [vmem:[%s0 + $0x60] sm:$0xff]
    %v5698 = vld [vmem:[%s0 + $0x68] sm:$0xff]
    %v5699 = vld [vmem:[%s0 + $0x70] sm:$0xff]
    %v5700 = vld [vmem:[%s0 + $0x78] sm:$0xff]
    %v5701 = vadd.f32 %v5669, %v5685
    %v5702 = vadd.f32 %v5670, %v5686
    %v5703 = vadd.f32 %v5671, %v5687
    %v5704 = vadd.f32 %v5672, %v5688
    %v5705 = vadd.f32 %v5673, %v5689
    %v5706 = vadd.f32 %v5674, %v5690
    %v5707 = vadd.f32 %v5675, %v5691
    %v5708 = vadd.f32 %v5676, %v5692
    %v5709 = vadd.f32 %v5677, %v5693
    %v5710 = vadd.f32 %v5678, %v5694
    %v5711 = vadd.f32 %v5679, %v5695
    %v5712 = vadd.f32 %v5680, %v5696
    %v5713 = vadd.f32 %v5681, %v5697
    %v5714 = vadd.f32 %v5682, %v5698
    %v5715 = vadd.f32 %v5683, %v5699
    %v5716 = vadd.f32 %v5684, %v5700
    %v5717 = vsel %vm842, %v5701, 0.0
    %v5718 = vsel %vm842, %v5702, 0.0
    %v5719 = vadd.f32 %v5717, %v5718
    %v5720 = vsel %vm842, %v5703, 0.0
    %v5721 = vadd.f32 %v5719, %v5720
    %v5722 = vsel %vm842, %v5704, 0.0
    %v5723 = vadd.f32 %v5721, %v5722
    %v5724 = vsel %vm842, %v5705, 0.0
    %v5725 = vadd.f32 %v5723, %v5724
    %v5726 = vsel %vm842, %v5706, 0.0
    %v5727 = vadd.f32 %v5725, %v5726
    %v5728 = vsel %vm842, %v5707, 0.0
    %v5729 = vadd.f32 %v5727, %v5728
    %v5730 = vsel %vm842, %v5708, 0.0
    %v5731 = vadd.f32 %v5729, %v5730
    %v5732 = vsel %vm842, %v5709, 0.0
    %v5733 = vadd.f32 %v5731, %v5732
    %v5734 = vsel %vm842, %v5710, 0.0
    %v5735 = vadd.f32 %v5733, %v5734
    %v5736 = vsel %vm842, %v5711, 0.0
    %v5737 = vadd.f32 %v5735, %v5736
    %v5738 = vsel %vm842, %v5712, 0.0
    %v5739 = vadd.f32 %v5737, %v5738
    %v5740 = vsel %vm842, %v5713, 0.0
    %v5741 = vadd.f32 %v5739, %v5740
    %v5742 = vsel %vm842, %v5714, 0.0
    %v5743 = vadd.f32 %v5741, %v5742
    %v5744 = vsel %vm842, %v5715, 0.0
    %v5745 = vadd.f32 %v5743, %v5744
    %v5746 = vsel %vm842, %v5716, 0.0
    %v5747 = vadd.f32 %v5745, %v5746
    %v5748 = vrot.slane %v5747, 4
    %v5749 = vadd.f32 %v5747, %v5748
    %v5750 = vrot.slane %v5749, 2
    %v5751 = vadd.f32 %v5749, %v5750
    %v5752 = vrot.slane %v5751, 1
    %v5753 = vadd.f32 %v5751, %v5752
    %v5754 = vmul.f32 %v5701, %v5701
    %v5755 = vmul.f32 %v5702, %v5702
    %v5756 = vmul.f32 %v5703, %v5703
    %v5757 = vmul.f32 %v5704, %v5704
    %v5758 = vmul.f32 %v5705, %v5705
    %v5759 = vmul.f32 %v5706, %v5706
    %v5760 = vmul.f32 %v5707, %v5707
    %v5761 = vmul.f32 %v5708, %v5708
    %v5762 = vmul.f32 %v5709, %v5709
    %v5763 = vmul.f32 %v5710, %v5710
    %v5764 = vmul.f32 %v5711, %v5711
    %v5765 = vmul.f32 %v5712, %v5712
    %v5766 = vmul.f32 %v5713, %v5713
    %v5767 = vmul.f32 %v5714, %v5714
    %v5768 = vmul.f32 %v5715, %v5715
    %v5769 = vmul.f32 %v5716, %v5716
    %v5770 = vsel %vm842, %v5754, 0.0
    %v5771 = vsel %vm842, %v5755, 0.0
    %v5772 = vadd.f32 %v5770, %v5771
    %v5773 = vsel %vm842, %v5756, 0.0
    %v5774 = vadd.f32 %v5772, %v5773
    %v5775 = vsel %vm842, %v5757, 0.0
    %v5776 = vadd.f32 %v5774, %v5775
    %v5777 = vsel %vm842, %v5758, 0.0
    %v5778 = vadd.f32 %v5776, %v5777
    %v5779 = vsel %vm842, %v5759, 0.0
    %v5780 = vadd.f32 %v5778, %v5779
    %v5781 = vsel %vm842, %v5760, 0.0
    %v5782 = vadd.f32 %v5780, %v5781
    %v5783 = vsel %vm842, %v5761, 0.0
    %v5784 = vadd.f32 %v5782, %v5783
    %v5785 = vsel %vm842, %v5762, 0.0
    %v5786 = vadd.f32 %v5784, %v5785
    %v5787 = vsel %vm842, %v5763, 0.0
    %v5788 = vadd.f32 %v5786, %v5787
    %v5789 = vsel %vm842, %v5764, 0.0
    %v5790 = vadd.f32 %v5788, %v5789
    %v5791 = vsel %vm842, %v5765, 0.0
    %v5792 = vadd.f32 %v5790, %v5791
    %v5793 = vsel %vm842, %v5766, 0.0
    %v5794 = vadd.f32 %v5792, %v5793
    %v5795 = vsel %vm842, %v5767, 0.0
    %v5796 = vadd.f32 %v5794, %v5795
    %v5797 = vsel %vm842, %v5768, 0.0
    %v5798 = vadd.f32 %v5796, %v5797
    %v5799 = vsel %vm842, %v5769, 0.0
    %v5800 = vadd.f32 %v5798, %v5799
    %v5801 = vrot.slane %v5800, 4
    %v5802 = vadd.f32 %v5800, %v5801
    %v5803 = vrot.slane %v5802, 2
    %v5804 = vadd.f32 %v5802, %v5803
    %v5805 = vrot.slane %v5804, 1
    %v5806 = vadd.f32 %v5804, %v5805
    %v5807 = vmul.f32 %v5753, 0.0078125
    %v5808 = vmul.f32 %v5806, 0.0078125
    %v5809 = vmul.f32 %v5807, %v5807
    %v5810 = vsub.f32 %v5808, %v5809
    %v5811 = vmax.f32 %v5810, 0.0
    %v5812 = vld [vmem:[%s5] sm:$0x1]
    %v5813 = vadd.f32 %v5811, 1e-05
    %v5814 = vrsqrt.pop %v5813
    %v5815 = vmul.f32 %v5812, %v5814
    %v5816 = vld [vmem:[%s6] sm:$0x1]
    %v5817 = vmul.f32 %v5807, %v5815
    %v5818 = vsub.f32 %v5816, %v5817
    %v5820 = vlaneseq
    %v5821 = vshrl.u32 %v5820, 7
    %v5822 = vsub.s32 0, %v5821
    %v5823 = vrot.slane %v5815, %v5822
    %v5825 = vmul.f32 %v5701, %v5823
    %v5826 = vmul.f32 %v5702, %v5823
    %v5827 = vmul.f32 %v5703, %v5823
    %v5828 = vmul.f32 %v5704, %v5823
    %v5829 = vmul.f32 %v5705, %v5823
    %v5830 = vmul.f32 %v5706, %v5823
    %v5831 = vmul.f32 %v5707, %v5823
    %v5832 = vmul.f32 %v5708, %v5823
    %v5833 = vmul.f32 %v5709, %v5823
    %v5834 = vmul.f32 %v5710, %v5823
    %v5835 = vmul.f32 %v5711, %v5823
    %v5836 = vmul.f32 %v5712, %v5823
    %v5837 = vmul.f32 %v5713, %v5823
    %v5838 = vmul.f32 %v5714, %v5823
    %v5839 = vmul.f32 %v5715, %v5823
    %v5840 = vmul.f32 %v5716, %v5823
    %v5842 = vlaneseq
    %v5843 = vshrl.u32 %v5842, 7
    %v5844 = vsub.s32 0, %v5843
    %v5845 = vrot.slane %v5818, %v5844
    %v5847 = vadd.f32 %v5825, %v5845
    %v5848 = vadd.f32 %v5826, %v5845
    %v5849 = vadd.f32 %v5827, %v5845
    %v5850 = vadd.f32 %v5828, %v5845
    %v5851 = vadd.f32 %v5829, %v5845
    %v5852 = vadd.f32 %v5830, %v5845
    %v5853 = vadd.f32 %v5831, %v5845
    %v5854 = vadd.f32 %v5832, %v5845
    %v5855 = vadd.f32 %v5833, %v5845
    %v5856 = vadd.f32 %v5834, %v5845
    %v5857 = vadd.f32 %v5835, %v5845
    %v5858 = vadd.f32 %v5836, %v5845
    %v5859 = vadd.f32 %v5837, %v5845
    %v5860 = vadd.f32 %v5838, %v5845
    %v5861 = vadd.f32 %v5839, %v5845
    %v5862 = vadd.f32 %v5840, %v5845
    %5863 = vst.msk [vmem:[#allocation4] sm:$0xff] %vm842, %v5847
    %5864 = vst.msk [vmem:[#allocation4 + $0x8] sm:$0xff] %vm842, %v5848
    %5865 = vst.msk [vmem:[#allocation4 + $0x10] sm:$0xff] %vm842, %v5849
    %5866 = vst.msk [vmem:[#allocation4 + $0x18] sm:$0xff] %vm842, %v5850
    %5867 = vst.msk [vmem:[#allocation4 + $0x20] sm:$0xff] %vm842, %v5851
    %5868 = vst.msk [vmem:[#allocation4 + $0x28] sm:$0xff] %vm842, %v5852
    %5869 = vst.msk [vmem:[#allocation4 + $0x30] sm:$0xff] %vm842, %v5853
    %5870 = vst.msk [vmem:[#allocation4 + $0x38] sm:$0xff] %vm842, %v5854
    %5871 = vst.msk [vmem:[#allocation4 + $0x40] sm:$0xff] %vm842, %v5855
    %5872 = vst.msk [vmem:[#allocation4 + $0x48] sm:$0xff] %vm842, %v5856
    %5873 = vst.msk [vmem:[#allocation4 + $0x50] sm:$0xff] %vm842, %v5857
    %5874 = vst.msk [vmem:[#allocation4 + $0x58] sm:$0xff] %vm842, %v5858
    %5875 = vst.msk [vmem:[#allocation4 + $0x60] sm:$0xff] %vm842, %v5859
    %5876 = vst.msk [vmem:[#allocation4 + $0x68] sm:$0xff] %vm842, %v5860
    %5877 = vst.msk [vmem:[#allocation4 + $0x70] sm:$0xff] %vm842, %v5861
    %5878 = vst.msk [vmem:[#allocation4 + $0x78] sm:$0xff] %vm842, %v5862
    // Predicated region
    $region30: #{conv_block_forward.1} parent=1 // pred_check
      _
    $region31: #{conv_block_forward.1} parent=1 // pred_check_branch
      %5880 = sbr.rel (0) target = $region33
    $region32: #{conv_block_forward.1} parent=1 // pred_region
      %s5882 = ssub.s32 2048, 2048
      %5883 = vsyncadd [#allocation5], %s5882
      %s5884 = sshll.u32 [#allocation4], 4
      %s5885 = int_to_ptr.vmem [resolvable:$true] %s5884
      %5890 = dma.vmem_to_hbm [thread:$0]  %s5885, 2048, %s7, [#allocation5], 128, 128, 8
    $region33: #{conv_block_forward.1} parent=1 // pred_fallthru
      _
    // Predicated region
    $region34: #{conv_block_forward.1} parent=1 // pred_check
      _
    $region35: #{conv_block_forward.1} parent=1 // pred_check_branch
      %5892 = sbr.rel (0) target = $region37
    $region36: #{conv_block_forward.1} parent=1 // pred_region
      %5893 = dma.done [#allocation5], 2048
    $region37: #{conv_block_forward.1} parent=1 // pred_fallthru
      _
    %5894 = vsyncpa [#allocation5], 1

</llo_original>
